<compile_context>
chip_gen: v6e
topology: v6e:2x2x1
jax: 0.10.0
libtpu: 0.0.40
codegen_flags: <defaults>
</compile_context>

<pallas_src>
import math
import numpy as np
import jax
import jax.numpy as jnp
from jax import lax
from jax.experimental import pallas as pl
from jax.experimental.pallas import tpu as pltpu  # noqa: F401  (TPU backend)

# ---------------- config (small, deterministic) ----------------
EMB_DIM     = 16      # embedding_dim
MODEL_DIM   = 32      # transformer_dim
HIDDEN_DIM  = 32      # transformer_hidden_dim
MAX_SEQ_LEN = 8
NUM_HEAD    = 4
HEAD_DIM    = MODEL_DIM // NUM_HEAD
NUM_LAYERS  = 2
LN_EPS      = 1e-5
BATCH       = 2
SEQ_LEN     = MAX_SEQ_LEN
BS          = BATCH * SEQ_LEN          # batch folded into the sublane dimension

# ---------------- packed parameter slab layout ----------------
# Matrix slab (MAT_ROWS, 128): every block starts at lane 0, row offsets are
# 8-aligned -> static sublane-offset slices, no lane rotations on load.
SLAB_LANES = 128
R_WE    = 0                     # (EMB_DIM, D)   word-embedding Linear weight
R_ADD0  = 16                    # (BS, D)        word-emb bias + position rows
R_BIAS  = 32                    # (BS, BS)       block-diagonal -1e6 attention bias
R_HMASK = 48                    # (NUM_HEAD, D)  per-head 0/1 lane masks
R_MASKC = 56                    # (BS, 1)        output mask column (all ones)
R_WQKV  = 72                    # (D, 3D)        [Wq/sqrt(hd) | Wk | Wv]
R_WO    = 104                   # (D, D)
R_W1    = 136                   # (D, H)
R_W2    = 168                   # (H, D)
MAT_ROWS = 200

# Vector slab (VEC_ROWS, 128): one (1, width) parameter row per sublane.
V_G1, V_B1, V_BQKV, V_BO, V_G2, V_B2, V_C1, V_C2, V_GF, V_BF = range(10)
VEC_ROWS = 16


# ---------------- in-kernel math helpers ----------------
def _layernorm(x, g, b):
    mu = jnp.mean(x, axis=-1, keepdims=True)
    var = jnp.mean(jnp.square(x - mu), axis=-1, keepdims=True)
    return (x - mu) * lax.rsqrt(var + LN_EPS) * g + b


_GELU_C = math.sqrt(2.0 / math.pi)


def _gelu(x):
    # tanh-approx GELU: the transcendental lands on the EUP slot; deviation
    # from exact (erf) GELU is far below the 5e-3 test tolerance at |x| ~ 0.1.
    return 0.5 * x * (1.0 + jnp.tanh(_GELU_C * (x + 0.044715 * x * x * x)))


# ---------------- single fused kernel: whole forward pass ----------------
def _fused_kernel(x_ref, mat_ref, vec_ref, out_ref):
    f32 = jnp.float32
    D, H3 = MODEL_DIM, 3 * MODEL_DIM

    # ---- hoisted parameter / constant loads (layer loop below is unrolled) ----
    bias   = mat_ref[R_BIAS:R_BIAS + BS, 0:BS]                      # (BS, BS)
    maskc  = mat_ref[R_MASKC:R_MASKC + BS, 0:1]                     # (BS, 1)
    hmasks = [mat_ref[R_HMASK + h:R_HMASK + h + 1, 0:D]
              for h in range(NUM_HEAD)]                             # (1, D) each
    wqkv = mat_ref[R_WQKV:R_WQKV + D, 0:H3]                         # (D, 3D)
    wo   = mat_ref[R_WO:R_WO + D, 0:D]
    w1   = mat_ref[R_W1:R_W1 + D, 0:HIDDEN_DIM]
    w2   = mat_ref[R_W2:R_W2 + HIDDEN_DIM, 0:D]

    g1   = vec_ref[V_G1:V_G1 + 1, 0:D]
    b1   = vec_ref[V_B1:V_B1 + 1, 0:D]
    bqkv = vec_ref[V_BQKV:V_BQKV + 1, 0:H3]
    bo   = vec_ref[V_BO:V_BO + 1, 0:D]
    g2   = vec_ref[V_G2:V_G2 + 1, 0:D]
    b2   = vec_ref[V_B2:V_B2 + 1, 0:D]
    c1   = vec_ref[V_C1:V_C1 + 1, 0:HIDDEN_DIM]
    c2   = vec_ref[V_C2:V_C2 + 1, 0:D]
    gf   = vec_ref[V_GF:V_GF + 1, 0:D]
    bf   = vec_ref[V_BF:V_BF + 1, 0:D]

    # ---- Embeddings: token Linear + (bias + position rows), batch in sublanes ----
    x = jnp.dot(x_ref[...], mat_ref[R_WE:R_WE + EMB_DIM, 0:D],
                preferred_element_type=f32)
    x = x + mat_ref[R_ADD0:R_ADD0 + BS, 0:D]                        # (BS, D)

    # ---- tied transformer layers, fully unrolled ----
    for _ in range(NUM_LAYERS):
        # pre-LN multi-head attention; 1/sqrt(head_dim) pre-folded into Wq/bq.
        xn = _layernorm(x, g1, b1)
        qkv = jnp.dot(xn, wqkv, preferred_element_type=f32) + bqkv  # (BS, 3D)
        q = qkv[:, 0:D]
        k = qkv[:, D:2 * D]
        v = qkv[:, 2 * D:3 * D]

        o = None
        for h in range(NUM_HEAD):
            mh = hmasks[h]
            # Head-h scores: zero q's off-head lanes (VALU mul) so the full
            # 32-lane contraction equals the per-head 8-lane contraction,
            # with no lane slicing / relayout.
            s = lax.dot_general(q * mh, k, (((1,), (1,)), ((), ())),
                                preferred_element_type=f32) + bias
            m = jnp.max(s, axis=-1, keepdims=True)
            e = jnp.exp(s - m)                                       # EUP
            p = e * pl.reciprocal(jnp.sum(e, axis=-1, keepdims=True), approx=True)
            oh = jnp.dot(p, v * mh, preferred_element_type=f32)      # off-head lanes = 0
            o = oh if o is None else o + oh                          # accumulate, no concat
        x = x + jnp.dot(o, wo, preferred_element_type=f32) + bo

        # pre-LN MLP block
        xn2 = _layernorm(x, g2, b2)
        h1 = _gelu(jnp.dot(xn2, w1, preferred_element_type=f32) + c1)
        x = x + jnp.dot(h1, w2, preferred_element_type=f32) + c2

    # ---- final LayerNorm * mask ----
    # TODO(synk): output is a 32-lane (masked) store; a (4,128) lane-dense
    #             repack would need an extra in-kernel relayout, not worth it here.
    out_ref[...] = _layernorm(x, gf, bf) * maskc


# ---------------- host-side parameter packing ----------------
def _pack_inputs(input_ids, params):
    B, S, E = input_ids.shape
    D, H = MODEL_DIM, HIDDEN_DIM
    bs = B * S
    (g1, b1, wq, bq, wk, bk, wv, bv, wo, bo, g2, b2, w1, c1, w2, c2) = params["layer"]
    scale = 1.0 / math.sqrt(HEAD_DIM)

    x_flat = input_ids.reshape(bs, E).astype(jnp.float32)

    mat = jnp.zeros((MAT_ROWS, SLAB_LANES), jnp.float32)
    mat = mat.at[R_WE:R_WE + E, 0:D].set(params["we"])
    add0 = jnp.tile(params["pos"][:S], (B, 1)) + params["be"]        # (bs, D)
    mat = mat.at[R_ADD0:R_ADD0 + bs, 0:D].set(add0)

    # mask=None -> all-ones key mask; only the block-diagonal structure (no
    # cross-batch attention after folding batch into sublanes) remains.
    row_b = jnp.repeat(jnp.arange(B), S)
    same = (row_b[:, None] == row_b[None, :]).astype(jnp.float32)
    mat = mat.at[R_BIAS:R_BIAS + bs, 0:bs].set(-1e6 * (1.0 - same))

    lane = jnp.arange(D)
    hmask = (lane[None, :] // HEAD_DIM == jnp.arange(NUM_HEAD)[:, None]).astype(jnp.float32)
    mat = mat.at[R_HMASK:R_HMASK + NUM_HEAD, 0:D].set(hmask)

    mat = mat.at[R_MASKC:R_MASKC + bs, 0:1].set(jnp.ones((bs, 1), jnp.float32))

    wqkv = jnp.concatenate([wq * scale, wk, wv], axis=1)             # (D, 3D)
    mat = mat.at[R_WQKV:R_WQKV + D, 0:3 * D].set(wqkv)
    mat = mat.at[R_WO:R_WO + D, 0:D].set(wo)
    mat = mat.at[R_W1:R_W1 + D, 0:H].set(w1)
    mat = mat.at[R_W2:R_W2 + H, 0:D].set(w2)

    vec = jnp.zeros((VEC_ROWS, SLAB_LANES), jnp.float32)
    bqkv = jnp.concatenate([bq * scale, bk, bv], axis=1)             # (1, 3D)
    rows = [(V_G1, g1), (V_B1, b1), (V_BQKV, bqkv), (V_BO, bo), (V_G2, g2),
            (V_B2, b2), (V_C1, c1), (V_C2, c2),
            (V_GF, params["ln_g"]), (V_BF, params["ln_b"])]
    for r, val in rows:
        vec = vec.at[r, 0:val.shape[-1]].set(val.reshape(-1))
    return x_flat, mat, vec


@jax.jit
def model_forward(input_ids, params):
    B, S, _ = input_ids.shape
    x_flat, mat, vec = _pack_inputs(input_ids, params)
    out_flat = pl.pallas_call(
        _fused_kernel,
        out_shape=jax.ShapeDtypeStruct((B * S, MODEL_DIM), jnp.float32),
        grid=(1,),
        in_specs=[pl.BlockSpec((B * S, EMB_DIM), lambda i: (0, 0)),
                  pl.BlockSpec((MAT_ROWS, SLAB_LANES), lambda i: (0, 0)),
                  pl.BlockSpec((VEC_ROWS, SLAB_LANES), lambda i: (0, 0))],
        out_specs=pl.BlockSpec((B * S, MODEL_DIM), lambda i: (0, 0)),
    )(x_flat, mat, vec)
    return out_flat.reshape(B, S, MODEL_DIM)


# ---------------- pure-JAX reference (spec math, no Pallas) ----------------
def reference(input_ids, params):
    B, S, _ = input_ids.shape
    mask = jnp.ones((B, S), jnp.float32)
    X = input_ids @ params["we"] + params["be"] + params["pos"][:S][None]
    (g1, b1, wq, bq, wk, bk, wv, bv, wo, bo, g2, b2, w1, c1, w2, c2) = params["layer"]
    neg = -1e6 * (1.0 - mask)[:, None, None, :]
    for _ in range(NUM_LAYERS):
        xn = _layernorm(X, g1, b1)
        q = (xn @ wq + bq).reshape(B, S, NUM_HEAD, HEAD_DIM).transpose(0, 2, 1, 3)
        k = (xn @ wk + bk).reshape(B, S, NUM_HEAD, HEAD_DIM).transpose(0, 2, 1, 3)
        v = (xn @ wv + bv).reshape(B, S, NUM_HEAD, HEAD_DIM).transpose(0, 2, 1, 3)
        s = jnp.einsum("bhqd,bhkd->bhqk", q, k) / math.sqrt(HEAD_DIM) + neg
        p = jax.nn.softmax(s, axis=-1)
        o = jnp.einsum("bhqk,bhkd->bhqd", p, v).transpose(0, 2, 1, 3).reshape(B, S, MODEL_DIM)
        X = X + o @ wo + bo
        xn2 = _layernorm(X, g2, b2)
        X = X + jax.nn.gelu(xn2 @ w1 + c1, approximate=False) @ w2 + c2
    return _layernorm(X, params["ln_g"], params["ln_b"]) * mask[:, :, None]


# ---------------- deterministic parameter construction ----------------
def make_params(key):
    ks = jax.random.split(key, 20)
    n = lambda k, shp, std=0.02: (std * jax.random.normal(k, shp)).astype(jnp.float32)
    D, E, H = MODEL_DIM, EMB_DIM, HIDDEN_DIM
    layer = (
        jnp.ones((1, D), jnp.float32), jnp.zeros((1, D), jnp.float32),   # LN1
        n(ks[0], (D, D)), n(ks[1], (1, D)),                              # Wq, bq
        n(ks[2], (D, D)), n(ks[3], (1, D)),                              # Wk, bk
        n(ks[4], (D, D)), n(ks[5], (1, D)),                              # Wv, bv
        n(ks[6], (D, D)), n(ks[7], (1, D)),                              # Wo, bo
        jnp.ones((1, D), jnp.float32), jnp.zeros((1, D), jnp.float32),   # LN2
        n(ks[8], (D, H)), n(ks[9], (1, H)),                              # mlp W1, b1
        n(ks[10], (H, D)), n(ks[11], (1, D)),                            # mlp W2, b2
    )
    return {
        "we": n(ks[12], (E, D)),                    # word_embeddings (Linear, std 0.02)
        "be": n(ks[13], (1, D)),
        "pos": n(ks[14], (MAX_SEQ_LEN, D)),         # position_embeddings table
        "layer": layer,
        "ln_g": jnp.ones((1, D), jnp.float32),      # final LayerNorm
        "ln_b": jnp.zeros((1, D), jnp.float32),
    }


if __name__ == "__main__":
    key = jax.random.PRNGKey(0)
    k_in, k_par = jax.random.split(key)
    input_ids = jax.random.normal(k_in, (BATCH, MAX_SEQ_LEN, EMB_DIM), jnp.float32)
    params = make_params(k_par)

    out = jax.block_until_ready(model_forward(input_ids, params))
    ref = jax.block_until_ready(reference(input_ids, params))

    np.testing.assert_allclose(np.asarray(out), np.asarray(ref), rtol=5e-3, atol=5e-3)
    print("KERNEL_OK")
</pallas_src>

<mosaic_0001>
module attributes {stable_mosaic.version = 11 : i64} {
  func.func @_fused_kernel(%arg0: i32, %arg1: memref<16x16xf32, #tpu.memory_space<vmem>>, %arg2: memref<200x128xf32, #tpu.memory_space<vmem>>, %arg3: memref<16x128xf32, #tpu.memory_space<vmem>>, %arg4: memref<16x32xf32, #tpu.memory_space<vmem>>) attributes {dimension_semantics = [#tpu.dimension_semantics<arbitrary>], iteration_bounds = array<i64: 1>, scalar_prefetch = 0 : i64, scratch_operands = 0 : i64, tpu.core_type = #tpu.core_type<tc>, window_params = [{pipeline_mode = #tpu.pipeline_mode<synchronous>, transform_indices = @transform_0, window_bounds = array<i64: 16, 16>}, {pipeline_mode = #tpu.pipeline_mode<synchronous>, transform_indices = @transform_1, window_bounds = array<i64: 200, 128>}, {pipeline_mode = #tpu.pipeline_mode<synchronous>, transform_indices = @transform_2, window_bounds = array<i64: 16, 128>}, {pipeline_mode = #tpu.pipeline_mode<synchronous>, transform_indices = @transform_3, window_bounds = array<i64: 16, 32>}]} {
    %c32 = arith.constant 32 : index
    %c0 = arith.constant 0 : index
    %0 = vector.load %arg2[%c32, %c0] : memref<200x128xf32, #tpu.memory_space<vmem>>, vector<16x16xf32>
    %c56 = arith.constant 56 : index
    %c0_0 = arith.constant 0 : index
    %1 = vector.load %arg2[%c56, %c0_0] : memref<200x128xf32, #tpu.memory_space<vmem>>, vector<16x1xf32>
    %c48 = arith.constant 48 : index
    %c0_1 = arith.constant 0 : index
    %2 = vector.load %arg2[%c48, %c0_1] : memref<200x128xf32, #tpu.memory_space<vmem>>, vector<1x32xf32>
    %c49 = arith.constant 49 : index
    %c0_2 = arith.constant 0 : index
    %3 = vector.load %arg2[%c49, %c0_2] : memref<200x128xf32, #tpu.memory_space<vmem>>, vector<1x32xf32>
    %c50 = arith.constant 50 : index
    %c0_3 = arith.constant 0 : index
    %4 = vector.load %arg2[%c50, %c0_3] : memref<200x128xf32, #tpu.memory_space<vmem>>, vector<1x32xf32>
    %c51 = arith.constant 51 : index
    %c0_4 = arith.constant 0 : index
    %5 = vector.load %arg2[%c51, %c0_4] : memref<200x128xf32, #tpu.memory_space<vmem>>, vector<1x32xf32>
    %c72 = arith.constant 72 : index
    %c0_5 = arith.constant 0 : index
    %6 = vector.load %arg2[%c72, %c0_5] : memref<200x128xf32, #tpu.memory_space<vmem>>, vector<32x96xf32>
    %c104 = arith.constant 104 : index
    %c0_6 = arith.constant 0 : index
    %7 = vector.load %arg2[%c104, %c0_6] : memref<200x128xf32, #tpu.memory_space<vmem>>, vector<32x32xf32>
    %c136 = arith.constant 136 : index
    %c0_7 = arith.constant 0 : index
    %8 = vector.load %arg2[%c136, %c0_7] : memref<200x128xf32, #tpu.memory_space<vmem>>, vector<32x32xf32>
    %c168 = arith.constant 168 : index
    %c0_8 = arith.constant 0 : index
    %9 = vector.load %arg2[%c168, %c0_8] : memref<200x128xf32, #tpu.memory_space<vmem>>, vector<32x32xf32>
    %c0_9 = arith.constant 0 : index
    %c0_10 = arith.constant 0 : index
    %10 = vector.load %arg3[%c0_9, %c0_10] : memref<16x128xf32, #tpu.memory_space<vmem>>, vector<1x32xf32>
    %c1 = arith.constant 1 : index
    %c0_11 = arith.constant 0 : index
    %11 = vector.load %arg3[%c1, %c0_11] : memref<16x128xf32, #tpu.memory_space<vmem>>, vector<1x32xf32>
    %c2 = arith.constant 2 : index
    %c0_12 = arith.constant 0 : index
    %12 = vector.load %arg3[%c2, %c0_12] : memref<16x128xf32, #tpu.memory_space<vmem>>, vector<1x96xf32>
    %c3 = arith.constant 3 : index
    %c0_13 = arith.constant 0 : index
    %13 = vector.load %arg3[%c3, %c0_13] : memref<16x128xf32, #tpu.memory_space<vmem>>, vector<1x32xf32>
    %c4 = arith.constant 4 : index
    %c0_14 = arith.constant 0 : index
    %14 = vector.load %arg3[%c4, %c0_14] : memref<16x128xf32, #tpu.memory_space<vmem>>, vector<1x32xf32>
    %c5 = arith.constant 5 : index
    %c0_15 = arith.constant 0 : index
    %15 = vector.load %arg3[%c5, %c0_15] : memref<16x128xf32, #tpu.memory_space<vmem>>, vector<1x32xf32>
    %c6 = arith.constant 6 : index
    %c0_16 = arith.constant 0 : index
    %16 = vector.load %arg3[%c6, %c0_16] : memref<16x128xf32, #tpu.memory_space<vmem>>, vector<1x32xf32>
    %c7 = arith.constant 7 : index
    %c0_17 = arith.constant 0 : index
    %17 = vector.load %arg3[%c7, %c0_17] : memref<16x128xf32, #tpu.memory_space<vmem>>, vector<1x32xf32>
    %c8 = arith.constant 8 : index
    %c0_18 = arith.constant 0 : index
    %18 = vector.load %arg3[%c8, %c0_18] : memref<16x128xf32, #tpu.memory_space<vmem>>, vector<1x32xf32>
    %c9 = arith.constant 9 : index
    %c0_19 = arith.constant 0 : index
    %19 = vector.load %arg3[%c9, %c0_19] : memref<16x128xf32, #tpu.memory_space<vmem>>, vector<1x32xf32>
    %c0_20 = arith.constant 0 : index
    %c0_21 = arith.constant 0 : index
    %20 = vector.load %arg1[%c0_20, %c0_21] : memref<16x16xf32, #tpu.memory_space<vmem>>, vector<16x16xf32>
    %c0_22 = arith.constant 0 : index
    %c0_23 = arith.constant 0 : index
    %21 = vector.load %arg2[%c0_22, %c0_23] : memref<200x128xf32, #tpu.memory_space<vmem>>, vector<16x32xf32>
    %cst = arith.constant dense<0.000000e+00> : vector<16x32xf32>
    %22 = tpu.matmul %20, %21, %cst {dimension_numbers = #tpu.dot_dimension_numbers<[1], [0], [0], [1], [0, 0, 1, 1], [], []>} : vector<16x16xf32>, vector<16x32xf32>, vector<16x32xf32> -> vector<16x32xf32>
    %c16 = arith.constant 16 : index
    %c0_24 = arith.constant 0 : index
    %23 = vector.load %arg2[%c16, %c0_24] : memref<200x128xf32, #tpu.memory_space<vmem>>, vector<16x32xf32>
    %24 = arith.addf %22, %23 : vector<16x32xf32>
    %cst_25 = arith.constant dense<0.000000e+00> : vector<16xf32>
    %25 = vector.multi_reduction <add>, %24, %cst_25 [1] : vector<16x32xf32> to vector<16xf32>
    %26 = vector.shape_cast %25 : vector<16xf32> to vector<16x1xf32>
    %cst_26 = arith.constant 3.200000e+01 : f32
    %27 = vector.broadcast %cst_26 : f32 to vector<16x1xf32>
    %28 = arith.divf %26, %27 : vector<16x1xf32>
    %29 = vector.broadcast %28 : vector<16x1xf32> to vector<16x32xf32>
    %30 = arith.subf %24, %29 : vector<16x32xf32>
    %31 = arith.mulf %30, %30 : vector<16x32xf32>
    %cst_27 = arith.constant dense<0.000000e+00> : vector<16xf32>
    %32 = vector.multi_reduction <add>, %31, %cst_27 [1] : vector<16x32xf32> to vector<16xf32>
    %33 = vector.shape_cast %32 : vector<16xf32> to vector<16x1xf32>
    %cst_28 = arith.constant 3.200000e+01 : f32
    %34 = vector.broadcast %cst_28 : f32 to vector<16x1xf32>
    %35 = arith.divf %33, %34 : vector<16x1xf32>
    %36 = vector.broadcast %28 : vector<16x1xf32> to vector<16x32xf32>
    %37 = arith.subf %24, %36 : vector<16x32xf32>
    %cst_29 = arith.constant 9.99999974E-6 : f32
    %38 = vector.broadcast %cst_29 : f32 to vector<16x1xf32>
    %39 = arith.addf %35, %38 : vector<16x1xf32>
    %40 = math.rsqrt %39 : vector<16x1xf32>
    %41 = vector.broadcast %40 : vector<16x1xf32> to vector<16x32xf32>
    %42 = arith.mulf %37, %41 : vector<16x32xf32>
    %43 = vector.broadcast %10 : vector<1x32xf32> to vector<16x32xf32>
    %44 = arith.mulf %42, %43 : vector<16x32xf32>
    %45 = vector.broadcast %11 : vector<1x32xf32> to vector<16x32xf32>
    %46 = arith.addf %44, %45 : vector<16x32xf32>
    %cst_30 = arith.constant dense<0.000000e+00> : vector<16x96xf32>
    %47 = tpu.matmul %46, %6, %cst_30 {dimension_numbers = #tpu.dot_dimension_numbers<[1], [0], [0], [1], [0, 0, 1, 1], [], []>} : vector<16x32xf32>, vector<32x96xf32>, vector<16x96xf32> -> vector<16x96xf32>
    %48 = vector.broadcast %12 : vector<1x96xf32> to vector<16x96xf32>
    %49 = arith.addf %47, %48 : vector<16x96xf32>
    %50 = vector.extract_strided_slice %49 {offsets = [0, 0], sizes = [16, 32], strides = [1, 1]} : vector<16x96xf32> to vector<16x32xf32>
    %51 = vector.extract_strided_slice %49 {offsets = [0, 32], sizes = [16, 32], strides = [1, 1]} : vector<16x96xf32> to vector<16x32xf32>
    %52 = vector.extract_strided_slice %49 {offsets = [0, 64], sizes = [16, 32], strides = [1, 1]} : vector<16x96xf32> to vector<16x32xf32>
    %53 = vector.broadcast %2 : vector<1x32xf32> to vector<16x32xf32>
    %54 = arith.mulf %50, %53 : vector<16x32xf32>
    %cst_31 = arith.constant dense<0.000000e+00> : vector<16x16xf32>
    %55 = tpu.matmul %54, %51, %cst_31 {dimension_numbers = #tpu.dot_dimension_numbers<[1], [1], [0], [0], [0, 0, 1, 0], [], []>} : vector<16x32xf32>, vector<16x32xf32>, vector<16x16xf32> -> vector<16x16xf32>
    %56 = arith.addf %55, %0 : vector<16x16xf32>
    %cst_32 = arith.constant dense<0xFF800000> : vector<16xf32>
    %57 = vector.multi_reduction <maximumf>, %56, %cst_32 [1] : vector<16x16xf32> to vector<16xf32>
    %58 = vector.shape_cast %57 : vector<16xf32> to vector<16x1xf32>
    %59 = vector.broadcast %58 : vector<16x1xf32> to vector<16x16xf32>
    %60 = arith.subf %56, %59 : vector<16x16xf32>
    %61 = math.exp %60 : vector<16x16xf32>
    %cst_33 = arith.constant dense<0.000000e+00> : vector<16xf32>
    %62 = vector.multi_reduction <add>, %61, %cst_33 [1] : vector<16x16xf32> to vector<16xf32>
    %63 = vector.shape_cast %62 : vector<16xf32> to vector<16x1xf32>
    %64 = tpu.reciprocal %63 {approx = true} : vector<16x1xf32> -> vector<16x1xf32>
    %65 = vector.broadcast %64 : vector<16x1xf32> to vector<16x16xf32>
    %66 = arith.mulf %61, %65 : vector<16x16xf32>
    %67 = vector.broadcast %2 : vector<1x32xf32> to vector<16x32xf32>
    %68 = arith.mulf %52, %67 : vector<16x32xf32>
    %cst_34 = arith.constant dense<0.000000e+00> : vector<16x32xf32>
    %69 = tpu.matmul %66, %68, %cst_34 {dimension_numbers = #tpu.dot_dimension_numbers<[1], [0], [0], [1], [0, 0, 1, 1], [], []>} : vector<16x16xf32>, vector<16x32xf32>, vector<16x32xf32> -> vector<16x32xf32>
    %70 = vector.broadcast %3 : vector<1x32xf32> to vector<16x32xf32>
    %71 = arith.mulf %50, %70 : vector<16x32xf32>
    %cst_35 = arith.constant dense<0.000000e+00> : vector<16x16xf32>
    %72 = tpu.matmul %71, %51, %cst_35 {dimension_numbers = #tpu.dot_dimension_numbers<[1], [1], [0], [0], [0, 0, 1, 0], [], []>} : vector<16x32xf32>, vector<16x32xf32>, vector<16x16xf32> -> vector<16x16xf32>
    %73 = arith.addf %72, %0 : vector<16x16xf32>
    %cst_36 = arith.constant dense<0xFF800000> : vector<16xf32>
    %74 = vector.multi_reduction <maximumf>, %73, %cst_36 [1] : vector<16x16xf32> to vector<16xf32>
    %75 = vector.shape_cast %74 : vector<16xf32> to vector<16x1xf32>
    %76 = vector.broadcast %75 : vector<16x1xf32> to vector<16x16xf32>
    %77 = arith.subf %73, %76 : vector<16x16xf32>
    %78 = math.exp %77 : vector<16x16xf32>
    %cst_37 = arith.constant dense<0.000000e+00> : vector<16xf32>
    %79 = vector.multi_reduction <add>, %78, %cst_37 [1] : vector<16x16xf32> to vector<16xf32>
    %80 = vector.shape_cast %79 : vector<16xf32> to vector<16x1xf32>
    %81 = tpu.reciprocal %80 {approx = true} : vector<16x1xf32> -> vector<16x1xf32>
    %82 = vector.broadcast %81 : vector<16x1xf32> to vector<16x16xf32>
    %83 = arith.mulf %78, %82 : vector<16x16xf32>
    %84 = vector.broadcast %3 : vector<1x32xf32> to vector<16x32xf32>
    %85 = arith.mulf %52, %84 : vector<16x32xf32>
    %cst_38 = arith.constant dense<0.000000e+00> : vector<16x32xf32>
    %86 = tpu.matmul %83, %85, %cst_38 {dimension_numbers = #tpu.dot_dimension_numbers<[1], [0], [0], [1], [0, 0, 1, 1], [], []>} : vector<16x16xf32>, vector<16x32xf32>, vector<16x32xf32> -> vector<16x32xf32>
    %87 = arith.addf %69, %86 : vector<16x32xf32>
    %88 = vector.broadcast %4 : vector<1x32xf32> to vector<16x32xf32>
    %89 = arith.mulf %50, %88 : vector<16x32xf32>
    %cst_39 = arith.constant dense<0.000000e+00> : vector<16x16xf32>
    %90 = tpu.matmul %89, %51, %cst_39 {dimension_numbers = #tpu.dot_dimension_numbers<[1], [1], [0], [0], [0, 0, 1, 0], [], []>} : vector<16x32xf32>, vector<16x32xf32>, vector<16x16xf32> -> vector<16x16xf32>
    %91 = arith.addf %90, %0 : vector<16x16xf32>
    %cst_40 = arith.constant dense<0xFF800000> : vector<16xf32>
    %92 = vector.multi_reduction <maximumf>, %91, %cst_40 [1] : vector<16x16xf32> to vector<16xf32>
    %93 = vector.shape_cast %92 : vector<16xf32> to vector<16x1xf32>
    %94 = vector.broadcast %93 : vector<16x1xf32> to vector<16x16xf32>
    %95 = arith.subf %91, %94 : vector<16x16xf32>
    %96 = math.exp %95 : vector<16x16xf32>
    %cst_41 = arith.constant dense<0.000000e+00> : vector<16xf32>
    %97 = vector.multi_reduction <add>, %96, %cst_41 [1] : vector<16x16xf32> to vector<16xf32>
    %98 = vector.shape_cast %97 : vector<16xf32> to vector<16x1xf32>
    %99 = tpu.reciprocal %98 {approx = true} : vector<16x1xf32> -> vector<16x1xf32>
    %100 = vector.broadcast %99 : vector<16x1xf32> to vector<16x16xf32>
    %101 = arith.mulf %96, %100 : vector<16x16xf32>
    %102 = vector.broadcast %4 : vector<1x32xf32> to vector<16x32xf32>
    %103 = arith.mulf %52, %102 : vector<16x32xf32>
    %cst_42 = arith.constant dense<0.000000e+00> : vector<16x32xf32>
    %104 = tpu.matmul %101, %103, %cst_42 {dimension_numbers = #tpu.dot_dimension_numbers<[1], [0], [0], [1], [0, 0, 1, 1], [], []>} : vector<16x16xf32>, vector<16x32xf32>, vector<16x32xf32> -> vector<16x32xf32>
    %105 = arith.addf %87, %104 : vector<16x32xf32>
    %106 = vector.broadcast %5 : vector<1x32xf32> to vector<16x32xf32>
    %107 = arith.mulf %50, %106 : vector<16x32xf32>
    %cst_43 = arith.constant dense<0.000000e+00> : vector<16x16xf32>
    %108 = tpu.matmul %107, %51, %cst_43 {dimension_numbers = #tpu.dot_dimension_numbers<[1], [1], [0], [0], [0, 0, 1, 0], [], []>} : vector<16x32xf32>, vector<16x32xf32>, vector<16x16xf32> -> vector<16x16xf32>
    %109 = arith.addf %108, %0 : vector<16x16xf32>
    %cst_44 = arith.constant dense<0xFF800000> : vector<16xf32>
    %110 = vector.multi_reduction <maximumf>, %109, %cst_44 [1] : vector<16x16xf32> to vector<16xf32>
    %111 = vector.shape_cast %110 : vector<16xf32> to vector<16x1xf32>
    %112 = vector.broadcast %111 : vector<16x1xf32> to vector<16x16xf32>
    %113 = arith.subf %109, %112 : vector<16x16xf32>
    %114 = math.exp %113 : vector<16x16xf32>
    %cst_45 = arith.constant dense<0.000000e+00> : vector<16xf32>
    %115 = vector.multi_reduction <add>, %114, %cst_45 [1] : vector<16x16xf32> to vector<16xf32>
    %116 = vector.shape_cast %115 : vector<16xf32> to vector<16x1xf32>
    %117 = tpu.reciprocal %116 {approx = true} : vector<16x1xf32> -> vector<16x1xf32>
    %118 = vector.broadcast %117 : vector<16x1xf32> to vector<16x16xf32>
    %119 = arith.mulf %114, %118 : vector<16x16xf32>
    %120 = vector.broadcast %5 : vector<1x32xf32> to vector<16x32xf32>
    %121 = arith.mulf %52, %120 : vector<16x32xf32>
    %cst_46 = arith.constant dense<0.000000e+00> : vector<16x32xf32>
    %122 = tpu.matmul %119, %121, %cst_46 {dimension_numbers = #tpu.dot_dimension_numbers<[1], [0], [0], [1], [0, 0, 1, 1], [], []>} : vector<16x16xf32>, vector<16x32xf32>, vector<16x32xf32> -> vector<16x32xf32>
    %123 = arith.addf %105, %122 : vector<16x32xf32>
    %cst_47 = arith.constant dense<0.000000e+00> : vector<16x32xf32>
    %124 = tpu.matmul %123, %7, %cst_47 {dimension_numbers = #tpu.dot_dimension_numbers<[1], [0], [0], [1], [0, 0, 1, 1], [], []>} : vector<16x32xf32>, vector<32x32xf32>, vector<16x32xf32> -> vector<16x32xf32>
    %125 = arith.addf %24, %124 : vector<16x32xf32>
    %126 = vector.broadcast %13 : vector<1x32xf32> to vector<16x32xf32>
    %127 = arith.addf %125, %126 : vector<16x32xf32>
    %cst_48 = arith.constant dense<0.000000e+00> : vector<16xf32>
    %128 = vector.multi_reduction <add>, %127, %cst_48 [1] : vector<16x32xf32> to vector<16xf32>
    %129 = vector.shape_cast %128 : vector<16xf32> to vector<16x1xf32>
    %cst_49 = arith.constant 3.200000e+01 : f32
    %130 = vector.broadcast %cst_49 : f32 to vector<16x1xf32>
    %131 = arith.divf %129, %130 : vector<16x1xf32>
    %132 = vector.broadcast %131 : vector<16x1xf32> to vector<16x32xf32>
    %133 = arith.subf %127, %132 : vector<16x32xf32>
    %134 = arith.mulf %133, %133 : vector<16x32xf32>
    %cst_50 = arith.constant dense<0.000000e+00> : vector<16xf32>
    %135 = vector.multi_reduction <add>, %134, %cst_50 [1] : vector<16x32xf32> to vector<16xf32>
    %136 = vector.shape_cast %135 : vector<16xf32> to vector<16x1xf32>
    %cst_51 = arith.constant 3.200000e+01 : f32
    %137 = vector.broadcast %cst_51 : f32 to vector<16x1xf32>
    %138 = arith.divf %136, %137 : vector<16x1xf32>
    %139 = vector.broadcast %131 : vector<16x1xf32> to vector<16x32xf32>
    %140 = arith.subf %127, %139 : vector<16x32xf32>
    %cst_52 = arith.constant 9.99999974E-6 : f32
    %141 = vector.broadcast %cst_52 : f32 to vector<16x1xf32>
    %142 = arith.addf %138, %141 : vector<16x1xf32>
    %143 = math.rsqrt %142 : vector<16x1xf32>
    %144 = vector.broadcast %143 : vector<16x1xf32> to vector<16x32xf32>
    %145 = arith.mulf %140, %144 : vector<16x32xf32>
    %146 = vector.broadcast %14 : vector<1x32xf32> to vector<16x32xf32>
    %147 = arith.mulf %145, %146 : vector<16x32xf32>
    %148 = vector.broadcast %15 : vector<1x32xf32> to vector<16x32xf32>
    %149 = arith.addf %147, %148 : vector<16x32xf32>
    %cst_53 = arith.constant dense<0.000000e+00> : vector<16x32xf32>
    %150 = tpu.matmul %149, %8, %cst_53 {dimension_numbers = #tpu.dot_dimension_numbers<[1], [0], [0], [1], [0, 0, 1, 1], [], []>} : vector<16x32xf32>, vector<32x32xf32>, vector<16x32xf32> -> vector<16x32xf32>
    %151 = vector.broadcast %16 : vector<1x32xf32> to vector<16x32xf32>
    %152 = arith.addf %150, %151 : vector<16x32xf32>
    %cst_54 = arith.constant 5.000000e-01 : f32
    %153 = vector.broadcast %cst_54 : f32 to vector<16x32xf32>
    %154 = arith.mulf %153, %152 : vector<16x32xf32>
    %cst_55 = arith.constant 4.471500e-02 : f32
    %155 = vector.broadcast %cst_55 : f32 to vector<16x32xf32>
    %156 = arith.mulf %155, %152 : vector<16x32xf32>
    %157 = arith.mulf %156, %152 : vector<16x32xf32>
    %158 = arith.mulf %157, %152 : vector<16x32xf32>
    %159 = arith.addf %152, %158 : vector<16x32xf32>
    %cst_56 = arith.constant 0.797884583 : f32
    %160 = vector.broadcast %cst_56 : f32 to vector<16x32xf32>
    %161 = arith.mulf %160, %159 : vector<16x32xf32>
    %162 = math.tanh %161 : vector<16x32xf32>
    %cst_57 = arith.constant 1.000000e+00 : f32
    %163 = vector.broadcast %cst_57 : f32 to vector<16x32xf32>
    %164 = arith.addf %163, %162 : vector<16x32xf32>
    %165 = arith.mulf %154, %164 : vector<16x32xf32>
    %cst_58 = arith.constant dense<0.000000e+00> : vector<16x32xf32>
    %166 = tpu.matmul %165, %9, %cst_58 {dimension_numbers = #tpu.dot_dimension_numbers<[1], [0], [0], [1], [0, 0, 1, 1], [], []>} : vector<16x32xf32>, vector<32x32xf32>, vector<16x32xf32> -> vector<16x32xf32>
    %167 = arith.addf %127, %166 : vector<16x32xf32>
    %168 = vector.broadcast %17 : vector<1x32xf32> to vector<16x32xf32>
    %169 = arith.addf %167, %168 : vector<16x32xf32>
    %cst_59 = arith.constant dense<0.000000e+00> : vector<16xf32>
    %170 = vector.multi_reduction <add>, %169, %cst_59 [1] : vector<16x32xf32> to vector<16xf32>
    %171 = vector.shape_cast %170 : vector<16xf32> to vector<16x1xf32>
    %cst_60 = arith.constant 3.200000e+01 : f32
    %172 = vector.broadcast %cst_60 : f32 to vector<16x1xf32>
    %173 = arith.divf %171, %172 : vector<16x1xf32>
    %174 = vector.broadcast %173 : vector<16x1xf32> to vector<16x32xf32>
    %175 = arith.subf %169, %174 : vector<16x32xf32>
    %176 = arith.mulf %175, %175 : vector<16x32xf32>
    %cst_61 = arith.constant dense<0.000000e+00> : vector<16xf32>
    %177 = vector.multi_reduction <add>, %176, %cst_61 [1] : vector<16x32xf32> to vector<16xf32>
    %178 = vector.shape_cast %177 : vector<16xf32> to vector<16x1xf32>
    %cst_62 = arith.constant 3.200000e+01 : f32
    %179 = vector.broadcast %cst_62 : f32 to vector<16x1xf32>
    %180 = arith.divf %178, %179 : vector<16x1xf32>
    %181 = vector.broadcast %173 : vector<16x1xf32> to vector<16x32xf32>
    %182 = arith.subf %169, %181 : vector<16x32xf32>
    %cst_63 = arith.constant 9.99999974E-6 : f32
    %183 = vector.broadcast %cst_63 : f32 to vector<16x1xf32>
    %184 = arith.addf %180, %183 : vector<16x1xf32>
    %185 = math.rsqrt %184 : vector<16x1xf32>
    %186 = vector.broadcast %185 : vector<16x1xf32> to vector<16x32xf32>
    %187 = arith.mulf %182, %186 : vector<16x32xf32>
    %188 = vector.broadcast %10 : vector<1x32xf32> to vector<16x32xf32>
    %189 = arith.mulf %187, %188 : vector<16x32xf32>
    %190 = vector.broadcast %11 : vector<1x32xf32> to vector<16x32xf32>
    %191 = arith.addf %189, %190 : vector<16x32xf32>
    %cst_64 = arith.constant dense<0.000000e+00> : vector<16x96xf32>
    %192 = tpu.matmul %191, %6, %cst_64 {dimension_numbers = #tpu.dot_dimension_numbers<[1], [0], [0], [1], [0, 0, 1, 1], [], []>} : vector<16x32xf32>, vector<32x96xf32>, vector<16x96xf32> -> vector<16x96xf32>
    %193 = vector.broadcast %12 : vector<1x96xf32> to vector<16x96xf32>
    %194 = arith.addf %192, %193 : vector<16x96xf32>
    %195 = vector.extract_strided_slice %194 {offsets = [0, 0], sizes = [16, 32], strides = [1, 1]} : vector<16x96xf32> to vector<16x32xf32>
    %196 = vector.extract_strided_slice %194 {offsets = [0, 32], sizes = [16, 32], strides = [1, 1]} : vector<16x96xf32> to vector<16x32xf32>
    %197 = vector.extract_strided_slice %194 {offsets = [0, 64], sizes = [16, 32], strides = [1, 1]} : vector<16x96xf32> to vector<16x32xf32>
    %198 = vector.broadcast %2 : vector<1x32xf32> to vector<16x32xf32>
    %199 = arith.mulf %195, %198 : vector<16x32xf32>
    %cst_65 = arith.constant dense<0.000000e+00> : vector<16x16xf32>
    %200 = tpu.matmul %199, %196, %cst_65 {dimension_numbers = #tpu.dot_dimension_numbers<[1], [1], [0], [0], [0, 0, 1, 0], [], []>} : vector<16x32xf32>, vector<16x32xf32>, vector<16x16xf32> -> vector<16x16xf32>
    %201 = arith.addf %200, %0 : vector<16x16xf32>
    %cst_66 = arith.constant dense<0xFF800000> : vector<16xf32>
    %202 = vector.multi_reduction <maximumf>, %201, %cst_66 [1] : vector<16x16xf32> to vector<16xf32>
    %203 = vector.shape_cast %202 : vector<16xf32> to vector<16x1xf32>
    %204 = vector.broadcast %203 : vector<16x1xf32> to vector<16x16xf32>
    %205 = arith.subf %201, %204 : vector<16x16xf32>
    %206 = math.exp %205 : vector<16x16xf32>
    %cst_67 = arith.constant dense<0.000000e+00> : vector<16xf32>
    %207 = vector.multi_reduction <add>, %206, %cst_67 [1] : vector<16x16xf32> to vector<16xf32>
    %208 = vector.shape_cast %207 : vector<16xf32> to vector<16x1xf32>
    %209 = tpu.reciprocal %208 {approx = true} : vector<16x1xf32> -> vector<16x1xf32>
    %210 = vector.broadcast %209 : vector<16x1xf32> to vector<16x16xf32>
    %211 = arith.mulf %206, %210 : vector<16x16xf32>
    %212 = vector.broadcast %2 : vector<1x32xf32> to vector<16x32xf32>
    %213 = arith.mulf %197, %212 : vector<16x32xf32>
    %cst_68 = arith.constant dense<0.000000e+00> : vector<16x32xf32>
    %214 = tpu.matmul %211, %213, %cst_68 {dimension_numbers = #tpu.dot_dimension_numbers<[1], [0], [0], [1], [0, 0, 1, 1], [], []>} : vector<16x16xf32>, vector<16x32xf32>, vector<16x32xf32> -> vector<16x32xf32>
    %215 = vector.broadcast %3 : vector<1x32xf32> to vector<16x32xf32>
    %216 = arith.mulf %195, %215 : vector<16x32xf32>
    %cst_69 = arith.constant dense<0.000000e+00> : vector<16x16xf32>
    %217 = tpu.matmul %216, %196, %cst_69 {dimension_numbers = #tpu.dot_dimension_numbers<[1], [1], [0], [0], [0, 0, 1, 0], [], []>} : vector<16x32xf32>, vector<16x32xf32>, vector<16x16xf32> -> vector<16x16xf32>
    %218 = arith.addf %217, %0 : vector<16x16xf32>
    %cst_70 = arith.constant dense<0xFF800000> : vector<16xf32>
    %219 = vector.multi_reduction <maximumf>, %218, %cst_70 [1] : vector<16x16xf32> to vector<16xf32>
    %220 = vector.shape_cast %219 : vector<16xf32> to vector<16x1xf32>
    %221 = vector.broadcast %220 : vector<16x1xf32> to vector<16x16xf32>
    %222 = arith.subf %218, %221 : vector<16x16xf32>
    %223 = math.exp %222 : vector<16x16xf32>
    %cst_71 = arith.constant dense<0.000000e+00> : vector<16xf32>
    %224 = vector.multi_reduction <add>, %223, %cst_71 [1] : vector<16x16xf32> to vector<16xf32>
    %225 = vector.shape_cast %224 : vector<16xf32> to vector<16x1xf32>
    %226 = tpu.reciprocal %225 {approx = true} : vector<16x1xf32> -> vector<16x1xf32>
    %227 = vector.broadcast %226 : vector<16x1xf32> to vector<16x16xf32>
    %228 = arith.mulf %223, %227 : vector<16x16xf32>
    %229 = vector.broadcast %3 : vector<1x32xf32> to vector<16x32xf32>
    %230 = arith.mulf %197, %229 : vector<16x32xf32>
    %cst_72 = arith.constant dense<0.000000e+00> : vector<16x32xf32>
    %231 = tpu.matmul %228, %230, %cst_72 {dimension_numbers = #tpu.dot_dimension_numbers<[1], [0], [0], [1], [0, 0, 1, 1], [], []>} : vector<16x16xf32>, vector<16x32xf32>, vector<16x32xf32> -> vector<16x32xf32>
    %232 = arith.addf %214, %231 : vector<16x32xf32>
    %233 = vector.broadcast %4 : vector<1x32xf32> to vector<16x32xf32>
    %234 = arith.mulf %195, %233 : vector<16x32xf32>
    %cst_73 = arith.constant dense<0.000000e+00> : vector<16x16xf32>
    %235 = tpu.matmul %234, %196, %cst_73 {dimension_numbers = #tpu.dot_dimension_numbers<[1], [1], [0], [0], [0, 0, 1, 0], [], []>} : vector<16x32xf32>, vector<16x32xf32>, vector<16x16xf32> -> vector<16x16xf32>
    %236 = arith.addf %235, %0 : vector<16x16xf32>
    %cst_74 = arith.constant dense<0xFF800000> : vector<16xf32>
    %237 = vector.multi_reduction <maximumf>, %236, %cst_74 [1] : vector<16x16xf32> to vector<16xf32>
    %238 = vector.shape_cast %237 : vector<16xf32> to vector<16x1xf32>
    %239 = vector.broadcast %238 : vector<16x1xf32> to vector<16x16xf32>
    %240 = arith.subf %236, %239 : vector<16x16xf32>
    %241 = math.exp %240 : vector<16x16xf32>
    %cst_75 = arith.constant dense<0.000000e+00> : vector<16xf32>
    %242 = vector.multi_reduction <add>, %241, %cst_75 [1] : vector<16x16xf32> to vector<16xf32>
    %243 = vector.shape_cast %242 : vector<16xf32> to vector<16x1xf32>
    %244 = tpu.reciprocal %243 {approx = true} : vector<16x1xf32> -> vector<16x1xf32>
    %245 = vector.broadcast %244 : vector<16x1xf32> to vector<16x16xf32>
    %246 = arith.mulf %241, %245 : vector<16x16xf32>
    %247 = vector.broadcast %4 : vector<1x32xf32> to vector<16x32xf32>
    %248 = arith.mulf %197, %247 : vector<16x32xf32>
    %cst_76 = arith.constant dense<0.000000e+00> : vector<16x32xf32>
    %249 = tpu.matmul %246, %248, %cst_76 {dimension_numbers = #tpu.dot_dimension_numbers<[1], [0], [0], [1], [0, 0, 1, 1], [], []>} : vector<16x16xf32>, vector<16x32xf32>, vector<16x32xf32> -> vector<16x32xf32>
    %250 = arith.addf %232, %249 : vector<16x32xf32>
    %251 = vector.broadcast %5 : vector<1x32xf32> to vector<16x32xf32>
    %252 = arith.mulf %195, %251 : vector<16x32xf32>
    %cst_77 = arith.constant dense<0.000000e+00> : vector<16x16xf32>
    %253 = tpu.matmul %252, %196, %cst_77 {dimension_numbers = #tpu.dot_dimension_numbers<[1], [1], [0], [0], [0, 0, 1, 0], [], []>} : vector<16x32xf32>, vector<16x32xf32>, vector<16x16xf32> -> vector<16x16xf32>
    %254 = arith.addf %253, %0 : vector<16x16xf32>
    %cst_78 = arith.constant dense<0xFF800000> : vector<16xf32>
    %255 = vector.multi_reduction <maximumf>, %254, %cst_78 [1] : vector<16x16xf32> to vector<16xf32>
    %256 = vector.shape_cast %255 : vector<16xf32> to vector<16x1xf32>
    %257 = vector.broadcast %256 : vector<16x1xf32> to vector<16x16xf32>
    %258 = arith.subf %254, %257 : vector<16x16xf32>
    %259 = math.exp %258 : vector<16x16xf32>
    %cst_79 = arith.constant dense<0.000000e+00> : vector<16xf32>
    %260 = vector.multi_reduction <add>, %259, %cst_79 [1] : vector<16x16xf32> to vector<16xf32>
    %261 = vector.shape_cast %260 : vector<16xf32> to vector<16x1xf32>
    %262 = tpu.reciprocal %261 {approx = true} : vector<16x1xf32> -> vector<16x1xf32>
    %263 = vector.broadcast %262 : vector<16x1xf32> to vector<16x16xf32>
    %264 = arith.mulf %259, %263 : vector<16x16xf32>
    %265 = vector.broadcast %5 : vector<1x32xf32> to vector<16x32xf32>
    %266 = arith.mulf %197, %265 : vector<16x32xf32>
    %cst_80 = arith.constant dense<0.000000e+00> : vector<16x32xf32>
    %267 = tpu.matmul %264, %266, %cst_80 {dimension_numbers = #tpu.dot_dimension_numbers<[1], [0], [0], [1], [0, 0, 1, 1], [], []>} : vector<16x16xf32>, vector<16x32xf32>, vector<16x32xf32> -> vector<16x32xf32>
    %268 = arith.addf %250, %267 : vector<16x32xf32>
    %cst_81 = arith.constant dense<0.000000e+00> : vector<16x32xf32>
    %269 = tpu.matmul %268, %7, %cst_81 {dimension_numbers = #tpu.dot_dimension_numbers<[1], [0], [0], [1], [0, 0, 1, 1], [], []>} : vector<16x32xf32>, vector<32x32xf32>, vector<16x32xf32> -> vector<16x32xf32>
    %270 = arith.addf %169, %269 : vector<16x32xf32>
    %271 = vector.broadcast %13 : vector<1x32xf32> to vector<16x32xf32>
    %272 = arith.addf %270, %271 : vector<16x32xf32>
    %cst_82 = arith.constant dense<0.000000e+00> : vector<16xf32>
    %273 = vector.multi_reduction <add>, %272, %cst_82 [1] : vector<16x32xf32> to vector<16xf32>
    %274 = vector.shape_cast %273 : vector<16xf32> to vector<16x1xf32>
    %cst_83 = arith.constant 3.200000e+01 : f32
    %275 = vector.broadcast %cst_83 : f32 to vector<16x1xf32>
    %276 = arith.divf %274, %275 : vector<16x1xf32>
    %277 = vector.broadcast %276 : vector<16x1xf32> to vector<16x32xf32>
    %278 = arith.subf %272, %277 : vector<16x32xf32>
    %279 = arith.mulf %278, %278 : vector<16x32xf32>
    %cst_84 = arith.constant dense<0.000000e+00> : vector<16xf32>
    %280 = vector.multi_reduction <add>, %279, %cst_84 [1] : vector<16x32xf32> to vector<16xf32>
    %281 = vector.shape_cast %280 : vector<16xf32> to vector<16x1xf32>
    %cst_85 = arith.constant 3.200000e+01 : f32
    %282 = vector.broadcast %cst_85 : f32 to vector<16x1xf32>
    %283 = arith.divf %281, %282 : vector<16x1xf32>
    %284 = vector.broadcast %276 : vector<16x1xf32> to vector<16x32xf32>
    %285 = arith.subf %272, %284 : vector<16x32xf32>
    %cst_86 = arith.constant 9.99999974E-6 : f32
    %286 = vector.broadcast %cst_86 : f32 to vector<16x1xf32>
    %287 = arith.addf %283, %286 : vector<16x1xf32>
    %288 = math.rsqrt %287 : vector<16x1xf32>
    %289 = vector.broadcast %288 : vector<16x1xf32> to vector<16x32xf32>
    %290 = arith.mulf %285, %289 : vector<16x32xf32>
    %291 = vector.broadcast %14 : vector<1x32xf32> to vector<16x32xf32>
    %292 = arith.mulf %290, %291 : vector<16x32xf32>
    %293 = vector.broadcast %15 : vector<1x32xf32> to vector<16x32xf32>
    %294 = arith.addf %292, %293 : vector<16x32xf32>
    %cst_87 = arith.constant dense<0.000000e+00> : vector<16x32xf32>
    %295 = tpu.matmul %294, %8, %cst_87 {dimension_numbers = #tpu.dot_dimension_numbers<[1], [0], [0], [1], [0, 0, 1, 1], [], []>} : vector<16x32xf32>, vector<32x32xf32>, vector<16x32xf32> -> vector<16x32xf32>
    %296 = vector.broadcast %16 : vector<1x32xf32> to vector<16x32xf32>
    %297 = arith.addf %295, %296 : vector<16x32xf32>
    %cst_88 = arith.constant 5.000000e-01 : f32
    %298 = vector.broadcast %cst_88 : f32 to vector<16x32xf32>
    %299 = arith.mulf %298, %297 : vector<16x32xf32>
    %cst_89 = arith.constant 4.471500e-02 : f32
    %300 = vector.broadcast %cst_89 : f32 to vector<16x32xf32>
    %301 = arith.mulf %300, %297 : vector<16x32xf32>
    %302 = arith.mulf %301, %297 : vector<16x32xf32>
    %303 = arith.mulf %302, %297 : vector<16x32xf32>
    %304 = arith.addf %297, %303 : vector<16x32xf32>
    %cst_90 = arith.constant 0.797884583 : f32
    %305 = vector.broadcast %cst_90 : f32 to vector<16x32xf32>
    %306 = arith.mulf %305, %304 : vector<16x32xf32>
    %307 = math.tanh %306 : vector<16x32xf32>
    %cst_91 = arith.constant 1.000000e+00 : f32
    %308 = vector.broadcast %cst_91 : f32 to vector<16x32xf32>
    %309 = arith.addf %308, %307 : vector<16x32xf32>
    %310 = arith.mulf %299, %309 : vector<16x32xf32>
    %cst_92 = arith.constant dense<0.000000e+00> : vector<16x32xf32>
    %311 = tpu.matmul %310, %9, %cst_92 {dimension_numbers = #tpu.dot_dimension_numbers<[1], [0], [0], [1], [0, 0, 1, 1], [], []>} : vector<16x32xf32>, vector<32x32xf32>, vector<16x32xf32> -> vector<16x32xf32>
    %312 = arith.addf %272, %311 : vector<16x32xf32>
    %313 = vector.broadcast %17 : vector<1x32xf32> to vector<16x32xf32>
    %314 = arith.addf %312, %313 : vector<16x32xf32>
    %cst_93 = arith.constant dense<0.000000e+00> : vector<16xf32>
    %315 = vector.multi_reduction <add>, %314, %cst_93 [1] : vector<16x32xf32> to vector<16xf32>
    %316 = vector.shape_cast %315 : vector<16xf32> to vector<16x1xf32>
    %cst_94 = arith.constant 3.200000e+01 : f32
    %317 = vector.broadcast %cst_94 : f32 to vector<16x1xf32>
    %318 = arith.divf %316, %317 : vector<16x1xf32>
    %319 = vector.broadcast %318 : vector<16x1xf32> to vector<16x32xf32>
    %320 = arith.subf %314, %319 : vector<16x32xf32>
    %321 = arith.mulf %320, %320 : vector<16x32xf32>
    %cst_95 = arith.constant dense<0.000000e+00> : vector<16xf32>
    %322 = vector.multi_reduction <add>, %321, %cst_95 [1] : vector<16x32xf32> to vector<16xf32>
    %323 = vector.shape_cast %322 : vector<16xf32> to vector<16x1xf32>
    %cst_96 = arith.constant 3.200000e+01 : f32
    %324 = vector.broadcast %cst_96 : f32 to vector<16x1xf32>
    %325 = arith.divf %323, %324 : vector<16x1xf32>
    %326 = vector.broadcast %318 : vector<16x1xf32> to vector<16x32xf32>
    %327 = arith.subf %314, %326 : vector<16x32xf32>
    %cst_97 = arith.constant 9.99999974E-6 : f32
    %328 = vector.broadcast %cst_97 : f32 to vector<16x1xf32>
    %329 = arith.addf %325, %328 : vector<16x1xf32>
    %330 = math.rsqrt %329 : vector<16x1xf32>
    %331 = vector.broadcast %330 : vector<16x1xf32> to vector<16x32xf32>
    %332 = arith.mulf %327, %331 : vector<16x32xf32>
    %333 = vector.broadcast %18 : vector<1x32xf32> to vector<16x32xf32>
    %334 = arith.mulf %332, %333 : vector<16x32xf32>
    %335 = vector.broadcast %19 : vector<1x32xf32> to vector<16x32xf32>
    %336 = arith.addf %334, %335 : vector<16x32xf32>
    %337 = vector.broadcast %1 : vector<16x1xf32> to vector<16x32xf32>
    %338 = arith.mulf %336, %337 : vector<16x32xf32>
    %c0_98 = arith.constant 0 : index
    %c0_99 = arith.constant 0 : index
    %339 = vector.load %arg4[%c0_98, %c0_99] : memref<16x32xf32, #tpu.memory_space<vmem>>, vector<16x32xf32>
    tpu.vector_store %arg4[%c0_98, %c0_99], %338 {strides = array<i32>} : memref<16x32xf32, #tpu.memory_space<vmem>>, vector<16x32xf32>,
    return
  }
  func.func @transform_0(%arg0: i32) -> (i32, i32) {
    %c0_i32 = arith.constant 0 : i32
    %c0_i32_0 = arith.constant 0 : i32
    %c0_i32_1 = arith.constant 0 : i32
    return %c0_i32, %c0_i32_0 : i32, i32
  }
  func.func @transform_1(%arg0: i32) -> (i32, i32) {
    %c0_i32 = arith.constant 0 : i32
    %c0_i32_0 = arith.constant 0 : i32
    %c0_i32_1 = arith.constant 0 : i32
    return %c0_i32, %c0_i32_0 : i32, i32
  }
  func.func @transform_2(%arg0: i32) -> (i32, i32) {
    %c0_i32 = arith.constant 0 : i32
    %c0_i32_0 = arith.constant 0 : i32
    %c0_i32_1 = arith.constant 0 : i32
    return %c0_i32, %c0_i32_0 : i32, i32
  }
  func.func @transform_3(%arg0: i32) -> (i32, i32) {
    %c0_i32 = arith.constant 0 : i32
    %c0_i32_0 = arith.constant 0 : i32
    %c0_i32_1 = arith.constant 0 : i32
    return %c0_i32, %c0_i32_0 : i32, i32
  }
}

</mosaic_0001>

<llo_original>
// kernel: eq.15
$region0: #{eq.15}
  %s0 = inlined_call_operand.vmem [shape: s32[2,8], index: 0, kind: input, shape index: {}]
  %s1 = inlined_call_operand.vmem [shape: s32[16], index: 1, kind: output, shape index: {}]
  $region1: #{eq.15} parent=0
    #allocation0 [shape = 'u8[4096]{0}', space=vmem, size = 0x1000, scoped, tag = 'scoped mem for output reshape']
    #allocation1 [shape = 'u8[4096]{0}', space=vmem, size = 0x1000, scoped, tag = 'scoped mem for input reshape']
    %s3 = sshll.u32 1, 2
    %s4 = ssub.s32 %s3, 1
    %v5 = vld [vmem:[%s0] sm:%s4]
    %6 = vst [vmem:[#allocation1] sm:%s4] %v5
    %v7 = vld [vmem:[#allocation1] sm:$0x1]
    %vm8 = vcmask 64512
    %9 = vst.msk [vmem:[#allocation0] sm:$0x1] %vm8, %v7
    %s10 = scalar_lea.vmem [#allocation1], 1
    %v11 = vld [vmem:[%s10] sm:$0x1]
    %12 = vrot.lane.b32.xlu0 %v11, 8
    %v13 = vpop.permute.xlu0 %12
    %vm14 = vcmask 130112
    %15 = vst.msk [vmem:[#allocation0] sm:$0x1] %vm14, %v13
    %s17 = sshll.u32 1, 1
    %s18 = ssub.s32 %s17, 1
    %v20 = vld [vmem:[#allocation0] sm:%s18]
    %s21 = sshll.u32 1, 1
    %s22 = ssub.s32 %s21, 1
    %23 = vst [vmem:[%s1] sm:%s22] %v20

// kernel: model_forward.1
$region0: #{model_forward.1}
  #allocation0 [shape = 'u32[]', space=smem, size = 0x4, offset = 0x4, fixed_abs, tag = 'smem constant byte address 0x4 - core index']
  #allocation1 [shape = 'u32[144,128]{1,0:T(1,128)}', space=vmem, size = 0x12000, scoped, tag = 'internal scratch']
  %s0 = inlined_call_operand.vmem [shape: f32[16,16], index: 0, kind: input, shape index: {}]
  %s1 = inlined_call_operand.vmem [shape: f32[200,128], index: 1, kind: input, shape index: {}]
  %s2 = inlined_call_operand.vmem [shape: f32[16,128], index: 2, kind: input, shape index: {}]
  %s3 = inlined_call_operand.hbm [shape: f32[16,32], index: 3, kind: output, shape index: {}]
  %s4 = sld [smem:[#allocation0]]
  $region22: #{model_forward.1} parent=0
    _
  %s6 = ssub.s32 1, %s4
  %s7 = scalar_select 0, %s6, %s4
  $region1: #{model_forward.1} parent=0
    #allocation2 [shape = 'u8[8192]{0}', space=vmem, size = 0x2000, scoped, tag = 'output window, operand 0, single buffered']
    #allocation3 [shape = 's32[1]{0}', space=sflag, size = 0x4, scoped, tag = 'scoped memory for model_forward.1']
    %8 = vsyncpa [#allocation3], 0
    // Predicated region
    $region2: #{model_forward.1} parent=1 // pred_check
      _
    $region3: #{model_forward.1} parent=1 // pred_check_branch
      %10 = sbr.rel (0) target = $region5
    $region4: #{model_forward.1} parent=1 // pred_region
      _
    $region5: #{model_forward.1} parent=1 // pred_fallthru
      _
    // Predicated region
    $region6: #{model_forward.1} parent=1 // pred_check
      _
    $region7: #{model_forward.1} parent=1 // pred_check_branch
      %12 = sbr.rel (0) target = $region9
    $region8: #{model_forward.1} parent=1 // pred_region
      _
    $region9: #{model_forward.1} parent=1 // pred_fallthru
      _
    // Predicated region
    $region10: #{model_forward.1} parent=1 // pred_check
      _
    $region11: #{model_forward.1} parent=1 // pred_check_branch
      %14 = sbr.rel (0) target = $region13
    $region12: #{model_forward.1} parent=1 // pred_region
      _
    $region13: #{model_forward.1} parent=1 // pred_fallthru
      _
    %v15 = vld [vmem:[%s1 + $0x20] sm:$0xff]
    %v16 = vld [vmem:[%s1 + $0x28] sm:$0xff]
    %v17 = vld [vmem:[%s1 + $0x38] sm:$0xff]
    %v18 = vld [vmem:[%s1 + $0x40] sm:$0xff]
    %v19 = vld [vmem:[%s1 + $0x30] sm:$0x1]
    %v20 = vld [vmem:[%s1 + $0x31] sm:$0x1]
    %v21 = vld [vmem:[%s1 + $0x32] sm:$0x1]
    %v22 = vld [vmem:[%s1 + $0x33] sm:$0x1]
    %v23 = vld [vmem:[%s1 + $0x48] sm:$0xff]
    %v24 = vld [vmem:[%s1 + $0x50] sm:$0xff]
    %v25 = vld [vmem:[%s1 + $0x58] sm:$0xff]
    %v26 = vld [vmem:[%s1 + $0x60] sm:$0xff]
    %v27 = vld [vmem:[%s1 + $0x68] sm:$0xff]
    %v28 = vld [vmem:[%s1 + $0x70] sm:$0xff]
    %v29 = vld [vmem:[%s1 + $0x78] sm:$0xff]
    %v30 = vld [vmem:[%s1 + $0x80] sm:$0xff]
    %v31 = vld [vmem:[%s1 + $0x88] sm:$0xff]
    %v32 = vld [vmem:[%s1 + $0x90] sm:$0xff]
    %v33 = vld [vmem:[%s1 + $0x98] sm:$0xff]
    %v34 = vld [vmem:[%s1 + $0xa0] sm:$0xff]
    %v35 = vld [vmem:[%s1 + $0xa8] sm:$0xff]
    %v36 = vld [vmem:[%s1 + $0xb0] sm:$0xff]
    %v37 = vld [vmem:[%s1 + $0xb8] sm:$0xff]
    %v38 = vld [vmem:[%s1 + $0xc0] sm:$0xff]
    %v39 = vld [vmem:[%s2] sm:$0x1]
    %v40 = vld [vmem:[%s2 + $0x1] sm:$0x1]
    %v41 = vld [vmem:[%s2 + $0x2] sm:$0x1]
    %v42 = vld [vmem:[%s2 + $0x3] sm:$0x1]
    %v43 = vld [vmem:[%s2 + $0x4] sm:$0x1]
    %v44 = vld [vmem:[%s2 + $0x5] sm:$0x1]
    %v45 = vld [vmem:[%s2 + $0x6] sm:$0x1]
    %v46 = vld [vmem:[%s2 + $0x7] sm:$0x1]
    %v47 = vld [vmem:[%s2 + $0x8] sm:$0x1]
    %v48 = vld [vmem:[%s2 + $0x9] sm:$0x1]
    %v49 = vld [vmem:[%s0] sm:$0xff]
    %v50 = vld [vmem:[%s0 + $0x8] sm:$0xff]
    %v51 = vld [vmem:[%s1] sm:$0xff]
    %v52 = vld [vmem:[%s1 + $0x8] sm:$0xff]
    %v53 = vld [vmem:[%s1 + $0x10] sm:$0xff]
    %v54 = vld [vmem:[%s1 + $0x18] sm:$0xff]
    %vm55 = vcmask 130048
    %v57 = vsel %vm55, %v49, 0
    %v60 = vsel %vm55, %v50, 0
    %62 = vmatprep.subr.mxu0 0.0
    %63 = vmatpush1.msra.mxu0 0.0
    %64 = vmatprep.subr.mxu0 0.0
    %65 = vmatpush1.msra.mxu0 0.0
    %66 = vmatprep.subr.mxu0 0.0
    %67 = vmatpush1.msra.mxu0 0.0
    %68 = vmatprep.subr.mxu0 0.0
    %69 = vmatpush1.msra.mxu0 0.0
    %70 = vmatprep.subr.mxu0 0.0
    %71 = vmatpush1.msra.mxu0 0.0
    %72 = vmatprep.subr.mxu0 0.0
    %73 = vmatpush1.msra.mxu0 0.0
    %74 = vmatprep.subr.mxu0 0.0
    %75 = vmatpush1.msra.mxu0 0.0
    %76 = vmatprep.subr.mxu0 0.0
    %77 = vmatpush1.msra.mxu0 0.0
    %78 = vmatprep.subr.mxu0 0.0
    %79 = vmatpush1.msra.mxu0 0.0
    %80 = vmatprep.subr.mxu0 0.0
    %81 = vmatpush1.msra.mxu0 0.0
    %82 = vmatprep.subr.mxu0 0.0
    %83 = vmatpush1.msra.mxu0 0.0
    %84 = vmatprep.subr.mxu0 0.0
    %85 = vmatpush1.msra.mxu0 0.0
    %86 = vmatprep.subr.mxu0 0.0
    %87 = vmatpush1.msra.mxu0 0.0
    %88 = vmatprep.subr.mxu0 0.0
    %89 = vmatpush1.msra.mxu0 0.0
    %90 = vmatprep.subr.mxu0 0.0
    %91 = vmatpush1.msra.mxu0 %v52
    %92 = vmatprep.subr.mxu0 0.0
    %93 = vmatpush1.msra.mxu0 %v51
    %94 = vmatprep.subr.mxu0 0.0
    %95 = vmatpush2.msra.mxu0 0.0
    %96 = vmatprep.subr.mxu0 0.0
    %97 = vmatpush2.msra.mxu0 0.0
    %98 = vmatprep.subr.mxu0 0.0
    %99 = vmatpush2.msra.mxu0 0.0
    %100 = vmatprep.subr.mxu0 0.0
    %101 = vmatpush2.msra.mxu0 0.0
    %102 = vmatprep.subr.mxu0 0.0
    %103 = vmatpush2.msra.mxu0 0.0
    %104 = vmatprep.subr.mxu0 0.0
    %105 = vmatpush2.msra.mxu0 0.0
    %106 = vmatprep.subr.mxu0 0.0
    %107 = vmatpush2.msra.mxu0 0.0
    %108 = vmatprep.subr.mxu0 0.0
    %109 = vmatpush2.msra.mxu0 0.0
    %110 = vmatprep.subr.mxu0 0.0
    %111 = vmatpush2.msra.mxu0 0.0
    %112 = vmatprep.subr.mxu0 0.0
    %113 = vmatpush2.msra.mxu0 0.0
    %114 = vmatprep.subr.mxu0 0.0
    %115 = vmatpush2.msra.mxu0 0.0
    %116 = vmatprep.subr.mxu0 0.0
    %117 = vmatpush2.msra.mxu0 0.0
    %118 = vmatprep.subr.mxu0 0.0
    %119 = vmatpush2.msra.mxu0 0.0
    %120 = vmatprep.subr.mxu0 0.0
    %121 = vmatpush2.msra.mxu0 0.0
    %122 = vmatprep.subr.mxu0 0.0
    %123 = vmatpush2.msra.mxu0 0.0
    %124 = vmatprep.subr.mxu0 0.0
    %125 = vmatpush2.msra.mxu0 0.0
    %126 = vmatprep.mubr.f32.mxu0 0.0
    %127 = vmatmul.mubr.f32.gmra.mxu0 %v57
    %v128 = vpop.f32.mrf.mxu0
    %v129 = vadd.f32 %v53, %v128
    %v130 = vpop.f32.mrf.mxu0
    %131 = vmatprep.mubr.f32.mxu0 0.0
    %132 = vmatmul.mubr.f32.gmra.mxu0 %v60
    %v133 = vpop.f32.mrf.mxu0
    %v134 = vadd.f32 %v54, %v133
    %v135 = vpop.f32.mrf.mxu0
    %136 = vdwg.mxu0
    %vm137 = vcmask 261120
    %v138 = vsel %vm137, %v129, 0.0
    %139 = vadd.xlane.f32.xlu0 %v138
    %v140 = vpop.xlane.xlu0 %139
    %v141 = vsel %vm137, %v134, 0.0
    %142 = vadd.xlane.f32.xlu0 %v141
    %v143 = vpop.xlane.xlu0 %142
    %v144 = vrcp.pop 32.0
    %v145 = vmul.f32 %v140, %v144
    %v146 = vmul.f32 %v143, %v144
    %v147 = vsub.f32 %v129, %v145
    %v148 = vsub.f32 %v134, %v146
    %v149 = vmul.f32 %v147, %v147
    %v150 = vmul.f32 %v148, %v148
    %v151 = vsel %vm137, %v149, 0.0
    %152 = vadd.xlane.f32.xlu0 %v151
    %v153 = vpop.xlane.xlu0 %152
    %v154 = vsel %vm137, %v150, 0.0
    %155 = vadd.xlane.f32.xlu0 %v154
    %v156 = vpop.xlane.xlu0 %155
    %v157 = vmul.f32 %v153, %v144
    %v158 = vmul.f32 %v156, %v144
    %v159 = vadd.f32 %v157, 1e-05
    %v160 = vadd.f32 %v158, 1e-05
    %v161 = vrsqrt.pop %v159
    %v162 = vrsqrt.pop %v160
    %v163 = vmul.f32 %v147, %v161
    %v164 = vmul.f32 %v148, %v162
    %v165 = vlaneseq
    %v166 = vshrl.u32 %v165, 7
    %v167 = vsub.s32 0, %v166
    %v168 = vrot.slane %v39, %v167
    %v169 = vmul.f32 %v163, %v168
    %v170 = vmul.f32 %v164, %v168
    %v171 = vlaneseq
    %v172 = vshrl.u32 %v171, 7
    %v173 = vsub.s32 0, %v172
    %v174 = vrot.slane %v40, %v173
    %v175 = vadd.f32 %v169, %v174
    %v176 = vadd.f32 %v170, %v174
    %v177 = vlaneseq
    %v178 = vshrl.u32 %v177, 7
    %v179 = vsub.s32 0, %v178
    %v180 = vrot.slane %v41, %v179
    %v182 = vsel %vm137, %v175, 0
    %v185 = vsel %vm137, %v176, 0
    %187 = vmatprep.subr.mxu0 0.0
    %188 = vmatpush1.msra.mxu0 0.0
    %189 = vmatprep.subr.mxu0 0.0
    %190 = vmatpush1.msra.mxu0 0.0
    %191 = vmatprep.subr.mxu0 0.0
    %192 = vmatpush1.msra.mxu0 0.0
    %193 = vmatprep.subr.mxu0 0.0
    %194 = vmatpush1.msra.mxu0 0.0
    %195 = vmatprep.subr.mxu0 0.0
    %196 = vmatpush1.msra.mxu0 0.0
    %197 = vmatprep.subr.mxu0 0.0
    %198 = vmatpush1.msra.mxu0 0.0
    %199 = vmatprep.subr.mxu0 0.0
    %200 = vmatpush1.msra.mxu0 0.0
    %201 = vmatprep.subr.mxu0 0.0
    %202 = vmatpush1.msra.mxu0 0.0
    %203 = vmatprep.subr.mxu0 0.0
    %204 = vmatpush1.msra.mxu0 0.0
    %205 = vmatprep.subr.mxu0 0.0
    %206 = vmatpush1.msra.mxu0 0.0
    %207 = vmatprep.subr.mxu0 0.0
    %208 = vmatpush1.msra.mxu0 0.0
    %209 = vmatprep.subr.mxu0 0.0
    %210 = vmatpush1.msra.mxu0 0.0
    %211 = vmatprep.subr.mxu0 0.0
    %212 = vmatpush1.msra.mxu0 %v26
    %213 = vmatprep.subr.mxu0 0.0
    %214 = vmatpush1.msra.mxu0 %v25
    %215 = vmatprep.subr.mxu0 0.0
    %216 = vmatpush1.msra.mxu0 %v24
    %217 = vmatprep.subr.mxu0 0.0
    %218 = vmatpush1.msra.mxu0 %v23
    %219 = vmatprep.subr.mxu0 0.0
    %220 = vmatpush2.msra.mxu0 0.0
    %221 = vmatprep.subr.mxu0 0.0
    %222 = vmatpush2.msra.mxu0 0.0
    %223 = vmatprep.subr.mxu0 0.0
    %224 = vmatpush2.msra.mxu0 0.0
    %225 = vmatprep.subr.mxu0 0.0
    %226 = vmatpush2.msra.mxu0 0.0
    %227 = vmatprep.subr.mxu0 0.0
    %228 = vmatpush2.msra.mxu0 0.0
    %229 = vmatprep.subr.mxu0 0.0
    %230 = vmatpush2.msra.mxu0 0.0
    %231 = vmatprep.subr.mxu0 0.0
    %232 = vmatpush2.msra.mxu0 0.0
    %233 = vmatprep.subr.mxu0 0.0
    %234 = vmatpush2.msra.mxu0 0.0
    %235 = vmatprep.subr.mxu0 0.0
    %236 = vmatpush2.msra.mxu0 0.0
    %237 = vmatprep.subr.mxu0 0.0
    %238 = vmatpush2.msra.mxu0 0.0
    %239 = vmatprep.subr.mxu0 0.0
    %240 = vmatpush2.msra.mxu0 0.0
    %241 = vmatprep.subr.mxu0 0.0
    %242 = vmatpush2.msra.mxu0 0.0
    %243 = vmatprep.subr.mxu0 0.0
    %244 = vmatpush2.msra.mxu0 0.0
    %245 = vmatprep.subr.mxu0 0.0
    %246 = vmatpush2.msra.mxu0 0.0
    %247 = vmatprep.subr.mxu0 0.0
    %248 = vmatpush2.msra.mxu0 0.0
    %249 = vmatprep.subr.mxu0 0.0
    %250 = vmatpush2.msra.mxu0 0.0
    %251 = vmatprep.mubr.f32.mxu0 0.0
    %252 = vmatmul.mubr.f32.gmra.mxu0 %v182
    %v253 = vpop.f32.mrf.mxu0
    %v254 = vadd.f32 %v180, %v253
    %v255 = vpop.f32.mrf.mxu0
    %256 = vmatprep.mubr.f32.mxu0 0.0
    %257 = vmatmul.mubr.f32.gmra.mxu0 %v185
    %v258 = vpop.f32.mrf.mxu0
    %v259 = vadd.f32 %v180, %v258
    %v260 = vpop.f32.mrf.mxu0
    %261 = vdwg.mxu0
    %v262 = vlaneseq
    %v263 = vshrl.u32 %v262, 7
    %v264 = vsub.s32 0, %v263
    %v265 = vrot.slane %v19, %v264
    %v266 = vmul.f32 %v254, %v265
    %v267 = vmul.f32 %v259, %v265
    %270 = vrot.lane.b32.xlu0 %v254, 96
    %v271 = vpop.permute.xlu0 %270
    %272 = vrot.lane.b32.xlu0 %v259, 96
    %v273 = vpop.permute.xlu0 %272
    %v275 = vsel %vm137, %v266, 0
    %v278 = vsel %vm137, %v267, 0
    %v280 = vsel %vm137, %v271, 0
    %v282 = vsel %vm137, %v273, 0
    %284 = vmatprep.subr.mxu0 0.0
    %285 = vmatpush1.xpose.msra.mxu0 0.0
    %286 = vmatprep.subr.mxu0 0.0
    %287 = vmatpush1.xpose.msra.mxu0 0.0
    %288 = vmatprep.subr.mxu0 0.0
    %289 = vmatpush1.xpose.msra.mxu0 0.0
    %290 = vmatprep.subr.mxu0 0.0
    %291 = vmatpush1.xpose.msra.mxu0 0.0
    %292 = vmatprep.subr.mxu0 0.0
    %293 = vmatpush1.xpose.msra.mxu0 0.0
    %294 = vmatprep.subr.mxu0 0.0
    %295 = vmatpush1.xpose.msra.mxu0 0.0
    %296 = vmatprep.subr.mxu0 0.0
    %297 = vmatpush1.xpose.msra.mxu0 0.0
    %298 = vmatprep.subr.mxu0 0.0
    %299 = vmatpush1.xpose.msra.mxu0 0.0
    %300 = vmatprep.subr.mxu0 0.0
    %301 = vmatpush1.xpose.msra.mxu0 0.0
    %302 = vmatprep.subr.mxu0 0.0
    %303 = vmatpush1.xpose.msra.mxu0 0.0
    %304 = vmatprep.subr.mxu0 0.0
    %305 = vmatpush1.xpose.msra.mxu0 0.0
    %306 = vmatprep.subr.mxu0 0.0
    %307 = vmatpush1.xpose.msra.mxu0 0.0
    %308 = vmatprep.subr.mxu0 0.0
    %309 = vmatpush1.xpose.msra.mxu0 0.0
    %310 = vmatprep.subr.mxu0 0.0
    %311 = vmatpush1.xpose.msra.mxu0 0.0
    %312 = vmatprep.subr.mxu0 0.0
    %313 = vmatpush1.xpose.msra.mxu0 %v282
    %314 = vmatprep.subr.mxu0 0.0
    %315 = vmatpush1.xpose.msra.mxu0 %v280
    %316 = vmatprep.subr.mxu0 0.0
    %317 = vmatpush2.xpose.msra.mxu0 0.0
    %318 = vmatprep.subr.mxu0 0.0
    %319 = vmatpush2.xpose.msra.mxu0 0.0
    %320 = vmatprep.subr.mxu0 0.0
    %321 = vmatpush2.xpose.msra.mxu0 0.0
    %322 = vmatprep.subr.mxu0 0.0
    %323 = vmatpush2.xpose.msra.mxu0 0.0
    %324 = vmatprep.subr.mxu0 0.0
    %325 = vmatpush2.xpose.msra.mxu0 0.0
    %326 = vmatprep.subr.mxu0 0.0
    %327 = vmatpush2.xpose.msra.mxu0 0.0
    %328 = vmatprep.subr.mxu0 0.0
    %329 = vmatpush2.xpose.msra.mxu0 0.0
    %330 = vmatprep.subr.mxu0 0.0
    %331 = vmatpush2.xpose.msra.mxu0 0.0
    %332 = vmatprep.subr.mxu0 0.0
    %333 = vmatpush2.xpose.msra.mxu0 0.0
    %334 = vmatprep.subr.mxu0 0.0
    %335 = vmatpush2.xpose.msra.mxu0 0.0
    %336 = vmatprep.subr.mxu0 0.0
    %337 = vmatpush2.xpose.msra.mxu0 0.0
    %338 = vmatprep.subr.mxu0 0.0
    %339 = vmatpush2.xpose.msra.mxu0 0.0
    %340 = vmatprep.subr.mxu0 0.0
    %341 = vmatpush2.xpose.msra.mxu0 0.0
    %342 = vmatprep.subr.mxu0 0.0
    %343 = vmatpush2.xpose.msra.mxu0 0.0
    %344 = vmatprep.subr.mxu0 0.0
    %345 = vmatpush2.xpose.msra.mxu0 0.0
    %346 = vmatprep.subr.mxu0 0.0
    %347 = vmatpush2.xpose.msra.mxu0 0.0
    %348 = vmatprep.mubr.f32.mxu0 0.0
    %349 = vmatmul.mubr.f32.gmra.mxu0 %v275
    %v350 = vpop.f32.mrf.mxu0
    %v351 = vadd.f32 %v15, %v350
    %v352 = vpop.f32.mrf.mxu0
    %353 = vmatprep.mubr.f32.mxu0 0.0
    %354 = vmatmul.mubr.f32.gmra.mxu0 %v278
    %v355 = vpop.f32.mrf.mxu0
    %v356 = vadd.f32 %v16, %v355
    %v357 = vpop.f32.mrf.mxu0
    %358 = vdwg.mxu0
    %v359 = vsel %vm55, %v351, -inf
    %360 = vmax.xlane.f32.xlu0 %v359
    %v361 = vpop.xlane.xlu0 %360
    %v362 = vsel %vm55, %v356, -inf
    %363 = vmax.xlane.f32.xlu0 %v362
    %v364 = vpop.xlane.xlu0 %363
    %v365 = vsub.f32 %v351, %v361
    %v366 = vsub.f32 %v356, %v364
    %v367 = vmul.f32 %v365, 1.442695
    %v368 = vpow.pop %v367
    %v369 = vmul.f32 %v366, 1.442695
    %v370 = vpow.pop %v369
    %v371 = vsel %vm55, %v368, 0.0
    %372 = vadd.xlane.f32.xlu0 %v371
    %v373 = vpop.xlane.xlu0 %372
    %v374 = vsel %vm55, %v370, 0.0
    %375 = vadd.xlane.f32.xlu0 %v374
    %v376 = vpop.xlane.xlu0 %375
    %v377 = vrcp.pop %v373
    %v378 = vrcp.pop %v376
    %v379 = vmul.f32 %v368, %v377
    %v380 = vmul.f32 %v370, %v378
    %382 = vrot.lane.b32.xlu0 %v265, 64
    %v383 = vpop.permute.xlu0 %382
    %v385 = vmul.f32 %v254, %v383
    %v386 = vmul.f32 %v259, %v383
    %v387 = vlaneseq
    %v388 = vshrl.u32 %v387, 7
    %v389 = vsub.s32 0, %v388
    %v390 = vrot.slane %v20, %v389
    %v391 = vmul.f32 %v254, %v390
    %v392 = vmul.f32 %v259, %v390
    %v394 = vsel %vm137, %v391, 0
    %v397 = vsel %vm137, %v392, 0
    %399 = vmatprep.subr.mxu0 0.0
    %400 = vmatpush1.xpose.msra.mxu0 0.0
    %401 = vmatprep.subr.mxu0 0.0
    %402 = vmatpush1.xpose.msra.mxu0 0.0
    %403 = vmatprep.subr.mxu0 0.0
    %404 = vmatpush1.xpose.msra.mxu0 0.0
    %405 = vmatprep.subr.mxu0 0.0
    %406 = vmatpush1.xpose.msra.mxu0 0.0
    %407 = vmatprep.subr.mxu0 0.0
    %408 = vmatpush1.xpose.msra.mxu0 0.0
    %409 = vmatprep.subr.mxu0 0.0
    %410 = vmatpush1.xpose.msra.mxu0 0.0
    %411 = vmatprep.subr.mxu0 0.0
    %412 = vmatpush1.xpose.msra.mxu0 0.0
    %413 = vmatprep.subr.mxu0 0.0
    %414 = vmatpush1.xpose.msra.mxu0 0.0
    %415 = vmatprep.subr.mxu0 0.0
    %416 = vmatpush1.xpose.msra.mxu0 0.0
    %417 = vmatprep.subr.mxu0 0.0
    %418 = vmatpush1.xpose.msra.mxu0 0.0
    %419 = vmatprep.subr.mxu0 0.0
    %420 = vmatpush1.xpose.msra.mxu0 0.0
    %421 = vmatprep.subr.mxu0 0.0
    %422 = vmatpush1.xpose.msra.mxu0 0.0
    %423 = vmatprep.subr.mxu0 0.0
    %424 = vmatpush1.xpose.msra.mxu0 0.0
    %425 = vmatprep.subr.mxu0 0.0
    %426 = vmatpush1.xpose.msra.mxu0 0.0
    %427 = vmatprep.subr.mxu0 0.0
    %428 = vmatpush1.xpose.msra.mxu0 %v282
    %429 = vmatprep.subr.mxu0 0.0
    %430 = vmatpush1.xpose.msra.mxu0 %v280
    %431 = vmatprep.subr.mxu0 0.0
    %432 = vmatpush2.xpose.msra.mxu0 0.0
    %433 = vmatprep.subr.mxu0 0.0
    %434 = vmatpush2.xpose.msra.mxu0 0.0
    %435 = vmatprep.subr.mxu0 0.0
    %436 = vmatpush2.xpose.msra.mxu0 0.0
    %437 = vmatprep.subr.mxu0 0.0
    %438 = vmatpush2.xpose.msra.mxu0 0.0
    %439 = vmatprep.subr.mxu0 0.0
    %440 = vmatpush2.xpose.msra.mxu0 0.0
    %441 = vmatprep.subr.mxu0 0.0
    %442 = vmatpush2.xpose.msra.mxu0 0.0
    %443 = vmatprep.subr.mxu0 0.0
    %444 = vmatpush2.xpose.msra.mxu0 0.0
    %445 = vmatprep.subr.mxu0 0.0
    %446 = vmatpush2.xpose.msra.mxu0 0.0
    %447 = vmatprep.subr.mxu0 0.0
    %448 = vmatpush2.xpose.msra.mxu0 0.0
    %449 = vmatprep.subr.mxu0 0.0
    %450 = vmatpush2.xpose.msra.mxu0 0.0
    %451 = vmatprep.subr.mxu0 0.0
    %452 = vmatpush2.xpose.msra.mxu0 0.0
    %453 = vmatprep.subr.mxu0 0.0
    %454 = vmatpush2.xpose.msra.mxu0 0.0
    %455 = vmatprep.subr.mxu0 0.0
    %456 = vmatpush2.xpose.msra.mxu0 0.0
    %457 = vmatprep.subr.mxu0 0.0
    %458 = vmatpush2.xpose.msra.mxu0 0.0
    %459 = vmatprep.subr.mxu0 0.0
    %460 = vmatpush2.xpose.msra.mxu0 0.0
    %461 = vmatprep.subr.mxu0 0.0
    %462 = vmatpush2.xpose.msra.mxu0 0.0
    %463 = vmatprep.mubr.f32.mxu0 0.0
    %464 = vmatmul.mubr.f32.gmra.mxu0 %v394
    %v465 = vpop.f32.mrf.mxu0
    %v466 = vadd.f32 %v15, %v465
    %v467 = vpop.f32.mrf.mxu0
    %468 = vmatprep.mubr.f32.mxu0 0.0
    %469 = vmatmul.mubr.f32.gmra.mxu0 %v397
    %v470 = vpop.f32.mrf.mxu0
    %v471 = vadd.f32 %v16, %v470
    %v472 = vpop.f32.mrf.mxu0
    %473 = vdwg.mxu0
    %v474 = vsel %vm55, %v466, -inf
    %475 = vmax.xlane.f32.xlu0 %v474
    %v476 = vpop.xlane.xlu0 %475
    %v477 = vsel %vm55, %v471, -inf
    %478 = vmax.xlane.f32.xlu0 %v477
    %v479 = vpop.xlane.xlu0 %478
    %v480 = vsub.f32 %v466, %v476
    %v481 = vsub.f32 %v471, %v479
    %v482 = vmul.f32 %v480, 1.442695
    %v483 = vpow.pop %v482
    %v484 = vmul.f32 %v481, 1.442695
    %v485 = vpow.pop %v484
    %v486 = vsel %vm55, %v483, 0.0
    %487 = vadd.xlane.f32.xlu0 %v486
    %v488 = vpop.xlane.xlu0 %487
    %v489 = vsel %vm55, %v485, 0.0
    %490 = vadd.xlane.f32.xlu0 %v489
    %v491 = vpop.xlane.xlu0 %490
    %v492 = vrcp.pop %v488
    %v493 = vrcp.pop %v491
    %v494 = vmul.f32 %v483, %v492
    %v495 = vmul.f32 %v485, %v493
    %497 = vrot.lane.b32.xlu0 %v390, 64
    %v498 = vpop.permute.xlu0 %497
    %v500 = vmul.f32 %v254, %v498
    %v501 = vmul.f32 %v259, %v498
    %504 = vrot.lane.b32.xlu0 %v500, 64
    %v505 = vpop.permute.xlu0 %504
    %506 = vrot.lane.b32.xlu0 %v501, 64
    %v507 = vpop.permute.xlu0 %506
    %v511 = vsel %vm55, %v494, 0
    %v514 = vsel %vm55, %v495, 0
    %516 = vmatprep.subr.mxu0 0.0
    %517 = vmatpush1.msra.mxu0 0.0
    %518 = vmatprep.subr.mxu0 0.0
    %519 = vmatpush1.msra.mxu0 0.0
    %520 = vmatprep.subr.mxu0 0.0
    %521 = vmatpush1.msra.mxu0 0.0
    %522 = vmatprep.subr.mxu0 0.0
    %523 = vmatpush1.msra.mxu0 0.0
    %524 = vmatprep.subr.mxu0 0.0
    %525 = vmatpush1.msra.mxu0 0.0
    %526 = vmatprep.subr.mxu0 0.0
    %527 = vmatpush1.msra.mxu0 0.0
    %528 = vmatprep.subr.mxu0 0.0
    %529 = vmatpush1.msra.mxu0 0.0
    %530 = vmatprep.subr.mxu0 0.0
    %531 = vmatpush1.msra.mxu0 0.0
    %532 = vmatprep.subr.mxu0 0.0
    %533 = vmatpush1.msra.mxu0 0.0
    %534 = vmatprep.subr.mxu0 0.0
    %535 = vmatpush1.msra.mxu0 0.0
    %536 = vmatprep.subr.mxu0 0.0
    %537 = vmatpush1.msra.mxu0 0.0
    %538 = vmatprep.subr.mxu0 0.0
    %539 = vmatpush1.msra.mxu0 0.0
    %540 = vmatprep.subr.mxu0 0.0
    %541 = vmatpush1.msra.mxu0 0.0
    %542 = vmatprep.subr.mxu0 0.0
    %543 = vmatpush1.msra.mxu0 0.0
    %544 = vmatprep.subr.mxu0 0.0
    %545 = vmatpush1.msra.mxu0 %v507
    %546 = vmatprep.subr.mxu0 0.0
    %547 = vmatpush1.msra.mxu0 %v505
    %548 = vmatprep.subr.mxu0 0.0
    %549 = vmatpush2.msra.mxu0 0.0
    %550 = vmatprep.subr.mxu0 0.0
    %551 = vmatpush2.msra.mxu0 0.0
    %552 = vmatprep.subr.mxu0 0.0
    %553 = vmatpush2.msra.mxu0 0.0
    %554 = vmatprep.subr.mxu0 0.0
    %555 = vmatpush2.msra.mxu0 0.0
    %556 = vmatprep.subr.mxu0 0.0
    %557 = vmatpush2.msra.mxu0 0.0
    %558 = vmatprep.subr.mxu0 0.0
    %559 = vmatpush2.msra.mxu0 0.0
    %560 = vmatprep.subr.mxu0 0.0
    %561 = vmatpush2.msra.mxu0 0.0
    %562 = vmatprep.subr.mxu0 0.0
    %563 = vmatpush2.msra.mxu0 0.0
    %564 = vmatprep.subr.mxu0 0.0
    %565 = vmatpush2.msra.mxu0 0.0
    %566 = vmatprep.subr.mxu0 0.0
    %567 = vmatpush2.msra.mxu0 0.0
    %568 = vmatprep.subr.mxu0 0.0
    %569 = vmatpush2.msra.mxu0 0.0
    %570 = vmatprep.subr.mxu0 0.0
    %571 = vmatpush2.msra.mxu0 0.0
    %572 = vmatprep.subr.mxu0 0.0
    %573 = vmatpush2.msra.mxu0 0.0
    %574 = vmatprep.subr.mxu0 0.0
    %575 = vmatpush2.msra.mxu0 0.0
    %576 = vmatprep.subr.mxu0 0.0
    %577 = vmatpush2.msra.mxu0 0.0
    %578 = vmatprep.subr.mxu0 0.0
    %579 = vmatpush2.msra.mxu0 0.0
    %580 = vmatprep.mubr.f32.mxu0 0.0
    %581 = vmatmul.mubr.f32.gmra.mxu0 %v511
    %v582 = vpop.f32.mrf.mxu0
    %v583 = vadd.f32 0.0, %v582
    %v584 = vpop.f32.mrf.mxu0
    %585 = vmatprep.mubr.f32.mxu0 0.0
    %586 = vmatmul.mubr.f32.gmra.mxu0 %v514
    %v587 = vpop.f32.mrf.mxu0
    %v588 = vadd.f32 0.0, %v587
    %v589 = vpop.f32.mrf.mxu0
    %590 = vdwg.mxu0
    %593 = vrot.lane.b32.xlu0 %v385, 64
    %v594 = vpop.permute.xlu0 %593
    %595 = vrot.lane.b32.xlu0 %v386, 64
    %v596 = vpop.permute.xlu0 %595
    %v600 = vsel %vm55, %v379, 0
    %v603 = vsel %vm55, %v380, 0
    %605 = vmatprep.subr.mxu0 0.0
    %606 = vmatpush1.msra.mxu0 0.0
    %607 = vmatprep.subr.mxu0 0.0
    %608 = vmatpush1.msra.mxu0 0.0
    %609 = vmatprep.subr.mxu0 0.0
    %610 = vmatpush1.msra.mxu0 0.0
    %611 = vmatprep.subr.mxu0 0.0
    %612 = vmatpush1.msra.mxu0 0.0
    %613 = vmatprep.subr.mxu0 0.0
    %614 = vmatpush1.msra.mxu0 0.0
    %615 = vmatprep.subr.mxu0 0.0
    %616 = vmatpush1.msra.mxu0 0.0
    %617 = vmatprep.subr.mxu0 0.0
    %618 = vmatpush1.msra.mxu0 0.0
    %619 = vmatprep.subr.mxu0 0.0
    %620 = vmatpush1.msra.mxu0 0.0
    %621 = vmatprep.subr.mxu0 0.0
    %622 = vmatpush1.msra.mxu0 0.0
    %623 = vmatprep.subr.mxu0 0.0
    %624 = vmatpush1.msra.mxu0 0.0
    %625 = vmatprep.subr.mxu0 0.0
    %626 = vmatpush1.msra.mxu0 0.0
    %627 = vmatprep.subr.mxu0 0.0
    %628 = vmatpush1.msra.mxu0 0.0
    %629 = vmatprep.subr.mxu0 0.0
    %630 = vmatpush1.msra.mxu0 0.0
    %631 = vmatprep.subr.mxu0 0.0
    %632 = vmatpush1.msra.mxu0 0.0
    %633 = vmatprep.subr.mxu0 0.0
    %634 = vmatpush1.msra.mxu0 %v596
    %635 = vmatprep.subr.mxu0 0.0
    %636 = vmatpush1.msra.mxu0 %v594
    %637 = vmatprep.subr.mxu0 0.0
    %638 = vmatpush2.msra.mxu0 0.0
    %639 = vmatprep.subr.mxu0 0.0
    %640 = vmatpush2.msra.mxu0 0.0
    %641 = vmatprep.subr.mxu0 0.0
    %642 = vmatpush2.msra.mxu0 0.0
    %643 = vmatprep.subr.mxu0 0.0
    %644 = vmatpush2.msra.mxu0 0.0
    %645 = vmatprep.subr.mxu0 0.0
    %646 = vmatpush2.msra.mxu0 0.0
    %647 = vmatprep.subr.mxu0 0.0
    %648 = vmatpush2.msra.mxu0 0.0
    %649 = vmatprep.subr.mxu0 0.0
    %650 = vmatpush2.msra.mxu0 0.0
    %651 = vmatprep.subr.mxu0 0.0
    %652 = vmatpush2.msra.mxu0 0.0
    %653 = vmatprep.subr.mxu0 0.0
    %654 = vmatpush2.msra.mxu0 0.0
    %655 = vmatprep.subr.mxu0 0.0
    %656 = vmatpush2.msra.mxu0 0.0
    %657 = vmatprep.subr.mxu0 0.0
    %658 = vmatpush2.msra.mxu0 0.0
    %659 = vmatprep.subr.mxu0 0.0
    %660 = vmatpush2.msra.mxu0 0.0
    %661 = vmatprep.subr.mxu0 0.0
    %662 = vmatpush2.msra.mxu0 0.0
    %663 = vmatprep.subr.mxu0 0.0
    %664 = vmatpush2.msra.mxu0 0.0
    %665 = vmatprep.subr.mxu0 0.0
    %666 = vmatpush2.msra.mxu0 0.0
    %667 = vmatprep.subr.mxu0 0.0
    %668 = vmatpush2.msra.mxu0 0.0
    %669 = vmatprep.mubr.f32.mxu0 0.0
    %670 = vmatmul.mubr.f32.gmra.mxu0 %v600
    %v671 = vpop.f32.mrf.mxu0
    %v672 = vadd.f32 %v583, %v671
    %v673 = vpop.f32.mrf.mxu0
    %674 = vmatprep.mubr.f32.mxu0 0.0
    %675 = vmatmul.mubr.f32.gmra.mxu0 %v603
    %v676 = vpop.f32.mrf.mxu0
    %v677 = vadd.f32 %v588, %v676
    %v678 = vpop.f32.mrf.mxu0
    %679 = vdwg.mxu0
    %v680 = vlaneseq
    %v681 = vshrl.u32 %v680, 7
    %v682 = vsub.s32 0, %v681
    %v683 = vrot.slane %v21, %v682
    %v684 = vmul.f32 %v254, %v683
    %v685 = vmul.f32 %v259, %v683
    %v687 = vsel %vm137, %v684, 0
    %v690 = vsel %vm137, %v685, 0
    %692 = vmatprep.subr.mxu0 0.0
    %693 = vmatpush1.xpose.msra.mxu0 0.0
    %694 = vmatprep.subr.mxu0 0.0
    %695 = vmatpush1.xpose.msra.mxu0 0.0
    %696 = vmatprep.subr.mxu0 0.0
    %697 = vmatpush1.xpose.msra.mxu0 0.0
    %698 = vmatprep.subr.mxu0 0.0
    %699 = vmatpush1.xpose.msra.mxu0 0.0
    %700 = vmatprep.subr.mxu0 0.0
    %701 = vmatpush1.xpose.msra.mxu0 0.0
    %702 = vmatprep.subr.mxu0 0.0
    %703 = vmatpush1.xpose.msra.mxu0 0.0
    %704 = vmatprep.subr.mxu0 0.0
    %705 = vmatpush1.xpose.msra.mxu0 0.0
    %706 = vmatprep.subr.mxu0 0.0
    %707 = vmatpush1.xpose.msra.mxu0 0.0
    %708 = vmatprep.subr.mxu0 0.0
    %709 = vmatpush1.xpose.msra.mxu0 0.0
    %710 = vmatprep.subr.mxu0 0.0
    %711 = vmatpush1.xpose.msra.mxu0 0.0
    %712 = vmatprep.subr.mxu0 0.0
    %713 = vmatpush1.xpose.msra.mxu0 0.0
    %714 = vmatprep.subr.mxu0 0.0
    %715 = vmatpush1.xpose.msra.mxu0 0.0
    %716 = vmatprep.subr.mxu0 0.0
    %717 = vmatpush1.xpose.msra.mxu0 0.0
    %718 = vmatprep.subr.mxu0 0.0
    %719 = vmatpush1.xpose.msra.mxu0 0.0
    %720 = vmatprep.subr.mxu0 0.0
    %721 = vmatpush1.xpose.msra.mxu0 %v282
    %722 = vmatprep.subr.mxu0 0.0
    %723 = vmatpush1.xpose.msra.mxu0 %v280
    %724 = vmatprep.subr.mxu0 0.0
    %725 = vmatpush2.xpose.msra.mxu0 0.0
    %726 = vmatprep.subr.mxu0 0.0
    %727 = vmatpush2.xpose.msra.mxu0 0.0
    %728 = vmatprep.subr.mxu0 0.0
    %729 = vmatpush2.xpose.msra.mxu0 0.0
    %730 = vmatprep.subr.mxu0 0.0
    %731 = vmatpush2.xpose.msra.mxu0 0.0
    %732 = vmatprep.subr.mxu0 0.0
    %733 = vmatpush2.xpose.msra.mxu0 0.0
    %734 = vmatprep.subr.mxu0 0.0
    %735 = vmatpush2.xpose.msra.mxu0 0.0
    %736 = vmatprep.subr.mxu0 0.0
    %737 = vmatpush2.xpose.msra.mxu0 0.0
    %738 = vmatprep.subr.mxu0 0.0
    %739 = vmatpush2.xpose.msra.mxu0 0.0
    %740 = vmatprep.subr.mxu0 0.0
    %741 = vmatpush2.xpose.msra.mxu0 0.0
    %742 = vmatprep.subr.mxu0 0.0
    %743 = vmatpush2.xpose.msra.mxu0 0.0
    %744 = vmatprep.subr.mxu0 0.0
    %745 = vmatpush2.xpose.msra.mxu0 0.0
    %746 = vmatprep.subr.mxu0 0.0
    %747 = vmatpush2.xpose.msra.mxu0 0.0
    %748 = vmatprep.subr.mxu0 0.0
    %749 = vmatpush2.xpose.msra.mxu0 0.0
    %750 = vmatprep.subr.mxu0 0.0
    %751 = vmatpush2.xpose.msra.mxu0 0.0
    %752 = vmatprep.subr.mxu0 0.0
    %753 = vmatpush2.xpose.msra.mxu0 0.0
    %754 = vmatprep.subr.mxu0 0.0
    %755 = vmatpush2.xpose.msra.mxu0 0.0
    %756 = vmatprep.mubr.f32.mxu0 0.0
    %757 = vmatmul.mubr.f32.gmra.mxu0 %v687
    %v758 = vpop.f32.mrf.mxu0
    %v759 = vadd.f32 %v15, %v758
    %v760 = vpop.f32.mrf.mxu0
    %761 = vmatprep.mubr.f32.mxu0 0.0
    %762 = vmatmul.mubr.f32.gmra.mxu0 %v690
    %v763 = vpop.f32.mrf.mxu0
    %v764 = vadd.f32 %v16, %v763
    %v765 = vpop.f32.mrf.mxu0
    %766 = vdwg.mxu0
    %v767 = vsel %vm55, %v759, -inf
    %768 = vmax.xlane.f32.xlu0 %v767
    %v769 = vpop.xlane.xlu0 %768
    %v770 = vsel %vm55, %v764, -inf
    %771 = vmax.xlane.f32.xlu0 %v770
    %v772 = vpop.xlane.xlu0 %771
    %v773 = vsub.f32 %v759, %v769
    %v774 = vsub.f32 %v764, %v772
    %v775 = vmul.f32 %v773, 1.442695
    %v776 = vpow.pop %v775
    %v777 = vmul.f32 %v774, 1.442695
    %v778 = vpow.pop %v777
    %v779 = vsel %vm55, %v776, 0.0
    %780 = vadd.xlane.f32.xlu0 %v779
    %v781 = vpop.xlane.xlu0 %780
    %v782 = vsel %vm55, %v778, 0.0
    %783 = vadd.xlane.f32.xlu0 %v782
    %v784 = vpop.xlane.xlu0 %783
    %v785 = vrcp.pop %v781
    %v786 = vrcp.pop %v784
    %v787 = vmul.f32 %v776, %v785
    %v788 = vmul.f32 %v778, %v786
    %790 = vrot.lane.b32.xlu0 %v683, 64
    %v791 = vpop.permute.xlu0 %790
    %v793 = vmul.f32 %v254, %v791
    %v794 = vmul.f32 %v259, %v791
    %797 = vrot.lane.b32.xlu0 %v793, 64
    %v798 = vpop.permute.xlu0 %797
    %799 = vrot.lane.b32.xlu0 %v794, 64
    %v800 = vpop.permute.xlu0 %799
    %v804 = vsel %vm55, %v787, 0
    %v807 = vsel %vm55, %v788, 0
    %809 = vmatprep.subr.mxu0 0.0
    %810 = vmatpush1.msra.mxu0 0.0
    %811 = vmatprep.subr.mxu0 0.0
    %812 = vmatpush1.msra.mxu0 0.0
    %813 = vmatprep.subr.mxu0 0.0
    %814 = vmatpush1.msra.mxu0 0.0
    %815 = vmatprep.subr.mxu0 0.0
    %816 = vmatpush1.msra.mxu0 0.0
    %817 = vmatprep.subr.mxu0 0.0
    %818 = vmatpush1.msra.mxu0 0.0
    %819 = vmatprep.subr.mxu0 0.0
    %820 = vmatpush1.msra.mxu0 0.0
    %821 = vmatprep.subr.mxu0 0.0
    %822 = vmatpush1.msra.mxu0 0.0
    %823 = vmatprep.subr.mxu0 0.0
    %824 = vmatpush1.msra.mxu0 0.0
    %825 = vmatprep.subr.mxu0 0.0
    %826 = vmatpush1.msra.mxu0 0.0
    %827 = vmatprep.subr.mxu0 0.0
    %828 = vmatpush1.msra.mxu0 0.0
    %829 = vmatprep.subr.mxu0 0.0
    %830 = vmatpush1.msra.mxu0 0.0
    %831 = vmatprep.subr.mxu0 0.0
    %832 = vmatpush1.msra.mxu0 0.0
    %833 = vmatprep.subr.mxu0 0.0
    %834 = vmatpush1.msra.mxu0 0.0
    %835 = vmatprep.subr.mxu0 0.0
    %836 = vmatpush1.msra.mxu0 0.0
    %837 = vmatprep.subr.mxu0 0.0
    %838 = vmatpush1.msra.mxu0 %v800
    %839 = vmatprep.subr.mxu0 0.0
    %840 = vmatpush1.msra.mxu0 %v798
    %841 = vmatprep.subr.mxu0 0.0
    %842 = vmatpush2.msra.mxu0 0.0
    %843 = vmatprep.subr.mxu0 0.0
    %844 = vmatpush2.msra.mxu0 0.0
    %845 = vmatprep.subr.mxu0 0.0
    %846 = vmatpush2.msra.mxu0 0.0
    %847 = vmatprep.subr.mxu0 0.0
    %848 = vmatpush2.msra.mxu0 0.0
    %849 = vmatprep.subr.mxu0 0.0
    %850 = vmatpush2.msra.mxu0 0.0
    %851 = vmatprep.subr.mxu0 0.0
    %852 = vmatpush2.msra.mxu0 0.0
    %853 = vmatprep.subr.mxu0 0.0
    %854 = vmatpush2.msra.mxu0 0.0
    %855 = vmatprep.subr.mxu0 0.0
    %856 = vmatpush2.msra.mxu0 0.0
    %857 = vmatprep.subr.mxu0 0.0
    %858 = vmatpush2.msra.mxu0 0.0
    %859 = vmatprep.subr.mxu0 0.0
    %860 = vmatpush2.msra.mxu0 0.0
    %861 = vmatprep.subr.mxu0 0.0
    %862 = vmatpush2.msra.mxu0 0.0
    %863 = vmatprep.subr.mxu0 0.0
    %864 = vmatpush2.msra.mxu0 0.0
    %865 = vmatprep.subr.mxu0 0.0
    %866 = vmatpush2.msra.mxu0 0.0
    %867 = vmatprep.subr.mxu0 0.0
    %868 = vmatpush2.msra.mxu0 0.0
    %869 = vmatprep.subr.mxu0 0.0
    %870 = vmatpush2.msra.mxu0 0.0
    %871 = vmatprep.subr.mxu0 0.0
    %872 = vmatpush2.msra.mxu0 0.0
    %873 = vmatprep.mubr.f32.mxu0 0.0
    %874 = vmatmul.mubr.f32.gmra.mxu0 %v804
    %v875 = vpop.f32.mrf.mxu0
    %v876 = vadd.f32 0.0, %v875
    %v877 = vpop.f32.mrf.mxu0
    %878 = vmatprep.mubr.f32.mxu0 0.0
    %879 = vmatmul.mubr.f32.gmra.mxu0 %v807
    %v880 = vpop.f32.mrf.mxu0
    %v881 = vadd.f32 0.0, %v880
    %v882 = vpop.f32.mrf.mxu0
    %883 = vdwg.mxu0
    %v884 = vadd.f32 %v672, %v876
    %v885 = vadd.f32 %v677, %v881
    %v886 = vlaneseq
    %v887 = vshrl.u32 %v886, 7
    %v888 = vsub.s32 0, %v887
    %v889 = vrot.slane %v22, %v888
    %v890 = vmul.f32 %v254, %v889
    %v891 = vmul.f32 %v259, %v889
    %v893 = vsel %vm137, %v890, 0
    %v896 = vsel %vm137, %v891, 0
    %898 = vmatprep.subr.mxu0 0.0
    %899 = vmatpush1.xpose.msra.mxu0 0.0
    %900 = vmatprep.subr.mxu0 0.0
    %901 = vmatpush1.xpose.msra.mxu0 0.0
    %902 = vmatprep.subr.mxu0 0.0
    %903 = vmatpush1.xpose.msra.mxu0 0.0
    %904 = vmatprep.subr.mxu0 0.0
    %905 = vmatpush1.xpose.msra.mxu0 0.0
    %906 = vmatprep.subr.mxu0 0.0
    %907 = vmatpush1.xpose.msra.mxu0 0.0
    %908 = vmatprep.subr.mxu0 0.0
    %909 = vmatpush1.xpose.msra.mxu0 0.0
    %910 = vmatprep.subr.mxu0 0.0
    %911 = vmatpush1.xpose.msra.mxu0 0.0
    %912 = vmatprep.subr.mxu0 0.0
    %913 = vmatpush1.xpose.msra.mxu0 0.0
    %914 = vmatprep.subr.mxu0 0.0
    %915 = vmatpush1.xpose.msra.mxu0 0.0
    %916 = vmatprep.subr.mxu0 0.0
    %917 = vmatpush1.xpose.msra.mxu0 0.0
    %918 = vmatprep.subr.mxu0 0.0
    %919 = vmatpush1.xpose.msra.mxu0 0.0
    %920 = vmatprep.subr.mxu0 0.0
    %921 = vmatpush1.xpose.msra.mxu0 0.0
    %922 = vmatprep.subr.mxu0 0.0
    %923 = vmatpush1.xpose.msra.mxu0 0.0
    %924 = vmatprep.subr.mxu0 0.0
    %925 = vmatpush1.xpose.msra.mxu0 0.0
    %926 = vmatprep.subr.mxu0 0.0
    %927 = vmatpush1.xpose.msra.mxu0 %v282
    %928 = vmatprep.subr.mxu0 0.0
    %929 = vmatpush1.xpose.msra.mxu0 %v280
    %930 = vmatprep.subr.mxu0 0.0
    %931 = vmatpush2.xpose.msra.mxu0 0.0
    %932 = vmatprep.subr.mxu0 0.0
    %933 = vmatpush2.xpose.msra.mxu0 0.0
    %934 = vmatprep.subr.mxu0 0.0
    %935 = vmatpush2.xpose.msra.mxu0 0.0
    %936 = vmatprep.subr.mxu0 0.0
    %937 = vmatpush2.xpose.msra.mxu0 0.0
    %938 = vmatprep.subr.mxu0 0.0
    %939 = vmatpush2.xpose.msra.mxu0 0.0
    %940 = vmatprep.subr.mxu0 0.0
    %941 = vmatpush2.xpose.msra.mxu0 0.0
    %942 = vmatprep.subr.mxu0 0.0
    %943 = vmatpush2.xpose.msra.mxu0 0.0
    %944 = vmatprep.subr.mxu0 0.0
    %945 = vmatpush2.xpose.msra.mxu0 0.0
    %946 = vmatprep.subr.mxu0 0.0
    %947 = vmatpush2.xpose.msra.mxu0 0.0
    %948 = vmatprep.subr.mxu0 0.0
    %949 = vmatpush2.xpose.msra.mxu0 0.0
    %950 = vmatprep.subr.mxu0 0.0
    %951 = vmatpush2.xpose.msra.mxu0 0.0
    %952 = vmatprep.subr.mxu0 0.0
    %953 = vmatpush2.xpose.msra.mxu0 0.0
    %954 = vmatprep.subr.mxu0 0.0
    %955 = vmatpush2.xpose.msra.mxu0 0.0
    %956 = vmatprep.subr.mxu0 0.0
    %957 = vmatpush2.xpose.msra.mxu0 0.0
    %958 = vmatprep.subr.mxu0 0.0
    %959 = vmatpush2.xpose.msra.mxu0 0.0
    %960 = vmatprep.subr.mxu0 0.0
    %961 = vmatpush2.xpose.msra.mxu0 0.0
    %962 = vmatprep.mubr.f32.mxu0 0.0
    %963 = vmatmul.mubr.f32.gmra.mxu0 %v893
    %v964 = vpop.f32.mrf.mxu0
    %v965 = vadd.f32 %v15, %v964
    %v966 = vpop.f32.mrf.mxu0
    %967 = vmatprep.mubr.f32.mxu0 0.0
    %968 = vmatmul.mubr.f32.gmra.mxu0 %v896
    %v969 = vpop.f32.mrf.mxu0
    %v970 = vadd.f32 %v16, %v969
    %v971 = vpop.f32.mrf.mxu0
    %972 = vdwg.mxu0
    %v973 = vsel %vm55, %v965, -inf
    %974 = vmax.xlane.f32.xlu0 %v973
    %v975 = vpop.xlane.xlu0 %974
    %v976 = vsel %vm55, %v970, -inf
    %977 = vmax.xlane.f32.xlu0 %v976
    %v978 = vpop.xlane.xlu0 %977
    %v979 = vsub.f32 %v965, %v975
    %v980 = vsub.f32 %v970, %v978
    %v981 = vmul.f32 %v979, 1.442695
    %v982 = vpow.pop %v981
    %v983 = vmul.f32 %v980, 1.442695
    %v984 = vpow.pop %v983
    %v985 = vsel %vm55, %v982, 0.0
    %986 = vadd.xlane.f32.xlu0 %v985
    %v987 = vpop.xlane.xlu0 %986
    %v988 = vsel %vm55, %v984, 0.0
    %989 = vadd.xlane.f32.xlu0 %v988
    %v990 = vpop.xlane.xlu0 %989
    %v991 = vrcp.pop %v987
    %v992 = vrcp.pop %v990
    %v993 = vmul.f32 %v982, %v991
    %v994 = vmul.f32 %v984, %v992
    %996 = vrot.lane.b32.xlu0 %v889, 64
    %v997 = vpop.permute.xlu0 %996
    %v999 = vmul.f32 %v254, %v997
    %v1000 = vmul.f32 %v259, %v997
    %1003 = vrot.lane.b32.xlu0 %v999, 64
    %v1004 = vpop.permute.xlu0 %1003
    %1005 = vrot.lane.b32.xlu0 %v1000, 64
    %v1006 = vpop.permute.xlu0 %1005
    %v1010 = vsel %vm55, %v993, 0
    %v1013 = vsel %vm55, %v994, 0
    %1015 = vmatprep.subr.mxu0 0.0
    %1016 = vmatpush1.msra.mxu0 0.0
    %1017 = vmatprep.subr.mxu0 0.0
    %1018 = vmatpush1.msra.mxu0 0.0
    %1019 = vmatprep.subr.mxu0 0.0
    %1020 = vmatpush1.msra.mxu0 0.0
    %1021 = vmatprep.subr.mxu0 0.0
    %1022 = vmatpush1.msra.mxu0 0.0
    %1023 = vmatprep.subr.mxu0 0.0
    %1024 = vmatpush1.msra.mxu0 0.0
    %1025 = vmatprep.subr.mxu0 0.0
    %1026 = vmatpush1.msra.mxu0 0.0
    %1027 = vmatprep.subr.mxu0 0.0
    %1028 = vmatpush1.msra.mxu0 0.0
    %1029 = vmatprep.subr.mxu0 0.0
    %1030 = vmatpush1.msra.mxu0 0.0
    %1031 = vmatprep.subr.mxu0 0.0
    %1032 = vmatpush1.msra.mxu0 0.0
    %1033 = vmatprep.subr.mxu0 0.0
    %1034 = vmatpush1.msra.mxu0 0.0
    %1035 = vmatprep.subr.mxu0 0.0
    %1036 = vmatpush1.msra.mxu0 0.0
    %1037 = vmatprep.subr.mxu0 0.0
    %1038 = vmatpush1.msra.mxu0 0.0
    %1039 = vmatprep.subr.mxu0 0.0
    %1040 = vmatpush1.msra.mxu0 0.0
    %1041 = vmatprep.subr.mxu0 0.0
    %1042 = vmatpush1.msra.mxu0 0.0
    %1043 = vmatprep.subr.mxu0 0.0
    %1044 = vmatpush1.msra.mxu0 %v1006
    %1045 = vmatprep.subr.mxu0 0.0
    %1046 = vmatpush1.msra.mxu0 %v1004
    %1047 = vmatprep.subr.mxu0 0.0
    %1048 = vmatpush2.msra.mxu0 0.0
    %1049 = vmatprep.subr.mxu0 0.0
    %1050 = vmatpush2.msra.mxu0 0.0
    %1051 = vmatprep.subr.mxu0 0.0
    %1052 = vmatpush2.msra.mxu0 0.0
    %1053 = vmatprep.subr.mxu0 0.0
    %1054 = vmatpush2.msra.mxu0 0.0
    %1055 = vmatprep.subr.mxu0 0.0
    %1056 = vmatpush2.msra.mxu0 0.0
    %1057 = vmatprep.subr.mxu0 0.0
    %1058 = vmatpush2.msra.mxu0 0.0
    %1059 = vmatprep.subr.mxu0 0.0
    %1060 = vmatpush2.msra.mxu0 0.0
    %1061 = vmatprep.subr.mxu0 0.0
    %1062 = vmatpush2.msra.mxu0 0.0
    %1063 = vmatprep.subr.mxu0 0.0
    %1064 = vmatpush2.msra.mxu0 0.0
    %1065 = vmatprep.subr.mxu0 0.0
    %1066 = vmatpush2.msra.mxu0 0.0
    %1067 = vmatprep.subr.mxu0 0.0
    %1068 = vmatpush2.msra.mxu0 0.0
    %1069 = vmatprep.subr.mxu0 0.0
    %1070 = vmatpush2.msra.mxu0 0.0
    %1071 = vmatprep.subr.mxu0 0.0
    %1072 = vmatpush2.msra.mxu0 0.0
    %1073 = vmatprep.subr.mxu0 0.0
    %1074 = vmatpush2.msra.mxu0 0.0
    %1075 = vmatprep.subr.mxu0 0.0
    %1076 = vmatpush2.msra.mxu0 0.0
    %1077 = vmatprep.subr.mxu0 0.0
    %1078 = vmatpush2.msra.mxu0 0.0
    %1079 = vmatprep.mubr.f32.mxu0 0.0
    %1080 = vmatmul.mubr.f32.gmra.mxu0 %v1010
    %v1081 = vpop.f32.mrf.mxu0
    %v1082 = vadd.f32 0.0, %v1081
    %v1083 = vpop.f32.mrf.mxu0
    %1084 = vmatprep.mubr.f32.mxu0 0.0
    %1085 = vmatmul.mubr.f32.gmra.mxu0 %v1013
    %v1086 = vpop.f32.mrf.mxu0
    %v1087 = vadd.f32 0.0, %v1086
    %v1088 = vpop.f32.mrf.mxu0
    %1089 = vdwg.mxu0
    %v1090 = vadd.f32 %v884, %v1082
    %v1091 = vadd.f32 %v885, %v1087
    %v1093 = vsel %vm137, %v1090, 0
    %v1096 = vsel %vm137, %v1091, 0
    %1098 = vmatprep.subr.mxu0 0.0
    %1099 = vmatpush1.msra.mxu0 0.0
    %1100 = vmatprep.subr.mxu0 0.0
    %1101 = vmatpush1.msra.mxu0 0.0
    %1102 = vmatprep.subr.mxu0 0.0
    %1103 = vmatpush1.msra.mxu0 0.0
    %1104 = vmatprep.subr.mxu0 0.0
    %1105 = vmatpush1.msra.mxu0 0.0
    %1106 = vmatprep.subr.mxu0 0.0
    %1107 = vmatpush1.msra.mxu0 0.0
    %1108 = vmatprep.subr.mxu0 0.0
    %1109 = vmatpush1.msra.mxu0 0.0
    %1110 = vmatprep.subr.mxu0 0.0
    %1111 = vmatpush1.msra.mxu0 0.0
    %1112 = vmatprep.subr.mxu0 0.0
    %1113 = vmatpush1.msra.mxu0 0.0
    %1114 = vmatprep.subr.mxu0 0.0
    %1115 = vmatpush1.msra.mxu0 0.0
    %1116 = vmatprep.subr.mxu0 0.0
    %1117 = vmatpush1.msra.mxu0 0.0
    %1118 = vmatprep.subr.mxu0 0.0
    %1119 = vmatpush1.msra.mxu0 0.0
    %1120 = vmatprep.subr.mxu0 0.0
    %1121 = vmatpush1.msra.mxu0 0.0
    %1122 = vmatprep.subr.mxu0 0.0
    %1123 = vmatpush1.msra.mxu0 %v30
    %1124 = vmatprep.subr.mxu0 0.0
    %1125 = vmatpush1.msra.mxu0 %v29
    %1126 = vmatprep.subr.mxu0 0.0
    %1127 = vmatpush1.msra.mxu0 %v28
    %1128 = vmatprep.subr.mxu0 0.0
    %1129 = vmatpush1.msra.mxu0 %v27
    %1130 = vmatprep.subr.mxu0 0.0
    %1131 = vmatpush2.msra.mxu0 0.0
    %1132 = vmatprep.subr.mxu0 0.0
    %1133 = vmatpush2.msra.mxu0 0.0
    %1134 = vmatprep.subr.mxu0 0.0
    %1135 = vmatpush2.msra.mxu0 0.0
    %1136 = vmatprep.subr.mxu0 0.0
    %1137 = vmatpush2.msra.mxu0 0.0
    %1138 = vmatprep.subr.mxu0 0.0
    %1139 = vmatpush2.msra.mxu0 0.0
    %1140 = vmatprep.subr.mxu0 0.0
    %1141 = vmatpush2.msra.mxu0 0.0
    %1142 = vmatprep.subr.mxu0 0.0
    %1143 = vmatpush2.msra.mxu0 0.0
    %1144 = vmatprep.subr.mxu0 0.0
    %1145 = vmatpush2.msra.mxu0 0.0
    %1146 = vmatprep.subr.mxu0 0.0
    %1147 = vmatpush2.msra.mxu0 0.0
    %1148 = vmatprep.subr.mxu0 0.0
    %1149 = vmatpush2.msra.mxu0 0.0
    %1150 = vmatprep.subr.mxu0 0.0
    %1151 = vmatpush2.msra.mxu0 0.0
    %1152 = vmatprep.subr.mxu0 0.0
    %1153 = vmatpush2.msra.mxu0 0.0
    %1154 = vmatprep.subr.mxu0 0.0
    %1155 = vmatpush2.msra.mxu0 0.0
    %1156 = vmatprep.subr.mxu0 0.0
    %1157 = vmatpush2.msra.mxu0 0.0
    %1158 = vmatprep.subr.mxu0 0.0
    %1159 = vmatpush2.msra.mxu0 0.0
    %1160 = vmatprep.subr.mxu0 0.0
    %1161 = vmatpush2.msra.mxu0 0.0
    %1162 = vmatprep.mubr.f32.mxu0 0.0
    %1163 = vmatmul.mubr.f32.gmra.mxu0 %v1093
    %v1164 = vpop.f32.mrf.mxu0
    %v1165 = vadd.f32 0.0, %v1164
    %v1166 = vpop.f32.mrf.mxu0
    %1167 = vmatprep.mubr.f32.mxu0 0.0
    %1168 = vmatmul.mubr.f32.gmra.mxu0 %v1096
    %v1169 = vpop.f32.mrf.mxu0
    %v1170 = vadd.f32 0.0, %v1169
    %v1171 = vpop.f32.mrf.mxu0
    %1172 = vdwg.mxu0
    %v1173 = vadd.f32 %v129, %v1165
    %v1174 = vadd.f32 %v134, %v1170
    %v1175 = vlaneseq
    %v1176 = vshrl.u32 %v1175, 7
    %v1177 = vsub.s32 0, %v1176
    %v1178 = vrot.slane %v42, %v1177
    %v1179 = vadd.f32 %v1173, %v1178
    %v1180 = vadd.f32 %v1174, %v1178
    %v1181 = vsel %vm137, %v1179, 0.0
    %1182 = vadd.xlane.f32.xlu0 %v1181
    %v1183 = vpop.xlane.xlu0 %1182
    %v1184 = vsel %vm137, %v1180, 0.0
    %1185 = vadd.xlane.f32.xlu0 %v1184
    %v1186 = vpop.xlane.xlu0 %1185
    %v1187 = vmul.f32 %v1183, %v144
    %v1188 = vmul.f32 %v1186, %v144
    %v1189 = vsub.f32 %v1179, %v1187
    %v1190 = vsub.f32 %v1180, %v1188
    %v1191 = vmul.f32 %v1189, %v1189
    %v1192 = vmul.f32 %v1190, %v1190
    %v1193 = vsel %vm137, %v1191, 0.0
    %1194 = vadd.xlane.f32.xlu0 %v1193
    %v1195 = vpop.xlane.xlu0 %1194
    %v1196 = vsel %vm137, %v1192, 0.0
    %1197 = vadd.xlane.f32.xlu0 %v1196
    %v1198 = vpop.xlane.xlu0 %1197
    %v1199 = vmul.f32 %v1195, %v144
    %v1200 = vmul.f32 %v1198, %v144
    %v1201 = vadd.f32 %v1199, 1e-05
    %v1202 = vadd.f32 %v1200, 1e-05
    %v1203 = vrsqrt.pop %v1201
    %v1204 = vrsqrt.pop %v1202
    %v1205 = vmul.f32 %v1189, %v1203
    %v1206 = vmul.f32 %v1190, %v1204
    %v1207 = vlaneseq
    %v1208 = vshrl.u32 %v1207, 7
    %v1209 = vsub.s32 0, %v1208
    %v1210 = vrot.slane %v43, %v1209
    %v1211 = vmul.f32 %v1205, %v1210
    %v1212 = vmul.f32 %v1206, %v1210
    %v1213 = vlaneseq
    %v1214 = vshrl.u32 %v1213, 7
    %v1215 = vsub.s32 0, %v1214
    %v1216 = vrot.slane %v44, %v1215
    %v1217 = vadd.f32 %v1211, %v1216
    %v1218 = vadd.f32 %v1212, %v1216
    %v1219 = vlaneseq
    %v1220 = vshrl.u32 %v1219, 7
    %v1221 = vsub.s32 0, %v1220
    %v1222 = vrot.slane %v45, %v1221
    %v1224 = vsel %vm137, %v1217, 0
    %v1227 = vsel %vm137, %v1218, 0
    %1229 = vmatprep.subr.mxu0 0.0
    %1230 = vmatpush1.msra.mxu0 0.0
    %1231 = vmatprep.subr.mxu0 0.0
    %1232 = vmatpush1.msra.mxu0 0.0
    %1233 = vmatprep.subr.mxu0 0.0
    %1234 = vmatpush1.msra.mxu0 0.0
    %1235 = vmatprep.subr.mxu0 0.0
    %1236 = vmatpush1.msra.mxu0 0.0
    %1237 = vmatprep.subr.mxu0 0.0
    %1238 = vmatpush1.msra.mxu0 0.0
    %1239 = vmatprep.subr.mxu0 0.0
    %1240 = vmatpush1.msra.mxu0 0.0
    %1241 = vmatprep.subr.mxu0 0.0
    %1242 = vmatpush1.msra.mxu0 0.0
    %1243 = vmatprep.subr.mxu0 0.0
    %1244 = vmatpush1.msra.mxu0 0.0
    %1245 = vmatprep.subr.mxu0 0.0
    %1246 = vmatpush1.msra.mxu0 0.0
    %1247 = vmatprep.subr.mxu0 0.0
    %1248 = vmatpush1.msra.mxu0 0.0
    %1249 = vmatprep.subr.mxu0 0.0
    %1250 = vmatpush1.msra.mxu0 0.0
    %1251 = vmatprep.subr.mxu0 0.0
    %1252 = vmatpush1.msra.mxu0 0.0
    %1253 = vmatprep.subr.mxu0 0.0
    %1254 = vmatpush1.msra.mxu0 %v34
    %1255 = vmatprep.subr.mxu0 0.0
    %1256 = vmatpush1.msra.mxu0 %v33
    %1257 = vmatprep.subr.mxu0 0.0
    %1258 = vmatpush1.msra.mxu0 %v32
    %1259 = vmatprep.subr.mxu0 0.0
    %1260 = vmatpush1.msra.mxu0 %v31
    %1261 = vmatprep.subr.mxu0 0.0
    %1262 = vmatpush2.msra.mxu0 0.0
    %1263 = vmatprep.subr.mxu0 0.0
    %1264 = vmatpush2.msra.mxu0 0.0
    %1265 = vmatprep.subr.mxu0 0.0
    %1266 = vmatpush2.msra.mxu0 0.0
    %1267 = vmatprep.subr.mxu0 0.0
    %1268 = vmatpush2.msra.mxu0 0.0
    %1269 = vmatprep.subr.mxu0 0.0
    %1270 = vmatpush2.msra.mxu0 0.0
    %1271 = vmatprep.subr.mxu0 0.0
    %1272 = vmatpush2.msra.mxu0 0.0
    %1273 = vmatprep.subr.mxu0 0.0
    %1274 = vmatpush2.msra.mxu0 0.0
    %1275 = vmatprep.subr.mxu0 0.0
    %1276 = vmatpush2.msra.mxu0 0.0
    %1277 = vmatprep.subr.mxu0 0.0
    %1278 = vmatpush2.msra.mxu0 0.0
    %1279 = vmatprep.subr.mxu0 0.0
    %1280 = vmatpush2.msra.mxu0 0.0
    %1281 = vmatprep.subr.mxu0 0.0
    %1282 = vmatpush2.msra.mxu0 0.0
    %1283 = vmatprep.subr.mxu0 0.0
    %1284 = vmatpush2.msra.mxu0 0.0
    %1285 = vmatprep.subr.mxu0 0.0
    %1286 = vmatpush2.msra.mxu0 0.0
    %1287 = vmatprep.subr.mxu0 0.0
    %1288 = vmatpush2.msra.mxu0 0.0
    %1289 = vmatprep.subr.mxu0 0.0
    %1290 = vmatpush2.msra.mxu0 0.0
    %1291 = vmatprep.subr.mxu0 0.0
    %1292 = vmatpush2.msra.mxu0 0.0
    %1293 = vmatprep.mubr.f32.mxu0 0.0
    %1294 = vmatmul.mubr.f32.gmra.mxu0 %v1224
    %v1295 = vpop.f32.mrf.mxu0
    %v1296 = vadd.f32 %v1222, %v1295
    %v1297 = vpop.f32.mrf.mxu0
    %1298 = vmatprep.mubr.f32.mxu0 0.0
    %1299 = vmatmul.mubr.f32.gmra.mxu0 %v1227
    %v1300 = vpop.f32.mrf.mxu0
    %v1301 = vadd.f32 %v1222, %v1300
    %v1302 = vpop.f32.mrf.mxu0
    %1303 = vdwg.mxu0
    %v1304 = vmul.f32 %v1296, 0.5
    %v1305 = vmul.f32 %v1301, 0.5
    %v1306 = vmul.f32 %v1296, 0.044715
    %v1307 = vmul.f32 %v1301, 0.044715
    %v1308 = vmul.f32 %v1306, %v1296
    %v1309 = vmul.f32 %v1307, %v1301
    %v1310 = vmul.f32 %v1308, %v1296
    %v1311 = vmul.f32 %v1309, %v1301
    %v1312 = vadd.f32 %v1296, %v1310
    %v1313 = vadd.f32 %v1301, %v1311
    %v1314 = vmul.f32 %v1312, 0.7978846
    %v1315 = vmul.f32 %v1313, 0.7978846
    %v1316 = vtanh.pop %v1314
    %v1317 = vtanh.pop %v1315
    %v1318 = vadd.f32 %v1316, 1.0
    %v1319 = vadd.f32 %v1317, 1.0
    %v1320 = vmul.f32 %v1304, %v1318
    %v1321 = vmul.f32 %v1305, %v1319
    %v1323 = vsel %vm137, %v1320, 0
    %v1326 = vsel %vm137, %v1321, 0
    %1328 = vmatprep.subr.mxu0 0.0
    %1329 = vmatpush1.msra.mxu0 0.0
    %1330 = vmatprep.subr.mxu0 0.0
    %1331 = vmatpush1.msra.mxu0 0.0
    %1332 = vmatprep.subr.mxu0 0.0
    %1333 = vmatpush1.msra.mxu0 0.0
    %1334 = vmatprep.subr.mxu0 0.0
    %1335 = vmatpush1.msra.mxu0 0.0
    %1336 = vmatprep.subr.mxu0 0.0
    %1337 = vmatpush1.msra.mxu0 0.0
    %1338 = vmatprep.subr.mxu0 0.0
    %1339 = vmatpush1.msra.mxu0 0.0
    %1340 = vmatprep.subr.mxu0 0.0
    %1341 = vmatpush1.msra.mxu0 0.0
    %1342 = vmatprep.subr.mxu0 0.0
    %1343 = vmatpush1.msra.mxu0 0.0
    %1344 = vmatprep.subr.mxu0 0.0
    %1345 = vmatpush1.msra.mxu0 0.0
    %1346 = vmatprep.subr.mxu0 0.0
    %1347 = vmatpush1.msra.mxu0 0.0
    %1348 = vmatprep.subr.mxu0 0.0
    %1349 = vmatpush1.msra.mxu0 0.0
    %1350 = vmatprep.subr.mxu0 0.0
    %1351 = vmatpush1.msra.mxu0 0.0
    %1352 = vmatprep.subr.mxu0 0.0
    %1353 = vmatpush1.msra.mxu0 %v38
    %1354 = vmatprep.subr.mxu0 0.0
    %1355 = vmatpush1.msra.mxu0 %v37
    %1356 = vmatprep.subr.mxu0 0.0
    %1357 = vmatpush1.msra.mxu0 %v36
    %1358 = vmatprep.subr.mxu0 0.0
    %1359 = vmatpush1.msra.mxu0 %v35
    %1360 = vmatprep.subr.mxu0 0.0
    %1361 = vmatpush2.msra.mxu0 0.0
    %1362 = vmatprep.subr.mxu0 0.0
    %1363 = vmatpush2.msra.mxu0 0.0
    %1364 = vmatprep.subr.mxu0 0.0
    %1365 = vmatpush2.msra.mxu0 0.0
    %1366 = vmatprep.subr.mxu0 0.0
    %1367 = vmatpush2.msra.mxu0 0.0
    %1368 = vmatprep.subr.mxu0 0.0
    %1369 = vmatpush2.msra.mxu0 0.0
    %1370 = vmatprep.subr.mxu0 0.0
    %1371 = vmatpush2.msra.mxu0 0.0
    %1372 = vmatprep.subr.mxu0 0.0
    %1373 = vmatpush2.msra.mxu0 0.0
    %1374 = vmatprep.subr.mxu0 0.0
    %1375 = vmatpush2.msra.mxu0 0.0
    %1376 = vmatprep.subr.mxu0 0.0
    %1377 = vmatpush2.msra.mxu0 0.0
    %1378 = vmatprep.subr.mxu0 0.0
    %1379 = vmatpush2.msra.mxu0 0.0
    %1380 = vmatprep.subr.mxu0 0.0
    %1381 = vmatpush2.msra.mxu0 0.0
    %1382 = vmatprep.subr.mxu0 0.0
    %1383 = vmatpush2.msra.mxu0 0.0
    %1384 = vmatprep.subr.mxu0 0.0
    %1385 = vmatpush2.msra.mxu0 0.0
    %1386 = vmatprep.subr.mxu0 0.0
    %1387 = vmatpush2.msra.mxu0 0.0
    %1388 = vmatprep.subr.mxu0 0.0
    %1389 = vmatpush2.msra.mxu0 0.0
    %1390 = vmatprep.subr.mxu0 0.0
    %1391 = vmatpush2.msra.mxu0 0.0
    %1392 = vmatprep.mubr.f32.mxu0 0.0
    %1393 = vmatmul.mubr.f32.gmra.mxu0 %v1323
    %v1394 = vpop.f32.mrf.mxu0
    %v1395 = vadd.f32 0.0, %v1394
    %v1396 = vpop.f32.mrf.mxu0
    %1397 = vmatprep.mubr.f32.mxu0 0.0
    %1398 = vmatmul.mubr.f32.gmra.mxu0 %v1326
    %v1399 = vpop.f32.mrf.mxu0
    %v1400 = vadd.f32 0.0, %v1399
    %v1401 = vpop.f32.mrf.mxu0
    %1402 = vdwg.mxu0
    %v1403 = vadd.f32 %v1179, %v1395
    %v1404 = vadd.f32 %v1180, %v1400
    %v1405 = vlaneseq
    %v1406 = vshrl.u32 %v1405, 7
    %v1407 = vsub.s32 0, %v1406
    %v1408 = vrot.slane %v46, %v1407
    %v1409 = vadd.f32 %v1403, %v1408
    %v1410 = vadd.f32 %v1404, %v1408
    %v1411 = vsel %vm137, %v1409, 0.0
    %1412 = vadd.xlane.f32.xlu0 %v1411
    %v1413 = vpop.xlane.xlu0 %1412
    %v1414 = vsel %vm137, %v1410, 0.0
    %1415 = vadd.xlane.f32.xlu0 %v1414
    %v1416 = vpop.xlane.xlu0 %1415
    %v1417 = vmul.f32 %v1413, %v144
    %v1418 = vmul.f32 %v1416, %v144
    %v1419 = vsub.f32 %v1409, %v1417
    %v1420 = vsub.f32 %v1410, %v1418
    %v1421 = vmul.f32 %v1419, %v1419
    %v1422 = vmul.f32 %v1420, %v1420
    %v1423 = vsel %vm137, %v1421, 0.0
    %1424 = vadd.xlane.f32.xlu0 %v1423
    %v1425 = vpop.xlane.xlu0 %1424
    %v1426 = vsel %vm137, %v1422, 0.0
    %1427 = vadd.xlane.f32.xlu0 %v1426
    %v1428 = vpop.xlane.xlu0 %1427
    %v1429 = vmul.f32 %v1425, %v144
    %v1430 = vmul.f32 %v1428, %v144
    %v1431 = vadd.f32 %v1429, 1e-05
    %v1432 = vadd.f32 %v1430, 1e-05
    %v1433 = vrsqrt.pop %v1431
    %v1434 = vrsqrt.pop %v1432
    %v1435 = vmul.f32 %v1419, %v1433
    %v1436 = vmul.f32 %v1420, %v1434
    %v1437 = vmul.f32 %v1435, %v168
    %v1438 = vmul.f32 %v1436, %v168
    %v1439 = vadd.f32 %v1437, %v174
    %v1440 = vadd.f32 %v1438, %v174
    %v1442 = vsel %vm137, %v1439, 0
    %v1445 = vsel %vm137, %v1440, 0
    %1447 = vmatprep.subr.mxu0 0.0
    %1448 = vmatpush1.msra.mxu0 0.0
    %1449 = vmatprep.subr.mxu0 0.0
    %1450 = vmatpush1.msra.mxu0 0.0
    %1451 = vmatprep.subr.mxu0 0.0
    %1452 = vmatpush1.msra.mxu0 0.0
    %1453 = vmatprep.subr.mxu0 0.0
    %1454 = vmatpush1.msra.mxu0 0.0
    %1455 = vmatprep.subr.mxu0 0.0
    %1456 = vmatpush1.msra.mxu0 0.0
    %1457 = vmatprep.subr.mxu0 0.0
    %1458 = vmatpush1.msra.mxu0 0.0
    %1459 = vmatprep.subr.mxu0 0.0
    %1460 = vmatpush1.msra.mxu0 0.0
    %1461 = vmatprep.subr.mxu0 0.0
    %1462 = vmatpush1.msra.mxu0 0.0
    %1463 = vmatprep.subr.mxu0 0.0
    %1464 = vmatpush1.msra.mxu0 0.0
    %1465 = vmatprep.subr.mxu0 0.0
    %1466 = vmatpush1.msra.mxu0 0.0
    %1467 = vmatprep.subr.mxu0 0.0
    %1468 = vmatpush1.msra.mxu0 0.0
    %1469 = vmatprep.subr.mxu0 0.0
    %1470 = vmatpush1.msra.mxu0 0.0
    %1471 = vmatprep.subr.mxu0 0.0
    %1472 = vmatpush1.msra.mxu0 %v26
    %1473 = vmatprep.subr.mxu0 0.0
    %1474 = vmatpush1.msra.mxu0 %v25
    %1475 = vmatprep.subr.mxu0 0.0
    %1476 = vmatpush1.msra.mxu0 %v24
    %1477 = vmatprep.subr.mxu0 0.0
    %1478 = vmatpush1.msra.mxu0 %v23
    %1479 = vmatprep.subr.mxu0 0.0
    %1480 = vmatpush2.msra.mxu0 0.0
    %1481 = vmatprep.subr.mxu0 0.0
    %1482 = vmatpush2.msra.mxu0 0.0
    %1483 = vmatprep.subr.mxu0 0.0
    %1484 = vmatpush2.msra.mxu0 0.0
    %1485 = vmatprep.subr.mxu0 0.0
    %1486 = vmatpush2.msra.mxu0 0.0
    %1487 = vmatprep.subr.mxu0 0.0
    %1488 = vmatpush2.msra.mxu0 0.0
    %1489 = vmatprep.subr.mxu0 0.0
    %1490 = vmatpush2.msra.mxu0 0.0
    %1491 = vmatprep.subr.mxu0 0.0
    %1492 = vmatpush2.msra.mxu0 0.0
    %1493 = vmatprep.subr.mxu0 0.0
    %1494 = vmatpush2.msra.mxu0 0.0
    %1495 = vmatprep.subr.mxu0 0.0
    %1496 = vmatpush2.msra.mxu0 0.0
    %1497 = vmatprep.subr.mxu0 0.0
    %1498 = vmatpush2.msra.mxu0 0.0
    %1499 = vmatprep.subr.mxu0 0.0
    %1500 = vmatpush2.msra.mxu0 0.0
    %1501 = vmatprep.subr.mxu0 0.0
    %1502 = vmatpush2.msra.mxu0 0.0
    %1503 = vmatprep.subr.mxu0 0.0
    %1504 = vmatpush2.msra.mxu0 0.0
    %1505 = vmatprep.subr.mxu0 0.0
    %1506 = vmatpush2.msra.mxu0 0.0
    %1507 = vmatprep.subr.mxu0 0.0
    %1508 = vmatpush2.msra.mxu0 0.0
    %1509 = vmatprep.subr.mxu0 0.0
    %1510 = vmatpush2.msra.mxu0 0.0
    %1511 = vmatprep.mubr.f32.mxu0 0.0
    %1512 = vmatmul.mubr.f32.gmra.mxu0 %v1442
    %v1513 = vpop.f32.mrf.mxu0
    %v1514 = vadd.f32 %v180, %v1513
    %v1515 = vpop.f32.mrf.mxu0
    %1516 = vmatprep.mubr.f32.mxu0 0.0
    %1517 = vmatmul.mubr.f32.gmra.mxu0 %v1445
    %v1518 = vpop.f32.mrf.mxu0
    %v1519 = vadd.f32 %v180, %v1518
    %v1520 = vpop.f32.mrf.mxu0
    %1521 = vdwg.mxu0
    %v1522 = vmul.f32 %v1514, %v265
    %v1523 = vmul.f32 %v1519, %v265
    %1526 = vrot.lane.b32.xlu0 %v1514, 96
    %v1527 = vpop.permute.xlu0 %1526
    %1528 = vrot.lane.b32.xlu0 %v1519, 96
    %v1529 = vpop.permute.xlu0 %1528
    %v1531 = vsel %vm137, %v1522, 0
    %v1534 = vsel %vm137, %v1523, 0
    %v1536 = vsel %vm137, %v1527, 0
    %v1538 = vsel %vm137, %v1529, 0
    %1540 = vmatprep.subr.mxu0 0.0
    %1541 = vmatpush1.xpose.msra.mxu0 0.0
    %1542 = vmatprep.subr.mxu0 0.0
    %1543 = vmatpush1.xpose.msra.mxu0 0.0
    %1544 = vmatprep.subr.mxu0 0.0
    %1545 = vmatpush1.xpose.msra.mxu0 0.0
    %1546 = vmatprep.subr.mxu0 0.0
    %1547 = vmatpush1.xpose.msra.mxu0 0.0
    %1548 = vmatprep.subr.mxu0 0.0
    %1549 = vmatpush1.xpose.msra.mxu0 0.0
    %1550 = vmatprep.subr.mxu0 0.0
    %1551 = vmatpush1.xpose.msra.mxu0 0.0
    %1552 = vmatprep.subr.mxu0 0.0
    %1553 = vmatpush1.xpose.msra.mxu0 0.0
    %1554 = vmatprep.subr.mxu0 0.0
    %1555 = vmatpush1.xpose.msra.mxu0 0.0
    %1556 = vmatprep.subr.mxu0 0.0
    %1557 = vmatpush1.xpose.msra.mxu0 0.0
    %1558 = vmatprep.subr.mxu0 0.0
    %1559 = vmatpush1.xpose.msra.mxu0 0.0
    %1560 = vmatprep.subr.mxu0 0.0
    %1561 = vmatpush1.xpose.msra.mxu0 0.0
    %1562 = vmatprep.subr.mxu0 0.0
    %1563 = vmatpush1.xpose.msra.mxu0 0.0
    %1564 = vmatprep.subr.mxu0 0.0
    %1565 = vmatpush1.xpose.msra.mxu0 0.0
    %1566 = vmatprep.subr.mxu0 0.0
    %1567 = vmatpush1.xpose.msra.mxu0 0.0
    %1568 = vmatprep.subr.mxu0 0.0
    %1569 = vmatpush1.xpose.msra.mxu0 %v1538
    %1570 = vmatprep.subr.mxu0 0.0
    %1571 = vmatpush1.xpose.msra.mxu0 %v1536
    %1572 = vmatprep.subr.mxu0 0.0
    %1573 = vmatpush2.xpose.msra.mxu0 0.0
    %1574 = vmatprep.subr.mxu0 0.0
    %1575 = vmatpush2.xpose.msra.mxu0 0.0
    %1576 = vmatprep.subr.mxu0 0.0
    %1577 = vmatpush2.xpose.msra.mxu0 0.0
    %1578 = vmatprep.subr.mxu0 0.0
    %1579 = vmatpush2.xpose.msra.mxu0 0.0
    %1580 = vmatprep.subr.mxu0 0.0
    %1581 = vmatpush2.xpose.msra.mxu0 0.0
    %1582 = vmatprep.subr.mxu0 0.0
    %1583 = vmatpush2.xpose.msra.mxu0 0.0
    %1584 = vmatprep.subr.mxu0 0.0
    %1585 = vmatpush2.xpose.msra.mxu0 0.0
    %1586 = vmatprep.subr.mxu0 0.0
    %1587 = vmatpush2.xpose.msra.mxu0 0.0
    %1588 = vmatprep.subr.mxu0 0.0
    %1589 = vmatpush2.xpose.msra.mxu0 0.0
    %1590 = vmatprep.subr.mxu0 0.0
    %1591 = vmatpush2.xpose.msra.mxu0 0.0
    %1592 = vmatprep.subr.mxu0 0.0
    %1593 = vmatpush2.xpose.msra.mxu0 0.0
    %1594 = vmatprep.subr.mxu0 0.0
    %1595 = vmatpush2.xpose.msra.mxu0 0.0
    %1596 = vmatprep.subr.mxu0 0.0
    %1597 = vmatpush2.xpose.msra.mxu0 0.0
    %1598 = vmatprep.subr.mxu0 0.0
    %1599 = vmatpush2.xpose.msra.mxu0 0.0
    %1600 = vmatprep.subr.mxu0 0.0
    %1601 = vmatpush2.xpose.msra.mxu0 0.0
    %1602 = vmatprep.subr.mxu0 0.0
    %1603 = vmatpush2.xpose.msra.mxu0 0.0
    %1604 = vmatprep.mubr.f32.mxu0 0.0
    %1605 = vmatmul.mubr.f32.gmra.mxu0 %v1531
    %v1606 = vpop.f32.mrf.mxu0
    %v1607 = vadd.f32 %v15, %v1606
    %v1608 = vpop.f32.mrf.mxu0
    %1609 = vmatprep.mubr.f32.mxu0 0.0
    %1610 = vmatmul.mubr.f32.gmra.mxu0 %v1534
    %v1611 = vpop.f32.mrf.mxu0
    %v1612 = vadd.f32 %v16, %v1611
    %v1613 = vpop.f32.mrf.mxu0
    %1614 = vdwg.mxu0
    %v1615 = vsel %vm55, %v1607, -inf
    %1616 = vmax.xlane.f32.xlu0 %v1615
    %v1617 = vpop.xlane.xlu0 %1616
    %v1618 = vsel %vm55, %v1612, -inf
    %1619 = vmax.xlane.f32.xlu0 %v1618
    %v1620 = vpop.xlane.xlu0 %1619
    %v1621 = vsub.f32 %v1607, %v1617
    %v1622 = vsub.f32 %v1612, %v1620
    %v1623 = vmul.f32 %v1621, 1.442695
    %v1624 = vpow.pop %v1623
    %v1625 = vmul.f32 %v1622, 1.442695
    %v1626 = vpow.pop %v1625
    %v1627 = vsel %vm55, %v1624, 0.0
    %1628 = vadd.xlane.f32.xlu0 %v1627
    %v1629 = vpop.xlane.xlu0 %1628
    %v1630 = vsel %vm55, %v1626, 0.0
    %1631 = vadd.xlane.f32.xlu0 %v1630
    %v1632 = vpop.xlane.xlu0 %1631
    %v1633 = vrcp.pop %v1629
    %v1634 = vrcp.pop %v1632
    %v1635 = vmul.f32 %v1624, %v1633
    %v1636 = vmul.f32 %v1626, %v1634
    %v1637 = vmul.f32 %v1514, %v383
    %v1638 = vmul.f32 %v1519, %v383
    %v1639 = vmul.f32 %v1514, %v390
    %v1640 = vmul.f32 %v1519, %v390
    %v1642 = vsel %vm137, %v1639, 0
    %v1645 = vsel %vm137, %v1640, 0
    %1647 = vmatprep.subr.mxu0 0.0
    %1648 = vmatpush1.xpose.msra.mxu0 0.0
    %1649 = vmatprep.subr.mxu0 0.0
    %1650 = vmatpush1.xpose.msra.mxu0 0.0
    %1651 = vmatprep.subr.mxu0 0.0
    %1652 = vmatpush1.xpose.msra.mxu0 0.0
    %1653 = vmatprep.subr.mxu0 0.0
    %1654 = vmatpush1.xpose.msra.mxu0 0.0
    %1655 = vmatprep.subr.mxu0 0.0
    %1656 = vmatpush1.xpose.msra.mxu0 0.0
    %1657 = vmatprep.subr.mxu0 0.0
    %1658 = vmatpush1.xpose.msra.mxu0 0.0
    %1659 = vmatprep.subr.mxu0 0.0
    %1660 = vmatpush1.xpose.msra.mxu0 0.0
    %1661 = vmatprep.subr.mxu0 0.0
    %1662 = vmatpush1.xpose.msra.mxu0 0.0
    %1663 = vmatprep.subr.mxu0 0.0
    %1664 = vmatpush1.xpose.msra.mxu0 0.0
    %1665 = vmatprep.subr.mxu0 0.0
    %1666 = vmatpush1.xpose.msra.mxu0 0.0
    %1667 = vmatprep.subr.mxu0 0.0
    %1668 = vmatpush1.xpose.msra.mxu0 0.0
    %1669 = vmatprep.subr.mxu0 0.0
    %1670 = vmatpush1.xpose.msra.mxu0 0.0
    %1671 = vmatprep.subr.mxu0 0.0
    %1672 = vmatpush1.xpose.msra.mxu0 0.0
    %1673 = vmatprep.subr.mxu0 0.0
    %1674 = vmatpush1.xpose.msra.mxu0 0.0
    %1675 = vmatprep.subr.mxu0 0.0
    %1676 = vmatpush1.xpose.msra.mxu0 %v1538
    %1677 = vmatprep.subr.mxu0 0.0
    %1678 = vmatpush1.xpose.msra.mxu0 %v1536
    %1679 = vmatprep.subr.mxu0 0.0
    %1680 = vmatpush2.xpose.msra.mxu0 0.0
    %1681 = vmatprep.subr.mxu0 0.0
    %1682 = vmatpush2.xpose.msra.mxu0 0.0
    %1683 = vmatprep.subr.mxu0 0.0
    %1684 = vmatpush2.xpose.msra.mxu0 0.0
    %1685 = vmatprep.subr.mxu0 0.0
    %1686 = vmatpush2.xpose.msra.mxu0 0.0
    %1687 = vmatprep.subr.mxu0 0.0
    %1688 = vmatpush2.xpose.msra.mxu0 0.0
    %1689 = vmatprep.subr.mxu0 0.0
    %1690 = vmatpush2.xpose.msra.mxu0 0.0
    %1691 = vmatprep.subr.mxu0 0.0
    %1692 = vmatpush2.xpose.msra.mxu0 0.0
    %1693 = vmatprep.subr.mxu0 0.0
    %1694 = vmatpush2.xpose.msra.mxu0 0.0
    %1695 = vmatprep.subr.mxu0 0.0
    %1696 = vmatpush2.xpose.msra.mxu0 0.0
    %1697 = vmatprep.subr.mxu0 0.0
    %1698 = vmatpush2.xpose.msra.mxu0 0.0
    %1699 = vmatprep.subr.mxu0 0.0
    %1700 = vmatpush2.xpose.msra.mxu0 0.0
    %1701 = vmatprep.subr.mxu0 0.0
    %1702 = vmatpush2.xpose.msra.mxu0 0.0
    %1703 = vmatprep.subr.mxu0 0.0
    %1704 = vmatpush2.xpose.msra.mxu0 0.0
    %1705 = vmatprep.subr.mxu0 0.0
    %1706 = vmatpush2.xpose.msra.mxu0 0.0
    %1707 = vmatprep.subr.mxu0 0.0
    %1708 = vmatpush2.xpose.msra.mxu0 0.0
    %1709 = vmatprep.subr.mxu0 0.0
    %1710 = vmatpush2.xpose.msra.mxu0 0.0
    %1711 = vmatprep.mubr.f32.mxu0 0.0
    %1712 = vmatmul.mubr.f32.gmra.mxu0 %v1642
    %v1713 = vpop.f32.mrf.mxu0
    %v1714 = vadd.f32 %v15, %v1713
    %v1715 = vpop.f32.mrf.mxu0
    %1716 = vmatprep.mubr.f32.mxu0 0.0
    %1717 = vmatmul.mubr.f32.gmra.mxu0 %v1645
    %v1718 = vpop.f32.mrf.mxu0
    %v1719 = vadd.f32 %v16, %v1718
    %v1720 = vpop.f32.mrf.mxu0
    %1721 = vdwg.mxu0
    %v1722 = vsel %vm55, %v1714, -inf
    %1723 = vmax.xlane.f32.xlu0 %v1722
    %v1724 = vpop.xlane.xlu0 %1723
    %v1725 = vsel %vm55, %v1719, -inf
    %1726 = vmax.xlane.f32.xlu0 %v1725
    %v1727 = vpop.xlane.xlu0 %1726
    %v1728 = vsub.f32 %v1714, %v1724
    %v1729 = vsub.f32 %v1719, %v1727
    %v1730 = vmul.f32 %v1728, 1.442695
    %v1731 = vpow.pop %v1730
    %v1732 = vmul.f32 %v1729, 1.442695
    %v1733 = vpow.pop %v1732
    %v1734 = vsel %vm55, %v1731, 0.0
    %1735 = vadd.xlane.f32.xlu0 %v1734
    %v1736 = vpop.xlane.xlu0 %1735
    %v1737 = vsel %vm55, %v1733, 0.0
    %1738 = vadd.xlane.f32.xlu0 %v1737
    %v1739 = vpop.xlane.xlu0 %1738
    %v1740 = vrcp.pop %v1736
    %v1741 = vrcp.pop %v1739
    %v1742 = vmul.f32 %v1731, %v1740
    %v1743 = vmul.f32 %v1733, %v1741
    %v1744 = vmul.f32 %v1514, %v498
    %v1745 = vmul.f32 %v1519, %v498
    %1748 = vrot.lane.b32.xlu0 %v1744, 64
    %v1749 = vpop.permute.xlu0 %1748
    %1750 = vrot.lane.b32.xlu0 %v1745, 64
    %v1751 = vpop.permute.xlu0 %1750
    %v1755 = vsel %vm55, %v1742, 0
    %v1758 = vsel %vm55, %v1743, 0
    %1760 = vmatprep.subr.mxu0 0.0
    %1761 = vmatpush1.msra.mxu0 0.0
    %1762 = vmatprep.subr.mxu0 0.0
    %1763 = vmatpush1.msra.mxu0 0.0
    %1764 = vmatprep.subr.mxu0 0.0
    %1765 = vmatpush1.msra.mxu0 0.0
    %1766 = vmatprep.subr.mxu0 0.0
    %1767 = vmatpush1.msra.mxu0 0.0
    %1768 = vmatprep.subr.mxu0 0.0
    %1769 = vmatpush1.msra.mxu0 0.0
    %1770 = vmatprep.subr.mxu0 0.0
    %1771 = vmatpush1.msra.mxu0 0.0
    %1772 = vmatprep.subr.mxu0 0.0
    %1773 = vmatpush1.msra.mxu0 0.0
    %1774 = vmatprep.subr.mxu0 0.0
    %1775 = vmatpush1.msra.mxu0 0.0
    %1776 = vmatprep.subr.mxu0 0.0
    %1777 = vmatpush1.msra.mxu0 0.0
    %1778 = vmatprep.subr.mxu0 0.0
    %1779 = vmatpush1.msra.mxu0 0.0
    %1780 = vmatprep.subr.mxu0 0.0
    %1781 = vmatpush1.msra.mxu0 0.0
    %1782 = vmatprep.subr.mxu0 0.0
    %1783 = vmatpush1.msra.mxu0 0.0
    %1784 = vmatprep.subr.mxu0 0.0
    %1785 = vmatpush1.msra.mxu0 0.0
    %1786 = vmatprep.subr.mxu0 0.0
    %1787 = vmatpush1.msra.mxu0 0.0
    %1788 = vmatprep.subr.mxu0 0.0
    %1789 = vmatpush1.msra.mxu0 %v1751
    %1790 = vmatprep.subr.mxu0 0.0
    %1791 = vmatpush1.msra.mxu0 %v1749
    %1792 = vmatprep.subr.mxu0 0.0
    %1793 = vmatpush2.msra.mxu0 0.0
    %1794 = vmatprep.subr.mxu0 0.0
    %1795 = vmatpush2.msra.mxu0 0.0
    %1796 = vmatprep.subr.mxu0 0.0
    %1797 = vmatpush2.msra.mxu0 0.0
    %1798 = vmatprep.subr.mxu0 0.0
    %1799 = vmatpush2.msra.mxu0 0.0
    %1800 = vmatprep.subr.mxu0 0.0
    %1801 = vmatpush2.msra.mxu0 0.0
    %1802 = vmatprep.subr.mxu0 0.0
    %1803 = vmatpush2.msra.mxu0 0.0
    %1804 = vmatprep.subr.mxu0 0.0
    %1805 = vmatpush2.msra.mxu0 0.0
    %1806 = vmatprep.subr.mxu0 0.0
    %1807 = vmatpush2.msra.mxu0 0.0
    %1808 = vmatprep.subr.mxu0 0.0
    %1809 = vmatpush2.msra.mxu0 0.0
    %1810 = vmatprep.subr.mxu0 0.0
    %1811 = vmatpush2.msra.mxu0 0.0
    %1812 = vmatprep.subr.mxu0 0.0
    %1813 = vmatpush2.msra.mxu0 0.0
    %1814 = vmatprep.subr.mxu0 0.0
    %1815 = vmatpush2.msra.mxu0 0.0
    %1816 = vmatprep.subr.mxu0 0.0
    %1817 = vmatpush2.msra.mxu0 0.0
    %1818 = vmatprep.subr.mxu0 0.0
    %1819 = vmatpush2.msra.mxu0 0.0
    %1820 = vmatprep.subr.mxu0 0.0
    %1821 = vmatpush2.msra.mxu0 0.0
    %1822 = vmatprep.subr.mxu0 0.0
    %1823 = vmatpush2.msra.mxu0 0.0
    %1824 = vmatprep.mubr.f32.mxu0 0.0
    %1825 = vmatmul.mubr.f32.gmra.mxu0 %v1755
    %v1826 = vpop.f32.mrf.mxu0
    %v1827 = vadd.f32 0.0, %v1826
    %v1828 = vpop.f32.mrf.mxu0
    %1829 = vmatprep.mubr.f32.mxu0 0.0
    %1830 = vmatmul.mubr.f32.gmra.mxu0 %v1758
    %v1831 = vpop.f32.mrf.mxu0
    %v1832 = vadd.f32 0.0, %v1831
    %v1833 = vpop.f32.mrf.mxu0
    %1834 = vdwg.mxu0
    %1837 = vrot.lane.b32.xlu0 %v1637, 64
    %v1838 = vpop.permute.xlu0 %1837
    %1839 = vrot.lane.b32.xlu0 %v1638, 64
    %v1840 = vpop.permute.xlu0 %1839
    %v1844 = vsel %vm55, %v1635, 0
    %v1847 = vsel %vm55, %v1636, 0
    %1849 = vmatprep.subr.mxu0 0.0
    %1850 = vmatpush1.msra.mxu0 0.0
    %1851 = vmatprep.subr.mxu0 0.0
    %1852 = vmatpush1.msra.mxu0 0.0
    %1853 = vmatprep.subr.mxu0 0.0
    %1854 = vmatpush1.msra.mxu0 0.0
    %1855 = vmatprep.subr.mxu0 0.0
    %1856 = vmatpush1.msra.mxu0 0.0
    %1857 = vmatprep.subr.mxu0 0.0
    %1858 = vmatpush1.msra.mxu0 0.0
    %1859 = vmatprep.subr.mxu0 0.0
    %1860 = vmatpush1.msra.mxu0 0.0
    %1861 = vmatprep.subr.mxu0 0.0
    %1862 = vmatpush1.msra.mxu0 0.0
    %1863 = vmatprep.subr.mxu0 0.0
    %1864 = vmatpush1.msra.mxu0 0.0
    %1865 = vmatprep.subr.mxu0 0.0
    %1866 = vmatpush1.msra.mxu0 0.0
    %1867 = vmatprep.subr.mxu0 0.0
    %1868 = vmatpush1.msra.mxu0 0.0
    %1869 = vmatprep.subr.mxu0 0.0
    %1870 = vmatpush1.msra.mxu0 0.0
    %1871 = vmatprep.subr.mxu0 0.0
    %1872 = vmatpush1.msra.mxu0 0.0
    %1873 = vmatprep.subr.mxu0 0.0
    %1874 = vmatpush1.msra.mxu0 0.0
    %1875 = vmatprep.subr.mxu0 0.0
    %1876 = vmatpush1.msra.mxu0 0.0
    %1877 = vmatprep.subr.mxu0 0.0
    %1878 = vmatpush1.msra.mxu0 %v1840
    %1879 = vmatprep.subr.mxu0 0.0
    %1880 = vmatpush1.msra.mxu0 %v1838
    %1881 = vmatprep.subr.mxu0 0.0
    %1882 = vmatpush2.msra.mxu0 0.0
    %1883 = vmatprep.subr.mxu0 0.0
    %1884 = vmatpush2.msra.mxu0 0.0
    %1885 = vmatprep.subr.mxu0 0.0
    %1886 = vmatpush2.msra.mxu0 0.0
    %1887 = vmatprep.subr.mxu0 0.0
    %1888 = vmatpush2.msra.mxu0 0.0
    %1889 = vmatprep.subr.mxu0 0.0
    %1890 = vmatpush2.msra.mxu0 0.0
    %1891 = vmatprep.subr.mxu0 0.0
    %1892 = vmatpush2.msra.mxu0 0.0
    %1893 = vmatprep.subr.mxu0 0.0
    %1894 = vmatpush2.msra.mxu0 0.0
    %1895 = vmatprep.subr.mxu0 0.0
    %1896 = vmatpush2.msra.mxu0 0.0
    %1897 = vmatprep.subr.mxu0 0.0
    %1898 = vmatpush2.msra.mxu0 0.0
    %1899 = vmatprep.subr.mxu0 0.0
    %1900 = vmatpush2.msra.mxu0 0.0
    %1901 = vmatprep.subr.mxu0 0.0
    %1902 = vmatpush2.msra.mxu0 0.0
    %1903 = vmatprep.subr.mxu0 0.0
    %1904 = vmatpush2.msra.mxu0 0.0
    %1905 = vmatprep.subr.mxu0 0.0
    %1906 = vmatpush2.msra.mxu0 0.0
    %1907 = vmatprep.subr.mxu0 0.0
    %1908 = vmatpush2.msra.mxu0 0.0
    %1909 = vmatprep.subr.mxu0 0.0
    %1910 = vmatpush2.msra.mxu0 0.0
    %1911 = vmatprep.subr.mxu0 0.0
    %1912 = vmatpush2.msra.mxu0 0.0
    %1913 = vmatprep.mubr.f32.mxu0 0.0
    %1914 = vmatmul.mubr.f32.gmra.mxu0 %v1844
    %v1915 = vpop.f32.mrf.mxu0
    %v1916 = vadd.f32 %v1827, %v1915
    %v1917 = vpop.f32.mrf.mxu0
    %1918 = vmatprep.mubr.f32.mxu0 0.0
    %1919 = vmatmul.mubr.f32.gmra.mxu0 %v1847
    %v1920 = vpop.f32.mrf.mxu0
    %v1921 = vadd.f32 %v1832, %v1920
    %v1922 = vpop.f32.mrf.mxu0
    %1923 = vdwg.mxu0
    %v1924 = vmul.f32 %v1514, %v683
    %v1925 = vmul.f32 %v1519, %v683
    %v1927 = vsel %vm137, %v1924, 0
    %v1930 = vsel %vm137, %v1925, 0
    %1932 = vmatprep.subr.mxu0 0.0
    %1933 = vmatpush1.xpose.msra.mxu0 0.0
    %1934 = vmatprep.subr.mxu0 0.0
    %1935 = vmatpush1.xpose.msra.mxu0 0.0
    %1936 = vmatprep.subr.mxu0 0.0
    %1937 = vmatpush1.xpose.msra.mxu0 0.0
    %1938 = vmatprep.subr.mxu0 0.0
    %1939 = vmatpush1.xpose.msra.mxu0 0.0
    %1940 = vmatprep.subr.mxu0 0.0
    %1941 = vmatpush1.xpose.msra.mxu0 0.0
    %1942 = vmatprep.subr.mxu0 0.0
    %1943 = vmatpush1.xpose.msra.mxu0 0.0
    %1944 = vmatprep.subr.mxu0 0.0
    %1945 = vmatpush1.xpose.msra.mxu0 0.0
    %1946 = vmatprep.subr.mxu0 0.0
    %1947 = vmatpush1.xpose.msra.mxu0 0.0
    %1948 = vmatprep.subr.mxu0 0.0
    %1949 = vmatpush1.xpose.msra.mxu0 0.0
    %1950 = vmatprep.subr.mxu0 0.0
    %1951 = vmatpush1.xpose.msra.mxu0 0.0
    %1952 = vmatprep.subr.mxu0 0.0
    %1953 = vmatpush1.xpose.msra.mxu0 0.0
    %1954 = vmatprep.subr.mxu0 0.0
    %1955 = vmatpush1.xpose.msra.mxu0 0.0
    %1956 = vmatprep.subr.mxu0 0.0
    %1957 = vmatpush1.xpose.msra.mxu0 0.0
    %1958 = vmatprep.subr.mxu0 0.0
    %1959 = vmatpush1.xpose.msra.mxu0 0.0
    %1960 = vmatprep.subr.mxu0 0.0
    %1961 = vmatpush1.xpose.msra.mxu0 %v1538
    %1962 = vmatprep.subr.mxu0 0.0
    %1963 = vmatpush1.xpose.msra.mxu0 %v1536
    %1964 = vmatprep.subr.mxu0 0.0
    %1965 = vmatpush2.xpose.msra.mxu0 0.0
    %1966 = vmatprep.subr.mxu0 0.0
    %1967 = vmatpush2.xpose.msra.mxu0 0.0
    %1968 = vmatprep.subr.mxu0 0.0
    %1969 = vmatpush2.xpose.msra.mxu0 0.0
    %1970 = vmatprep.subr.mxu0 0.0
    %1971 = vmatpush2.xpose.msra.mxu0 0.0
    %1972 = vmatprep.subr.mxu0 0.0
    %1973 = vmatpush2.xpose.msra.mxu0 0.0
    %1974 = vmatprep.subr.mxu0 0.0
    %1975 = vmatpush2.xpose.msra.mxu0 0.0
    %1976 = vmatprep.subr.mxu0 0.0
    %1977 = vmatpush2.xpose.msra.mxu0 0.0
    %1978 = vmatprep.subr.mxu0 0.0
    %1979 = vmatpush2.xpose.msra.mxu0 0.0
    %1980 = vmatprep.subr.mxu0 0.0
    %1981 = vmatpush2.xpose.msra.mxu0 0.0
    %1982 = vmatprep.subr.mxu0 0.0
    %1983 = vmatpush2.xpose.msra.mxu0 0.0
    %1984 = vmatprep.subr.mxu0 0.0
    %1985 = vmatpush2.xpose.msra.mxu0 0.0
    %1986 = vmatprep.subr.mxu0 0.0
    %1987 = vmatpush2.xpose.msra.mxu0 0.0
    %1988 = vmatprep.subr.mxu0 0.0
    %1989 = vmatpush2.xpose.msra.mxu0 0.0
    %1990 = vmatprep.subr.mxu0 0.0
    %1991 = vmatpush2.xpose.msra.mxu0 0.0
    %1992 = vmatprep.subr.mxu0 0.0
    %1993 = vmatpush2.xpose.msra.mxu0 0.0
    %1994 = vmatprep.subr.mxu0 0.0
    %1995 = vmatpush2.xpose.msra.mxu0 0.0
    %1996 = vmatprep.mubr.f32.mxu0 0.0
    %1997 = vmatmul.mubr.f32.gmra.mxu0 %v1927
    %v1998 = vpop.f32.mrf.mxu0
    %v1999 = vadd.f32 %v15, %v1998
    %v2000 = vpop.f32.mrf.mxu0
    %2001 = vmatprep.mubr.f32.mxu0 0.0
    %2002 = vmatmul.mubr.f32.gmra.mxu0 %v1930
    %v2003 = vpop.f32.mrf.mxu0
    %v2004 = vadd.f32 %v16, %v2003
    %v2005 = vpop.f32.mrf.mxu0
    %2006 = vdwg.mxu0
    %v2007 = vsel %vm55, %v1999, -inf
    %2008 = vmax.xlane.f32.xlu0 %v2007
    %v2009 = vpop.xlane.xlu0 %2008
    %v2010 = vsel %vm55, %v2004, -inf
    %2011 = vmax.xlane.f32.xlu0 %v2010
    %v2012 = vpop.xlane.xlu0 %2011
    %v2013 = vsub.f32 %v1999, %v2009
    %v2014 = vsub.f32 %v2004, %v2012
    %v2015 = vmul.f32 %v2013, 1.442695
    %v2016 = vpow.pop %v2015
    %v2017 = vmul.f32 %v2014, 1.442695
    %v2018 = vpow.pop %v2017
    %v2019 = vsel %vm55, %v2016, 0.0
    %2020 = vadd.xlane.f32.xlu0 %v2019
    %v2021 = vpop.xlane.xlu0 %2020
    %v2022 = vsel %vm55, %v2018, 0.0
    %2023 = vadd.xlane.f32.xlu0 %v2022
    %v2024 = vpop.xlane.xlu0 %2023
    %v2025 = vrcp.pop %v2021
    %v2026 = vrcp.pop %v2024
    %v2027 = vmul.f32 %v2016, %v2025
    %v2028 = vmul.f32 %v2018, %v2026
    %v2029 = vmul.f32 %v1514, %v791
    %v2030 = vmul.f32 %v1519, %v791
    %2033 = vrot.lane.b32.xlu0 %v2029, 64
    %v2034 = vpop.permute.xlu0 %2033
    %2035 = vrot.lane.b32.xlu0 %v2030, 64
    %v2036 = vpop.permute.xlu0 %2035
    %v2040 = vsel %vm55, %v2027, 0
    %v2043 = vsel %vm55, %v2028, 0
    %2045 = vmatprep.subr.mxu0 0.0
    %2046 = vmatpush1.msra.mxu0 0.0
    %2047 = vmatprep.subr.mxu0 0.0
    %2048 = vmatpush1.msra.mxu0 0.0
    %2049 = vmatprep.subr.mxu0 0.0
    %2050 = vmatpush1.msra.mxu0 0.0
    %2051 = vmatprep.subr.mxu0 0.0
    %2052 = vmatpush1.msra.mxu0 0.0
    %2053 = vmatprep.subr.mxu0 0.0
    %2054 = vmatpush1.msra.mxu0 0.0
    %2055 = vmatprep.subr.mxu0 0.0
    %2056 = vmatpush1.msra.mxu0 0.0
    %2057 = vmatprep.subr.mxu0 0.0
    %2058 = vmatpush1.msra.mxu0 0.0
    %2059 = vmatprep.subr.mxu0 0.0
    %2060 = vmatpush1.msra.mxu0 0.0
    %2061 = vmatprep.subr.mxu0 0.0
    %2062 = vmatpush1.msra.mxu0 0.0
    %2063 = vmatprep.subr.mxu0 0.0
    %2064 = vmatpush1.msra.mxu0 0.0
    %2065 = vmatprep.subr.mxu0 0.0
    %2066 = vmatpush1.msra.mxu0 0.0
    %2067 = vmatprep.subr.mxu0 0.0
    %2068 = vmatpush1.msra.mxu0 0.0
    %2069 = vmatprep.subr.mxu0 0.0
    %2070 = vmatpush1.msra.mxu0 0.0
    %2071 = vmatprep.subr.mxu0 0.0
    %2072 = vmatpush1.msra.mxu0 0.0
    %2073 = vmatprep.subr.mxu0 0.0
    %2074 = vmatpush1.msra.mxu0 %v2036
    %2075 = vmatprep.subr.mxu0 0.0
    %2076 = vmatpush1.msra.mxu0 %v2034
    %2077 = vmatprep.subr.mxu0 0.0
    %2078 = vmatpush2.msra.mxu0 0.0
    %2079 = vmatprep.subr.mxu0 0.0
    %2080 = vmatpush2.msra.mxu0 0.0
    %2081 = vmatprep.subr.mxu0 0.0
    %2082 = vmatpush2.msra.mxu0 0.0
    %2083 = vmatprep.subr.mxu0 0.0
    %2084 = vmatpush2.msra.mxu0 0.0
    %2085 = vmatprep.subr.mxu0 0.0
    %2086 = vmatpush2.msra.mxu0 0.0
    %2087 = vmatprep.subr.mxu0 0.0
    %2088 = vmatpush2.msra.mxu0 0.0
    %2089 = vmatprep.subr.mxu0 0.0
    %2090 = vmatpush2.msra.mxu0 0.0
    %2091 = vmatprep.subr.mxu0 0.0
    %2092 = vmatpush2.msra.mxu0 0.0
    %2093 = vmatprep.subr.mxu0 0.0
    %2094 = vmatpush2.msra.mxu0 0.0
    %2095 = vmatprep.subr.mxu0 0.0
    %2096 = vmatpush2.msra.mxu0 0.0
    %2097 = vmatprep.subr.mxu0 0.0
    %2098 = vmatpush2.msra.mxu0 0.0
    %2099 = vmatprep.subr.mxu0 0.0
    %2100 = vmatpush2.msra.mxu0 0.0
    %2101 = vmatprep.subr.mxu0 0.0
    %2102 = vmatpush2.msra.mxu0 0.0
    %2103 = vmatprep.subr.mxu0 0.0
    %2104 = vmatpush2.msra.mxu0 0.0
    %2105 = vmatprep.subr.mxu0 0.0
    %2106 = vmatpush2.msra.mxu0 0.0
    %2107 = vmatprep.subr.mxu0 0.0
    %2108 = vmatpush2.msra.mxu0 0.0
    %2109 = vmatprep.mubr.f32.mxu0 0.0
    %2110 = vmatmul.mubr.f32.gmra.mxu0 %v2040
    %v2111 = vpop.f32.mrf.mxu0
    %v2112 = vadd.f32 0.0, %v2111
    %v2113 = vpop.f32.mrf.mxu0
    %2114 = vmatprep.mubr.f32.mxu0 0.0
    %2115 = vmatmul.mubr.f32.gmra.mxu0 %v2043
    %v2116 = vpop.f32.mrf.mxu0
    %v2117 = vadd.f32 0.0, %v2116
    %v2118 = vpop.f32.mrf.mxu0
    %2119 = vdwg.mxu0
    %v2120 = vadd.f32 %v1916, %v2112
    %v2121 = vadd.f32 %v1921, %v2117
    %v2122 = vmul.f32 %v1514, %v889
    %v2123 = vmul.f32 %v1519, %v889
    %v2125 = vsel %vm137, %v2122, 0
    %v2128 = vsel %vm137, %v2123, 0
    %2130 = vmatprep.subr.mxu0 0.0
    %2131 = vmatpush1.xpose.msra.mxu0 0.0
    %2132 = vmatprep.subr.mxu0 0.0
    %2133 = vmatpush1.xpose.msra.mxu0 0.0
    %2134 = vmatprep.subr.mxu0 0.0
    %2135 = vmatpush1.xpose.msra.mxu0 0.0
    %2136 = vmatprep.subr.mxu0 0.0
    %2137 = vmatpush1.xpose.msra.mxu0 0.0
    %2138 = vmatprep.subr.mxu0 0.0
    %2139 = vmatpush1.xpose.msra.mxu0 0.0
    %2140 = vmatprep.subr.mxu0 0.0
    %2141 = vmatpush1.xpose.msra.mxu0 0.0
    %2142 = vmatprep.subr.mxu0 0.0
    %2143 = vmatpush1.xpose.msra.mxu0 0.0
    %2144 = vmatprep.subr.mxu0 0.0
    %2145 = vmatpush1.xpose.msra.mxu0 0.0
    %2146 = vmatprep.subr.mxu0 0.0
    %2147 = vmatpush1.xpose.msra.mxu0 0.0
    %2148 = vmatprep.subr.mxu0 0.0
    %2149 = vmatpush1.xpose.msra.mxu0 0.0
    %2150 = vmatprep.subr.mxu0 0.0
    %2151 = vmatpush1.xpose.msra.mxu0 0.0
    %2152 = vmatprep.subr.mxu0 0.0
    %2153 = vmatpush1.xpose.msra.mxu0 0.0
    %2154 = vmatprep.subr.mxu0 0.0
    %2155 = vmatpush1.xpose.msra.mxu0 0.0
    %2156 = vmatprep.subr.mxu0 0.0
    %2157 = vmatpush1.xpose.msra.mxu0 0.0
    %2158 = vmatprep.subr.mxu0 0.0
    %2159 = vmatpush1.xpose.msra.mxu0 %v1538
    %2160 = vmatprep.subr.mxu0 0.0
    %2161 = vmatpush1.xpose.msra.mxu0 %v1536
    %2162 = vmatprep.subr.mxu0 0.0
    %2163 = vmatpush2.xpose.msra.mxu0 0.0
    %2164 = vmatprep.subr.mxu0 0.0
    %2165 = vmatpush2.xpose.msra.mxu0 0.0
    %2166 = vmatprep.subr.mxu0 0.0
    %2167 = vmatpush2.xpose.msra.mxu0 0.0
    %2168 = vmatprep.subr.mxu0 0.0
    %2169 = vmatpush2.xpose.msra.mxu0 0.0
    %2170 = vmatprep.subr.mxu0 0.0
    %2171 = vmatpush2.xpose.msra.mxu0 0.0
    %2172 = vmatprep.subr.mxu0 0.0
    %2173 = vmatpush2.xpose.msra.mxu0 0.0
    %2174 = vmatprep.subr.mxu0 0.0
    %2175 = vmatpush2.xpose.msra.mxu0 0.0
    %2176 = vmatprep.subr.mxu0 0.0
    %2177 = vmatpush2.xpose.msra.mxu0 0.0
    %2178 = vmatprep.subr.mxu0 0.0
    %2179 = vmatpush2.xpose.msra.mxu0 0.0
    %2180 = vmatprep.subr.mxu0 0.0
    %2181 = vmatpush2.xpose.msra.mxu0 0.0
    %2182 = vmatprep.subr.mxu0 0.0
    %2183 = vmatpush2.xpose.msra.mxu0 0.0
    %2184 = vmatprep.subr.mxu0 0.0
    %2185 = vmatpush2.xpose.msra.mxu0 0.0
    %2186 = vmatprep.subr.mxu0 0.0
    %2187 = vmatpush2.xpose.msra.mxu0 0.0
    %2188 = vmatprep.subr.mxu0 0.0
    %2189 = vmatpush2.xpose.msra.mxu0 0.0
    %2190 = vmatprep.subr.mxu0 0.0
    %2191 = vmatpush2.xpose.msra.mxu0 0.0
    %2192 = vmatprep.subr.mxu0 0.0
    %2193 = vmatpush2.xpose.msra.mxu0 0.0
    %2194 = vmatprep.mubr.f32.mxu0 0.0
    %2195 = vmatmul.mubr.f32.gmra.mxu0 %v2125
    %v2196 = vpop.f32.mrf.mxu0
    %v2197 = vadd.f32 %v15, %v2196
    %v2198 = vpop.f32.mrf.mxu0
    %2199 = vmatprep.mubr.f32.mxu0 0.0
    %2200 = vmatmul.mubr.f32.gmra.mxu0 %v2128
    %v2201 = vpop.f32.mrf.mxu0
    %v2202 = vadd.f32 %v16, %v2201
    %v2203 = vpop.f32.mrf.mxu0
    %2204 = vdwg.mxu0
    %v2205 = vsel %vm55, %v2197, -inf
    %2206 = vmax.xlane.f32.xlu0 %v2205
    %v2207 = vpop.xlane.xlu0 %2206
    %v2208 = vsel %vm55, %v2202, -inf
    %2209 = vmax.xlane.f32.xlu0 %v2208
    %v2210 = vpop.xlane.xlu0 %2209
    %v2211 = vsub.f32 %v2197, %v2207
    %v2212 = vsub.f32 %v2202, %v2210
    %v2213 = vmul.f32 %v2211, 1.442695
    %v2214 = vpow.pop %v2213
    %v2215 = vmul.f32 %v2212, 1.442695
    %v2216 = vpow.pop %v2215
    %v2217 = vsel %vm55, %v2214, 0.0
    %2218 = vadd.xlane.f32.xlu0 %v2217
    %v2219 = vpop.xlane.xlu0 %2218
    %v2220 = vsel %vm55, %v2216, 0.0
    %2221 = vadd.xlane.f32.xlu0 %v2220
    %v2222 = vpop.xlane.xlu0 %2221
    %v2223 = vrcp.pop %v2219
    %v2224 = vrcp.pop %v2222
    %v2225 = vmul.f32 %v2214, %v2223
    %v2226 = vmul.f32 %v2216, %v2224
    %v2227 = vmul.f32 %v1514, %v997
    %v2228 = vmul.f32 %v1519, %v997
    %2231 = vrot.lane.b32.xlu0 %v2227, 64
    %v2232 = vpop.permute.xlu0 %2231
    %2233 = vrot.lane.b32.xlu0 %v2228, 64
    %v2234 = vpop.permute.xlu0 %2233
    %v2238 = vsel %vm55, %v2225, 0
    %v2241 = vsel %vm55, %v2226, 0
    %2243 = vmatprep.subr.mxu0 0.0
    %2244 = vmatpush1.msra.mxu0 0.0
    %2245 = vmatprep.subr.mxu0 0.0
    %2246 = vmatpush1.msra.mxu0 0.0
    %2247 = vmatprep.subr.mxu0 0.0
    %2248 = vmatpush1.msra.mxu0 0.0
    %2249 = vmatprep.subr.mxu0 0.0
    %2250 = vmatpush1.msra.mxu0 0.0
    %2251 = vmatprep.subr.mxu0 0.0
    %2252 = vmatpush1.msra.mxu0 0.0
    %2253 = vmatprep.subr.mxu0 0.0
    %2254 = vmatpush1.msra.mxu0 0.0
    %2255 = vmatprep.subr.mxu0 0.0
    %2256 = vmatpush1.msra.mxu0 0.0
    %2257 = vmatprep.subr.mxu0 0.0
    %2258 = vmatpush1.msra.mxu0 0.0
    %2259 = vmatprep.subr.mxu0 0.0
    %2260 = vmatpush1.msra.mxu0 0.0
    %2261 = vmatprep.subr.mxu0 0.0
    %2262 = vmatpush1.msra.mxu0 0.0
    %2263 = vmatprep.subr.mxu0 0.0
    %2264 = vmatpush1.msra.mxu0 0.0
    %2265 = vmatprep.subr.mxu0 0.0
    %2266 = vmatpush1.msra.mxu0 0.0
    %2267 = vmatprep.subr.mxu0 0.0
    %2268 = vmatpush1.msra.mxu0 0.0
    %2269 = vmatprep.subr.mxu0 0.0
    %2270 = vmatpush1.msra.mxu0 0.0
    %2271 = vmatprep.subr.mxu0 0.0
    %2272 = vmatpush1.msra.mxu0 %v2234
    %2273 = vmatprep.subr.mxu0 0.0
    %2274 = vmatpush1.msra.mxu0 %v2232
    %2275 = vmatprep.subr.mxu0 0.0
    %2276 = vmatpush2.msra.mxu0 0.0
    %2277 = vmatprep.subr.mxu0 0.0
    %2278 = vmatpush2.msra.mxu0 0.0
    %2279 = vmatprep.subr.mxu0 0.0
    %2280 = vmatpush2.msra.mxu0 0.0
    %2281 = vmatprep.subr.mxu0 0.0
    %2282 = vmatpush2.msra.mxu0 0.0
    %2283 = vmatprep.subr.mxu0 0.0
    %2284 = vmatpush2.msra.mxu0 0.0
    %2285 = vmatprep.subr.mxu0 0.0
    %2286 = vmatpush2.msra.mxu0 0.0
    %2287 = vmatprep.subr.mxu0 0.0
    %2288 = vmatpush2.msra.mxu0 0.0
    %2289 = vmatprep.subr.mxu0 0.0
    %2290 = vmatpush2.msra.mxu0 0.0
    %2291 = vmatprep.subr.mxu0 0.0
    %2292 = vmatpush2.msra.mxu0 0.0
    %2293 = vmatprep.subr.mxu0 0.0
    %2294 = vmatpush2.msra.mxu0 0.0
    %2295 = vmatprep.subr.mxu0 0.0
    %2296 = vmatpush2.msra.mxu0 0.0
    %2297 = vmatprep.subr.mxu0 0.0
    %2298 = vmatpush2.msra.mxu0 0.0
    %2299 = vmatprep.subr.mxu0 0.0
    %2300 = vmatpush2.msra.mxu0 0.0
    %2301 = vmatprep.subr.mxu0 0.0
    %2302 = vmatpush2.msra.mxu0 0.0
    %2303 = vmatprep.subr.mxu0 0.0
    %2304 = vmatpush2.msra.mxu0 0.0
    %2305 = vmatprep.subr.mxu0 0.0
    %2306 = vmatpush2.msra.mxu0 0.0
    %2307 = vmatprep.mubr.f32.mxu0 0.0
    %2308 = vmatmul.mubr.f32.gmra.mxu0 %v2238
    %v2309 = vpop.f32.mrf.mxu0
    %v2310 = vadd.f32 0.0, %v2309
    %v2311 = vpop.f32.mrf.mxu0
    %2312 = vmatprep.mubr.f32.mxu0 0.0
    %2313 = vmatmul.mubr.f32.gmra.mxu0 %v2241
    %v2314 = vpop.f32.mrf.mxu0
    %v2315 = vadd.f32 0.0, %v2314
    %v2316 = vpop.f32.mrf.mxu0
    %2317 = vdwg.mxu0
    %v2318 = vadd.f32 %v2120, %v2310
    %v2319 = vadd.f32 %v2121, %v2315
    %v2321 = vsel %vm137, %v2318, 0
    %v2324 = vsel %vm137, %v2319, 0
    %2326 = vmatprep.subr.mxu0 0.0
    %2327 = vmatpush1.msra.mxu0 0.0
    %2328 = vmatprep.subr.mxu0 0.0
    %2329 = vmatpush1.msra.mxu0 0.0
    %2330 = vmatprep.subr.mxu0 0.0
    %2331 = vmatpush1.msra.mxu0 0.0
    %2332 = vmatprep.subr.mxu0 0.0
    %2333 = vmatpush1.msra.mxu0 0.0
    %2334 = vmatprep.subr.mxu0 0.0
    %2335 = vmatpush1.msra.mxu0 0.0
    %2336 = vmatprep.subr.mxu0 0.0
    %2337 = vmatpush1.msra.mxu0 0.0
    %2338 = vmatprep.subr.mxu0 0.0
    %2339 = vmatpush1.msra.mxu0 0.0
    %2340 = vmatprep.subr.mxu0 0.0
    %2341 = vmatpush1.msra.mxu0 0.0
    %2342 = vmatprep.subr.mxu0 0.0
    %2343 = vmatpush1.msra.mxu0 0.0
    %2344 = vmatprep.subr.mxu0 0.0
    %2345 = vmatpush1.msra.mxu0 0.0
    %2346 = vmatprep.subr.mxu0 0.0
    %2347 = vmatpush1.msra.mxu0 0.0
    %2348 = vmatprep.subr.mxu0 0.0
    %2349 = vmatpush1.msra.mxu0 0.0
    %2350 = vmatprep.subr.mxu0 0.0
    %2351 = vmatpush1.msra.mxu0 %v30
    %2352 = vmatprep.subr.mxu0 0.0
    %2353 = vmatpush1.msra.mxu0 %v29
    %2354 = vmatprep.subr.mxu0 0.0
    %2355 = vmatpush1.msra.mxu0 %v28
    %2356 = vmatprep.subr.mxu0 0.0
    %2357 = vmatpush1.msra.mxu0 %v27
    %2358 = vmatprep.subr.mxu0 0.0
    %2359 = vmatpush2.msra.mxu0 0.0
    %2360 = vmatprep.subr.mxu0 0.0
    %2361 = vmatpush2.msra.mxu0 0.0
    %2362 = vmatprep.subr.mxu0 0.0
    %2363 = vmatpush2.msra.mxu0 0.0
    %2364 = vmatprep.subr.mxu0 0.0
    %2365 = vmatpush2.msra.mxu0 0.0
    %2366 = vmatprep.subr.mxu0 0.0
    %2367 = vmatpush2.msra.mxu0 0.0
    %2368 = vmatprep.subr.mxu0 0.0
    %2369 = vmatpush2.msra.mxu0 0.0
    %2370 = vmatprep.subr.mxu0 0.0
    %2371 = vmatpush2.msra.mxu0 0.0
    %2372 = vmatprep.subr.mxu0 0.0
    %2373 = vmatpush2.msra.mxu0 0.0
    %2374 = vmatprep.subr.mxu0 0.0
    %2375 = vmatpush2.msra.mxu0 0.0
    %2376 = vmatprep.subr.mxu0 0.0
    %2377 = vmatpush2.msra.mxu0 0.0
    %2378 = vmatprep.subr.mxu0 0.0
    %2379 = vmatpush2.msra.mxu0 0.0
    %2380 = vmatprep.subr.mxu0 0.0
    %2381 = vmatpush2.msra.mxu0 0.0
    %2382 = vmatprep.subr.mxu0 0.0
    %2383 = vmatpush2.msra.mxu0 0.0
    %2384 = vmatprep.subr.mxu0 0.0
    %2385 = vmatpush2.msra.mxu0 0.0
    %2386 = vmatprep.subr.mxu0 0.0
    %2387 = vmatpush2.msra.mxu0 0.0
    %2388 = vmatprep.subr.mxu0 0.0
    %2389 = vmatpush2.msra.mxu0 0.0
    %2390 = vmatprep.mubr.f32.mxu0 0.0
    %2391 = vmatmul.mubr.f32.gmra.mxu0 %v2321
    %v2392 = vpop.f32.mrf.mxu0
    %v2393 = vadd.f32 0.0, %v2392
    %v2394 = vpop.f32.mrf.mxu0
    %2395 = vmatprep.mubr.f32.mxu0 0.0
    %2396 = vmatmul.mubr.f32.gmra.mxu0 %v2324
    %v2397 = vpop.f32.mrf.mxu0
    %v2398 = vadd.f32 0.0, %v2397
    %v2399 = vpop.f32.mrf.mxu0
    %2400 = vdwg.mxu0
    %v2401 = vadd.f32 %v1409, %v2393
    %v2402 = vadd.f32 %v1410, %v2398
    %v2403 = vadd.f32 %v2401, %v1178
    %v2404 = vadd.f32 %v2402, %v1178
    %v2405 = vsel %vm137, %v2403, 0.0
    %2406 = vadd.xlane.f32.xlu0 %v2405
    %v2407 = vpop.xlane.xlu0 %2406
    %v2408 = vsel %vm137, %v2404, 0.0
    %2409 = vadd.xlane.f32.xlu0 %v2408
    %v2410 = vpop.xlane.xlu0 %2409
    %v2411 = vmul.f32 %v2407, %v144
    %v2412 = vmul.f32 %v2410, %v144
    %v2413 = vsub.f32 %v2403, %v2411
    %v2414 = vsub.f32 %v2404, %v2412
    %v2415 = vmul.f32 %v2413, %v2413
    %v2416 = vmul.f32 %v2414, %v2414
    %v2417 = vsel %vm137, %v2415, 0.0
    %2418 = vadd.xlane.f32.xlu0 %v2417
    %v2419 = vpop.xlane.xlu0 %2418
    %v2420 = vsel %vm137, %v2416, 0.0
    %2421 = vadd.xlane.f32.xlu0 %v2420
    %v2422 = vpop.xlane.xlu0 %2421
    %v2423 = vmul.f32 %v2419, %v144
    %v2424 = vmul.f32 %v2422, %v144
    %v2425 = vadd.f32 %v2423, 1e-05
    %v2426 = vadd.f32 %v2424, 1e-05
    %v2427 = vrsqrt.pop %v2425
    %v2428 = vrsqrt.pop %v2426
    %v2429 = vmul.f32 %v2413, %v2427
    %v2430 = vmul.f32 %v2414, %v2428
    %v2431 = vmul.f32 %v2429, %v1210
    %v2432 = vmul.f32 %v2430, %v1210
    %v2433 = vadd.f32 %v2431, %v1216
    %v2434 = vadd.f32 %v2432, %v1216
    %v2436 = vsel %vm137, %v2433, 0
    %v2439 = vsel %vm137, %v2434, 0
    %2441 = vmatprep.subr.mxu0 0.0
    %2442 = vmatpush1.msra.mxu0 0.0
    %2443 = vmatprep.subr.mxu0 0.0
    %2444 = vmatpush1.msra.mxu0 0.0
    %2445 = vmatprep.subr.mxu0 0.0
    %2446 = vmatpush1.msra.mxu0 0.0
    %2447 = vmatprep.subr.mxu0 0.0
    %2448 = vmatpush1.msra.mxu0 0.0
    %2449 = vmatprep.subr.mxu0 0.0
    %2450 = vmatpush1.msra.mxu0 0.0
    %2451 = vmatprep.subr.mxu0 0.0
    %2452 = vmatpush1.msra.mxu0 0.0
    %2453 = vmatprep.subr.mxu0 0.0
    %2454 = vmatpush1.msra.mxu0 0.0
    %2455 = vmatprep.subr.mxu0 0.0
    %2456 = vmatpush1.msra.mxu0 0.0
    %2457 = vmatprep.subr.mxu0 0.0
    %2458 = vmatpush1.msra.mxu0 0.0
    %2459 = vmatprep.subr.mxu0 0.0
    %2460 = vmatpush1.msra.mxu0 0.0
    %2461 = vmatprep.subr.mxu0 0.0
    %2462 = vmatpush1.msra.mxu0 0.0
    %2463 = vmatprep.subr.mxu0 0.0
    %2464 = vmatpush1.msra.mxu0 0.0
    %2465 = vmatprep.subr.mxu0 0.0
    %2466 = vmatpush1.msra.mxu0 %v34
    %2467 = vmatprep.subr.mxu0 0.0
    %2468 = vmatpush1.msra.mxu0 %v33
    %2469 = vmatprep.subr.mxu0 0.0
    %2470 = vmatpush1.msra.mxu0 %v32
    %2471 = vmatprep.subr.mxu0 0.0
    %2472 = vmatpush1.msra.mxu0 %v31
    %2473 = vmatprep.subr.mxu0 0.0
    %2474 = vmatpush2.msra.mxu0 0.0
    %2475 = vmatprep.subr.mxu0 0.0
    %2476 = vmatpush2.msra.mxu0 0.0
    %2477 = vmatprep.subr.mxu0 0.0
    %2478 = vmatpush2.msra.mxu0 0.0
    %2479 = vmatprep.subr.mxu0 0.0
    %2480 = vmatpush2.msra.mxu0 0.0
    %2481 = vmatprep.subr.mxu0 0.0
    %2482 = vmatpush2.msra.mxu0 0.0
    %2483 = vmatprep.subr.mxu0 0.0
    %2484 = vmatpush2.msra.mxu0 0.0
    %2485 = vmatprep.subr.mxu0 0.0
    %2486 = vmatpush2.msra.mxu0 0.0
    %2487 = vmatprep.subr.mxu0 0.0
    %2488 = vmatpush2.msra.mxu0 0.0
    %2489 = vmatprep.subr.mxu0 0.0
    %2490 = vmatpush2.msra.mxu0 0.0
    %2491 = vmatprep.subr.mxu0 0.0
    %2492 = vmatpush2.msra.mxu0 0.0
    %2493 = vmatprep.subr.mxu0 0.0
    %2494 = vmatpush2.msra.mxu0 0.0
    %2495 = vmatprep.subr.mxu0 0.0
    %2496 = vmatpush2.msra.mxu0 0.0
    %2497 = vmatprep.subr.mxu0 0.0
    %2498 = vmatpush2.msra.mxu0 0.0
    %2499 = vmatprep.subr.mxu0 0.0
    %2500 = vmatpush2.msra.mxu0 0.0
    %2501 = vmatprep.subr.mxu0 0.0
    %2502 = vmatpush2.msra.mxu0 0.0
    %2503 = vmatprep.subr.mxu0 0.0
    %2504 = vmatpush2.msra.mxu0 0.0
    %2505 = vmatprep.mubr.f32.mxu0 0.0
    %2506 = vmatmul.mubr.f32.gmra.mxu0 %v2436
    %v2507 = vpop.f32.mrf.mxu0
    %v2508 = vadd.f32 %v1222, %v2507
    %v2509 = vpop.f32.mrf.mxu0
    %2510 = vmatprep.mubr.f32.mxu0 0.0
    %2511 = vmatmul.mubr.f32.gmra.mxu0 %v2439
    %v2512 = vpop.f32.mrf.mxu0
    %v2513 = vadd.f32 %v1222, %v2512
    %v2514 = vpop.f32.mrf.mxu0
    %2515 = vdwg.mxu0
    %v2516 = vmul.f32 %v2508, 0.5
    %v2517 = vmul.f32 %v2513, 0.5
    %v2518 = vmul.f32 %v2508, 0.044715
    %v2519 = vmul.f32 %v2513, 0.044715
    %v2520 = vmul.f32 %v2518, %v2508
    %v2521 = vmul.f32 %v2519, %v2513
    %v2522 = vmul.f32 %v2520, %v2508
    %v2523 = vmul.f32 %v2521, %v2513
    %v2524 = vadd.f32 %v2508, %v2522
    %v2525 = vadd.f32 %v2513, %v2523
    %v2526 = vmul.f32 %v2524, 0.7978846
    %v2527 = vmul.f32 %v2525, 0.7978846
    %v2528 = vtanh.pop %v2526
    %v2529 = vtanh.pop %v2527
    %v2530 = vadd.f32 %v2528, 1.0
    %v2531 = vadd.f32 %v2529, 1.0
    %v2532 = vmul.f32 %v2516, %v2530
    %v2533 = vmul.f32 %v2517, %v2531
    %v2535 = vsel %vm137, %v2532, 0
    %v2538 = vsel %vm137, %v2533, 0
    %2540 = vmatprep.subr.mxu0 0.0
    %2541 = vmatpush1.msra.mxu0 0.0
    %2542 = vmatprep.subr.mxu0 0.0
    %2543 = vmatpush1.msra.mxu0 0.0
    %2544 = vmatprep.subr.mxu0 0.0
    %2545 = vmatpush1.msra.mxu0 0.0
    %2546 = vmatprep.subr.mxu0 0.0
    %2547 = vmatpush1.msra.mxu0 0.0
    %2548 = vmatprep.subr.mxu0 0.0
    %2549 = vmatpush1.msra.mxu0 0.0
    %2550 = vmatprep.subr.mxu0 0.0
    %2551 = vmatpush1.msra.mxu0 0.0
    %2552 = vmatprep.subr.mxu0 0.0
    %2553 = vmatpush1.msra.mxu0 0.0
    %2554 = vmatprep.subr.mxu0 0.0
    %2555 = vmatpush1.msra.mxu0 0.0
    %2556 = vmatprep.subr.mxu0 0.0
    %2557 = vmatpush1.msra.mxu0 0.0
    %2558 = vmatprep.subr.mxu0 0.0
    %2559 = vmatpush1.msra.mxu0 0.0
    %2560 = vmatprep.subr.mxu0 0.0
    %2561 = vmatpush1.msra.mxu0 0.0
    %2562 = vmatprep.subr.mxu0 0.0
    %2563 = vmatpush1.msra.mxu0 0.0
    %2564 = vmatprep.subr.mxu0 0.0
    %2565 = vmatpush1.msra.mxu0 %v38
    %2566 = vmatprep.subr.mxu0 0.0
    %2567 = vmatpush1.msra.mxu0 %v37
    %2568 = vmatprep.subr.mxu0 0.0
    %2569 = vmatpush1.msra.mxu0 %v36
    %2570 = vmatprep.subr.mxu0 0.0
    %2571 = vmatpush1.msra.mxu0 %v35
    %2572 = vmatprep.subr.mxu0 0.0
    %2573 = vmatpush2.msra.mxu0 0.0
    %2574 = vmatprep.subr.mxu0 0.0
    %2575 = vmatpush2.msra.mxu0 0.0
    %2576 = vmatprep.subr.mxu0 0.0
    %2577 = vmatpush2.msra.mxu0 0.0
    %2578 = vmatprep.subr.mxu0 0.0
    %2579 = vmatpush2.msra.mxu0 0.0
    %2580 = vmatprep.subr.mxu0 0.0
    %2581 = vmatpush2.msra.mxu0 0.0
    %2582 = vmatprep.subr.mxu0 0.0
    %2583 = vmatpush2.msra.mxu0 0.0
    %2584 = vmatprep.subr.mxu0 0.0
    %2585 = vmatpush2.msra.mxu0 0.0
    %2586 = vmatprep.subr.mxu0 0.0
    %2587 = vmatpush2.msra.mxu0 0.0
    %2588 = vmatprep.subr.mxu0 0.0
    %2589 = vmatpush2.msra.mxu0 0.0
    %2590 = vmatprep.subr.mxu0 0.0
    %2591 = vmatpush2.msra.mxu0 0.0
    %2592 = vmatprep.subr.mxu0 0.0
    %2593 = vmatpush2.msra.mxu0 0.0
    %2594 = vmatprep.subr.mxu0 0.0
    %2595 = vmatpush2.msra.mxu0 0.0
    %2596 = vmatprep.subr.mxu0 0.0
    %2597 = vmatpush2.msra.mxu0 0.0
    %2598 = vmatprep.subr.mxu0 0.0
    %2599 = vmatpush2.msra.mxu0 0.0
    %2600 = vmatprep.subr.mxu0 0.0
    %2601 = vmatpush2.msra.mxu0 0.0
    %2602 = vmatprep.subr.mxu0 0.0
    %2603 = vmatpush2.msra.mxu0 0.0
    %2604 = vmatprep.mubr.f32.mxu0 0.0
    %2605 = vmatmul.mubr.f32.gmra.mxu0 %v2535
    %v2606 = vpop.f32.mrf.mxu0
    %v2607 = vadd.f32 0.0, %v2606
    %v2608 = vpop.f32.mrf.mxu0
    %2609 = vmatprep.mubr.f32.mxu0 0.0
    %2610 = vmatmul.mubr.f32.gmra.mxu0 %v2538
    %v2611 = vpop.f32.mrf.mxu0
    %v2612 = vadd.f32 0.0, %v2611
    %v2613 = vpop.f32.mrf.mxu0
    %2614 = vdwg.mxu0
    %v2615 = vadd.f32 %v2403, %v2607
    %v2616 = vadd.f32 %v2404, %v2612
    %v2617 = vadd.f32 %v2615, %v1408
    %v2618 = vadd.f32 %v2616, %v1408
    %v2619 = vsel %vm137, %v2617, 0.0
    %2620 = vadd.xlane.f32.xlu0 %v2619
    %v2621 = vpop.xlane.xlu0 %2620
    %v2622 = vsel %vm137, %v2618, 0.0
    %2623 = vadd.xlane.f32.xlu0 %v2622
    %v2624 = vpop.xlane.xlu0 %2623
    %v2625 = vmul.f32 %v2621, %v144
    %v2626 = vmul.f32 %v2624, %v144
    %v2627 = vsub.f32 %v2617, %v2625
    %v2628 = vsub.f32 %v2618, %v2626
    %v2629 = vmul.f32 %v2627, %v2627
    %v2630 = vmul.f32 %v2628, %v2628
    %v2631 = vsel %vm137, %v2629, 0.0
    %2632 = vadd.xlane.f32.xlu0 %v2631
    %v2633 = vpop.xlane.xlu0 %2632
    %v2634 = vsel %vm137, %v2630, 0.0
    %2635 = vadd.xlane.f32.xlu0 %v2634
    %v2636 = vpop.xlane.xlu0 %2635
    %v2637 = vmul.f32 %v2633, %v144
    %v2638 = vmul.f32 %v2636, %v144
    %v2639 = vadd.f32 %v2637, 1e-05
    %v2640 = vadd.f32 %v2638, 1e-05
    %v2641 = vrsqrt.pop %v2639
    %v2642 = vrsqrt.pop %v2640
    %v2643 = vmul.f32 %v2627, %v2641
    %v2644 = vmul.f32 %v2628, %v2642
    %v2645 = vlaneseq
    %v2646 = vshrl.u32 %v2645, 7
    %v2647 = vsub.s32 0, %v2646
    %v2648 = vrot.slane %v47, %v2647
    %v2649 = vmul.f32 %v2643, %v2648
    %v2650 = vmul.f32 %v2644, %v2648
    %v2651 = vlaneseq
    %v2652 = vshrl.u32 %v2651, 7
    %v2653 = vsub.s32 0, %v2652
    %v2654 = vrot.slane %v48, %v2653
    %v2655 = vadd.f32 %v2649, %v2654
    %v2656 = vadd.f32 %v2650, %v2654
    %2658 = vset.pattern.permute.xlu0 0
    %2659 = vperm.xlu0 %2658, %v17
    %v2660 = vpop.permute.xlu0 %2659
    %2663 = vset.pattern.permute.xlu0 0
    %2664 = vperm.xlu0 %2663, %v18
    %v2665 = vpop.permute.xlu0 %2664
    %v2667 = vmul.f32 %v2655, %v2660
    %v2668 = vmul.f32 %v2656, %v2665
    %2669 = vst.msk [vmem:[#allocation2] sm:$0xff] %vm137, %v2667
    %2670 = vst.msk [vmem:[#allocation2 + $0x8] sm:$0xff] %vm137, %v2668
    // Predicated region
    $region14: #{model_forward.1} parent=1 // pred_check
      _
    $region15: #{model_forward.1} parent=1 // pred_check_branch
      %2672 = sbr.rel (0) target = $region17
    $region16: #{model_forward.1} parent=1 // pred_region
      %s2674 = ssub.s32 256, 256
      %2675 = vsyncadd [#allocation3], %s2674
      %s2676 = sshll.u32 [#allocation2], 4
      %s2677 = int_to_ptr.vmem [resolvable:$true] %s2676
      %2682 = dma.vmem_to_hbm [thread:$0]  %s2677, 256, %s3, [#allocation3], 128, 128, 8
    $region17: #{model_forward.1} parent=1 // pred_fallthru
      _
    // Predicated region
    $region18: #{model_forward.1} parent=1 // pred_check
      _
    $region19: #{model_forward.1} parent=1 // pred_check_branch
      %2684 = sbr.rel (0) target = $region21
    $region20: #{model_forward.1} parent=1 // pred_region
      %2685 = dma.done [#allocation3], 256
    $region21: #{model_forward.1} parent=1 // pred_fallthru
      _
    %2686 = vsyncpa [#allocation3], 1

</llo_original>
